<compile_context>
chip_gen: v7x
topology: tpu7x:2x2x1
jax: 0.10.0
libtpu: 0.0.40
codegen_flags: <defaults>
</compile_context>

<pallas_src>
import functools

import jax
import jax.numpy as jnp
from jax.experimental import pallas as pl
from jax.experimental.pallas import tpu as pltpu

D_IN = 257
D_IN_PAD = 384   # 3 * 128 -> lane-dense input tile (zero-padded feature cols)
D_HID = 512
D_OUT = 257
D_OUT_PAD = 384  # 3 * 128 -> lane-dense output (unmasked vector stores)


def _round_up(n, m):
    return ((n + m - 1) // m) * m


def fcnn_kernel(x_ref,
                w1_ref, b1_ref,
                w2_ref, b2_ref,
                w3_ref, b3_ref,
                w4_ref, b4_ref,
                w5_ref, b5_ref,
                o_ref):
    # Entire 5-layer MLP fused in a single kernel invocation. All weights are
    # bf16 and VMEM-resident (constant index_map -> DMA'd once); matmuls run on
    # the MXU with f32 accumulation; inter-layer activations drop back to bf16.
    h = x_ref[...]  # (tm, 384) bf16; columns 257..383 are zero

    h = jnp.dot(h, w1_ref[...], preferred_element_type=jnp.float32) + b1_ref[...]
    h = jnp.maximum(h, 0.0).astype(jnp.bfloat16)

    h = jnp.dot(h, w2_ref[...], preferred_element_type=jnp.float32) + b2_ref[...]
    h = jnp.maximum(h, 0.0).astype(jnp.bfloat16)

    h = jnp.dot(h, w3_ref[...], preferred_element_type=jnp.float32) + b3_ref[...]
    h = jnp.maximum(h, 0.0).astype(jnp.bfloat16)

    h = jnp.dot(h, w4_ref[...], preferred_element_type=jnp.float32) + b4_ref[...]
    h = jnp.maximum(h, 0.0).astype(jnp.bfloat16)

    h = jnp.dot(h, w5_ref[...], preferred_element_type=jnp.float32) + b5_ref[...]

    o_ref[...] = h.astype(o_ref.dtype)


@functools.partial(jax.jit, static_argnames=("tm",))
def fcnn_forward(x, params, tm=512):
    """x: (B, 257) any float dtype. params: flat tuple (w1,b1,...,w5,b5).

    tm: max batch tile (rows per grid step), must be a multiple of 16.
    Default 512 is a good fit for all generations; 1024 gives slightly better
    MXU occupancy on v6e/v7x for very large batches; keep <=512 on v5e.
    Small / ragged batches are handled by the adaptive tile logic below.
    """
    B = x.shape[0]
    assert x.shape[1] == D_IN
    assert tm % 16 == 0

    # PyTorch module does x.to(float32); we then drop to bf16 for the MXU.
    x = x.astype(jnp.float32).astype(jnp.bfloat16)

    # ---- batch tile selection (all static: shapes known at trace time) ----
    # * large batches: tm amortizes the ~0.35 us per-grid-step overhead,
    # * small batches: round up to 16 rows (bf16 sublane pack; also satisfies
    #   the f32 output block's sublane-of-8 rule) instead of a full tile,
    tm_eff = max(16, min(tm, _round_up(B, 16)))
    # * v7x megacore: prefer >=2 "parallel" grid tiles once each half-tile is
    #   still a meaningful amount of MXU work; harmless on v5e/v6e.
    if pl.cdiv(B, tm_eff) == 1 and B > 256:
        tm_eff = _round_up(pl.cdiv(B, 2), 16)

    n_tiles = pl.cdiv(B, tm_eff)
    B_pad = n_tiles * tm_eff

    # Zero-pad the batch to a whole number of tiles and the feature dim to 384
    # lanes (lane-dense input DMA; padded columns hit w1's zero-padded rows,
    # contributing exact zeros).
    x = jnp.pad(x, ((0, B_pad - B), (0, D_IN_PAD - D_IN)))

    in_specs = [pl.BlockSpec((tm_eff, D_IN_PAD), lambda i: (i, 0))]
    for p in params:
        # Full-array block, constant index_map: DMA'd into VMEM once, resident
        # across every batch tile (~2.3 MiB of bf16 weights total).
        in_specs.append(pl.BlockSpec(p.shape, lambda i: (0, 0)))

    out_spec = pl.BlockSpec((tm_eff, D_OUT_PAD), lambda i: (i, 0))

    flops = 2 * B_pad * (D_IN_PAD * D_HID + 3 * D_HID * D_HID + D_HID * D_OUT_PAD)
    bytes_accessed = (x.size * x.dtype.itemsize
                      + sum(int(p.size) * p.dtype.itemsize for p in params)
                      + B_pad * D_OUT_PAD * 4)

    out = pl.pallas_call(
        fcnn_kernel,
        out_shape=jax.ShapeDtypeStruct((B_pad, D_OUT_PAD), jnp.float32),
        grid_spec=pltpu.PrefetchScalarGridSpec(
            num_scalar_prefetch=0,
            grid=(n_tiles,),
            in_specs=in_specs,
            out_specs=out_spec,
        ),
        compiler_params=pltpu.CompilerParams(
            dimension_semantics=("parallel",),
            # Explicit limit: required on v5e (16 MiB scoped default); leaves
            # headroom for tm=1024 on v6e/v7x (~15-18 MiB peak footprint).
            vmem_limit_bytes=32 * 1024 * 1024,
        ),
        cost_estimate=pl.CostEstimate(
            flops=flops, transcendentals=0, bytes_accessed=bytes_accessed),
    )(x, *params)

    # Strip batch padding and the 384 -> 257 lane padding of the last layer.
    return out[:B, :D_OUT]


def init_params(key):
    """Deterministic synthetic parameters with PyTorch Linear init ranges.

    Weights stored as (in, out) bf16; biases (1, out) f32. Layer 1 is
    zero-padded along the input dim (257 -> 384) and layer 5 along the output
    dim (257 -> 384) so both the input and output tiles are lane-dense; the
    padded rows/cols contribute exact zeros and are sliced off.
    """
    dims = [(D_IN, D_HID), (D_HID, D_HID), (D_HID, D_HID), (D_HID, D_HID),
            (D_HID, D_OUT)]
    params = []
    for fan_in, fan_out in dims:
        key, kw, kb = jax.random.split(key, 3)
        bound = 1.0 / float(fan_in) ** 0.5
        w = jax.random.uniform(kw, (fan_in, fan_out), jnp.float32, -bound, bound)
        b = jax.random.uniform(kb, (1, fan_out), jnp.float32, -bound, bound)
        if fan_in == D_IN:   # layer 1: zero-pad input rows 257 -> 384
            w = jnp.pad(w, ((0, D_IN_PAD - D_IN), (0, 0)))
        if fan_out == D_OUT:  # layer 5: zero-pad output cols 257 -> 384
            w = jnp.pad(w, ((0, 0), (0, D_OUT_PAD - D_OUT)))
            b = jnp.pad(b, ((0, 0), (0, D_OUT_PAD - D_OUT)))
        params.extend([w.astype(jnp.bfloat16), b.astype(jnp.float32)])
    return tuple(params)


def fcnn_reference_bf16(x, params):
    """Pure-JAX reference with the kernel's numerics (bf16 ops, f32 accum)."""
    w1, b1, w2, b2, w3, b3, w4, b4, w5, b5 = params
    h = x.astype(jnp.float32).astype(jnp.bfloat16)
    h = jnp.pad(h, ((0, 0), (0, D_IN_PAD - D_IN)))

    def layer(h, w, b, relu):
        y = jnp.dot(h, w, preferred_element_type=jnp.float32) + b
        if relu:
            y = jnp.maximum(y, 0.0).astype(jnp.bfloat16)
        return y

    h = layer(h, w1, b1, True)
    h = layer(h, w2, b2, True)
    h = layer(h, w3, b3, True)
    h = layer(h, w4, b4, True)
    h = layer(h, w5, b5, False)
    return h[:, :D_OUT]


def fcnn_reference_f32(x, params):
    """f32-activation reference (same bf16 weight values, exact in f32).

    Quantifies the accuracy cost of the kernel's bf16 inter-layer activations
    vs. the original f32 PyTorch forward.
    """
    w1, b1, w2, b2, w3, b3, w4, b4, w5, b5 = params
    h = x.astype(jnp.float32)
    h = jnp.pad(h, ((0, 0), (0, D_IN_PAD - D_IN)))

    def layer(h, w, b, relu):
        y = jnp.dot(h, w.astype(jnp.float32), precision="highest",
                    preferred_element_type=jnp.float32) + b
        return jnp.maximum(y, 0.0) if relu else y

    h = layer(h, w1, b1, True)
    h = layer(h, w2, b2, True)
    h = layer(h, w3, b3, True)
    h = layer(h, w4, b4, True)
    h = layer(h, w5, b5, False)
    return h[:, :D_OUT]


if __name__ == "__main__":
    key = jax.random.PRNGKey(0)
    key, kx_small, kx_large = jax.random.split(key, 3)
    params = init_params(key)

    # B=8 exercises the small-batch adaptive tile (tm_eff=16, 1 grid step);
    # B=300 exercises the multi-tile / megacore-split path (2 parallel tiles).
    for B, kx in ((8, kx_small), (300, kx_large)):
        x = jax.random.normal(kx, (B, D_IN), jnp.float32)

        out = jax.block_until_ready(fcnn_forward(x, params))
        assert out.shape == (B, D_OUT), out.shape

        ref_bf16 = fcnn_reference_bf16(x, params)
        err_bf16 = float(jnp.max(jnp.abs(out - ref_bf16)))
        assert jnp.allclose(out, ref_bf16, atol=1e-3, rtol=1e-3), err_bf16

        # Accuracy vs. an f32-activation forward (bf16 trade-off made explicit).
        ref_f32 = fcnn_reference_f32(x, params)
        err_f32 = float(jnp.max(jnp.abs(out - ref_f32)))
        assert jnp.allclose(out, ref_f32, atol=5e-2, rtol=5e-2), err_f32

    print("KERNEL_OK")
</pallas_src>

<mosaic_0001>
module attributes {stable_mosaic.version = 11 : i64} {
  func.func @fcnn_kernel(%arg0: i32, %arg1: memref<16x384xbf16, #tpu.memory_space<vmem>>, %arg2: memref<384x512xbf16, #tpu.memory_space<vmem>>, %arg3: memref<1x512xf32, #tpu.memory_space<vmem>>, %arg4: memref<512x512xbf16, #tpu.memory_space<vmem>>, %arg5: memref<1x512xf32, #tpu.memory_space<vmem>>, %arg6: memref<512x512xbf16, #tpu.memory_space<vmem>>, %arg7: memref<1x512xf32, #tpu.memory_space<vmem>>, %arg8: memref<512x512xbf16, #tpu.memory_space<vmem>>, %arg9: memref<1x512xf32, #tpu.memory_space<vmem>>, %arg10: memref<512x384xbf16, #tpu.memory_space<vmem>>, %arg11: memref<1x384xf32, #tpu.memory_space<vmem>>, %arg12: memref<16x384xf32, #tpu.memory_space<vmem>>) attributes {dimension_semantics = [#tpu.dimension_semantics<parallel>], iteration_bounds = array<i64: 1>, scalar_prefetch = 0 : i64, scratch_operands = 0 : i64, tpu.core_type = #tpu.core_type<tc>, window_params = [{transform_indices = @transform_0, window_bounds = array<i64: 16, 384>}, {pipeline_mode = #tpu.pipeline_mode<synchronous>, transform_indices = @transform_1, window_bounds = array<i64: 384, 512>}, {pipeline_mode = #tpu.pipeline_mode<synchronous>, transform_indices = @transform_2, window_bounds = array<i64: 1, 512>}, {pipeline_mode = #tpu.pipeline_mode<synchronous>, transform_indices = @transform_3, window_bounds = array<i64: 512, 512>}, {pipeline_mode = #tpu.pipeline_mode<synchronous>, transform_indices = @transform_4, window_bounds = array<i64: 1, 512>}, {pipeline_mode = #tpu.pipeline_mode<synchronous>, transform_indices = @transform_5, window_bounds = array<i64: 512, 512>}, {pipeline_mode = #tpu.pipeline_mode<synchronous>, transform_indices = @transform_6, window_bounds = array<i64: 1, 512>}, {pipeline_mode = #tpu.pipeline_mode<synchronous>, transform_indices = @transform_7, window_bounds = array<i64: 512, 512>}, {pipeline_mode = #tpu.pipeline_mode<synchronous>, transform_indices = @transform_8, window_bounds = array<i64: 1, 512>}, {pipeline_mode = #tpu.pipeline_mode<synchronous>, transform_indices = @transform_9, window_bounds = array<i64: 512, 384>}, {pipeline_mode = #tpu.pipeline_mode<synchronous>, transform_indices = @transform_10, window_bounds = array<i64: 1, 384>}, {transform_indices = @transform_11, window_bounds = array<i64: 16, 384>}]} {
    %c0 = arith.constant 0 : index
    %c0_0 = arith.constant 0 : index
    %0 = vector.load %arg1[%c0, %c0_0] : memref<16x384xbf16, #tpu.memory_space<vmem>>, vector<16x384xbf16>
    %c0_1 = arith.constant 0 : index
    %c0_2 = arith.constant 0 : index
    %1 = vector.load %arg2[%c0_1, %c0_2] : memref<384x512xbf16, #tpu.memory_space<vmem>>, vector<384x512xbf16>
    %cst = arith.constant dense<0.000000e+00> : vector<16x512xf32>
    %2 = tpu.matmul %0, %1, %cst {dimension_numbers = #tpu.dot_dimension_numbers<[1], [0], [0], [1], [0, 0, 1, 1], [], []>} : vector<16x384xbf16>, vector<384x512xbf16>, vector<16x512xf32> -> vector<16x512xf32>
    %c0_3 = arith.constant 0 : index
    %c0_4 = arith.constant 0 : index
    %3 = vector.load %arg3[%c0_3, %c0_4] : memref<1x512xf32, #tpu.memory_space<vmem>>, vector<1x512xf32>
    %4 = vector.broadcast %3 : vector<1x512xf32> to vector<16x512xf32>
    %5 = arith.addf %2, %4 : vector<16x512xf32>
    %cst_5 = arith.constant 0.000000e+00 : f32
    %6 = vector.broadcast %cst_5 : f32 to vector<16x512xf32>
    %7 = arith.maximumf %5, %6 : vector<16x512xf32>
    %8 = arith.truncf %7 : vector<16x512xf32> to vector<16x512xbf16>
    %c0_6 = arith.constant 0 : index
    %c0_7 = arith.constant 0 : index
    %9 = vector.load %arg4[%c0_6, %c0_7] : memref<512x512xbf16, #tpu.memory_space<vmem>>, vector<512x512xbf16>
    %cst_8 = arith.constant dense<0.000000e+00> : vector<16x512xf32>
    %10 = tpu.matmul %8, %9, %cst_8 {dimension_numbers = #tpu.dot_dimension_numbers<[1], [0], [0], [1], [0, 0, 1, 1], [], []>} : vector<16x512xbf16>, vector<512x512xbf16>, vector<16x512xf32> -> vector<16x512xf32>
    %c0_9 = arith.constant 0 : index
    %c0_10 = arith.constant 0 : index
    %11 = vector.load %arg5[%c0_9, %c0_10] : memref<1x512xf32, #tpu.memory_space<vmem>>, vector<1x512xf32>
    %12 = vector.broadcast %11 : vector<1x512xf32> to vector<16x512xf32>
    %13 = arith.addf %10, %12 : vector<16x512xf32>
    %cst_11 = arith.constant 0.000000e+00 : f32
    %14 = vector.broadcast %cst_11 : f32 to vector<16x512xf32>
    %15 = arith.maximumf %13, %14 : vector<16x512xf32>
    %16 = arith.truncf %15 : vector<16x512xf32> to vector<16x512xbf16>
    %c0_12 = arith.constant 0 : index
    %c0_13 = arith.constant 0 : index
    %17 = vector.load %arg6[%c0_12, %c0_13] : memref<512x512xbf16, #tpu.memory_space<vmem>>, vector<512x512xbf16>
    %cst_14 = arith.constant dense<0.000000e+00> : vector<16x512xf32>
    %18 = tpu.matmul %16, %17, %cst_14 {dimension_numbers = #tpu.dot_dimension_numbers<[1], [0], [0], [1], [0, 0, 1, 1], [], []>} : vector<16x512xbf16>, vector<512x512xbf16>, vector<16x512xf32> -> vector<16x512xf32>
    %c0_15 = arith.constant 0 : index
    %c0_16 = arith.constant 0 : index
    %19 = vector.load %arg7[%c0_15, %c0_16] : memref<1x512xf32, #tpu.memory_space<vmem>>, vector<1x512xf32>
    %20 = vector.broadcast %19 : vector<1x512xf32> to vector<16x512xf32>
    %21 = arith.addf %18, %20 : vector<16x512xf32>
    %cst_17 = arith.constant 0.000000e+00 : f32
    %22 = vector.broadcast %cst_17 : f32 to vector<16x512xf32>
    %23 = arith.maximumf %21, %22 : vector<16x512xf32>
    %24 = arith.truncf %23 : vector<16x512xf32> to vector<16x512xbf16>
    %c0_18 = arith.constant 0 : index
    %c0_19 = arith.constant 0 : index
    %25 = vector.load %arg8[%c0_18, %c0_19] : memref<512x512xbf16, #tpu.memory_space<vmem>>, vector<512x512xbf16>
    %cst_20 = arith.constant dense<0.000000e+00> : vector<16x512xf32>
    %26 = tpu.matmul %24, %25, %cst_20 {dimension_numbers = #tpu.dot_dimension_numbers<[1], [0], [0], [1], [0, 0, 1, 1], [], []>} : vector<16x512xbf16>, vector<512x512xbf16>, vector<16x512xf32> -> vector<16x512xf32>
    %c0_21 = arith.constant 0 : index
    %c0_22 = arith.constant 0 : index
    %27 = vector.load %arg9[%c0_21, %c0_22] : memref<1x512xf32, #tpu.memory_space<vmem>>, vector<1x512xf32>
    %28 = vector.broadcast %27 : vector<1x512xf32> to vector<16x512xf32>
    %29 = arith.addf %26, %28 : vector<16x512xf32>
    %cst_23 = arith.constant 0.000000e+00 : f32
    %30 = vector.broadcast %cst_23 : f32 to vector<16x512xf32>
    %31 = arith.maximumf %29, %30 : vector<16x512xf32>
    %32 = arith.truncf %31 : vector<16x512xf32> to vector<16x512xbf16>
    %c0_24 = arith.constant 0 : index
    %c0_25 = arith.constant 0 : index
    %33 = vector.load %arg10[%c0_24, %c0_25] : memref<512x384xbf16, #tpu.memory_space<vmem>>, vector<512x384xbf16>
    %cst_26 = arith.constant dense<0.000000e+00> : vector<16x384xf32>
    %34 = tpu.matmul %32, %33, %cst_26 {dimension_numbers = #tpu.dot_dimension_numbers<[1], [0], [0], [1], [0, 0, 1, 1], [], []>} : vector<16x512xbf16>, vector<512x384xbf16>, vector<16x384xf32> -> vector<16x384xf32>
    %c0_27 = arith.constant 0 : index
    %c0_28 = arith.constant 0 : index
    %35 = vector.load %arg11[%c0_27, %c0_28] : memref<1x384xf32, #tpu.memory_space<vmem>>, vector<1x384xf32>
    %36 = vector.broadcast %35 : vector<1x384xf32> to vector<16x384xf32>
    %37 = arith.addf %34, %36 : vector<16x384xf32>
    %c0_29 = arith.constant 0 : index
    %c0_30 = arith.constant 0 : index
    %38 = vector.load %arg12[%c0_29, %c0_30] : memref<16x384xf32, #tpu.memory_space<vmem>>, vector<16x384xf32>
    tpu.vector_store %arg12[%c0_29, %c0_30], %37 {strides = array<i32>} : memref<16x384xf32, #tpu.memory_space<vmem>>, vector<16x384xf32>,
    return
  }
  func.func @transform_0(%arg0: i32) -> (i32, i32) {
    %c0_i32 = arith.constant 0 : i32
    %c0_i32_0 = arith.constant 0 : i32
    return %arg0, %c0_i32 : i32, i32
  }
  func.func @transform_1(%arg0: i32) -> (i32, i32) {
    %c0_i32 = arith.constant 0 : i32
    %c0_i32_0 = arith.constant 0 : i32
    %c0_i32_1 = arith.constant 0 : i32
    return %c0_i32, %c0_i32_0 : i32, i32
  }
  func.func @transform_2(%arg0: i32) -> (i32, i32) {
    %c0_i32 = arith.constant 0 : i32
    %c0_i32_0 = arith.constant 0 : i32
    %c0_i32_1 = arith.constant 0 : i32
    return %c0_i32, %c0_i32_0 : i32, i32
  }
  func.func @transform_3(%arg0: i32) -> (i32, i32) {
    %c0_i32 = arith.constant 0 : i32
    %c0_i32_0 = arith.constant 0 : i32
    %c0_i32_1 = arith.constant 0 : i32
    return %c0_i32, %c0_i32_0 : i32, i32
  }
  func.func @transform_4(%arg0: i32) -> (i32, i32) {
    %c0_i32 = arith.constant 0 : i32
    %c0_i32_0 = arith.constant 0 : i32
    %c0_i32_1 = arith.constant 0 : i32
    return %c0_i32, %c0_i32_0 : i32, i32
  }
  func.func @transform_5(%arg0: i32) -> (i32, i32) {
    %c0_i32 = arith.constant 0 : i32
    %c0_i32_0 = arith.constant 0 : i32
    %c0_i32_1 = arith.constant 0 : i32
    return %c0_i32, %c0_i32_0 : i32, i32
  }
  func.func @transform_6(%arg0: i32) -> (i32, i32) {
    %c0_i32 = arith.constant 0 : i32
    %c0_i32_0 = arith.constant 0 : i32
    %c0_i32_1 = arith.constant 0 : i32
    return %c0_i32, %c0_i32_0 : i32, i32
  }
  func.func @transform_7(%arg0: i32) -> (i32, i32) {
    %c0_i32 = arith.constant 0 : i32
    %c0_i32_0 = arith.constant 0 : i32
    %c0_i32_1 = arith.constant 0 : i32
    return %c0_i32, %c0_i32_0 : i32, i32
  }
  func.func @transform_8(%arg0: i32) -> (i32, i32) {
    %c0_i32 = arith.constant 0 : i32
    %c0_i32_0 = arith.constant 0 : i32
    %c0_i32_1 = arith.constant 0 : i32
    return %c0_i32, %c0_i32_0 : i32, i32
  }
  func.func @transform_9(%arg0: i32) -> (i32, i32) {
    %c0_i32 = arith.constant 0 : i32
    %c0_i32_0 = arith.constant 0 : i32
    %c0_i32_1 = arith.constant 0 : i32
    return %c0_i32, %c0_i32_0 : i32, i32
  }
  func.func @transform_10(%arg0: i32) -> (i32, i32) {
    %c0_i32 = arith.constant 0 : i32
    %c0_i32_0 = arith.constant 0 : i32
    %c0_i32_1 = arith.constant 0 : i32
    return %c0_i32, %c0_i32_0 : i32, i32
  }
  func.func @transform_11(%arg0: i32) -> (i32, i32) {
    %c0_i32 = arith.constant 0 : i32
    %c0_i32_0 = arith.constant 0 : i32
    return %arg0, %c0_i32 : i32, i32
  }
}

</mosaic_0001>

<llo_original>
// kernel: fcnn_forward.1
$region0: #{fcnn_forward.1}
  #allocation0 [shape = 'u32[]', space=smem, size = 0x4, offset = 0x4, fixed_abs, tag = 'smem constant byte address 0x4 - core index']
  #allocation1 [shape = 'u32[144,128]{1,0:T(1,128)}', space=vmem, size = 0x12000, scoped, tag = 'internal scratch']
  %s0 = inlined_call_operand.vmem [shape: bf16[16,384], index: 0, kind: input, shape index: {}]
  %s1 = inlined_call_operand.hbm [shape: bf16[384,512], index: 1, kind: input, shape index: {}]
  %s2 = inlined_call_operand.vmem [shape: f32[1,512], index: 2, kind: input, shape index: {}]
  %s3 = inlined_call_operand.hbm [shape: bf16[512,512], index: 3, kind: input, shape index: {}]
  %s4 = inlined_call_operand.vmem [shape: f32[1,512], index: 4, kind: input, shape index: {}]
  %s5 = inlined_call_operand.hbm [shape: bf16[512,512], index: 5, kind: input, shape index: {}]
  %s6 = inlined_call_operand.vmem [shape: f32[1,512], index: 6, kind: input, shape index: {}]
  %s7 = inlined_call_operand.hbm [shape: bf16[512,512], index: 7, kind: input, shape index: {}]
  %s8 = inlined_call_operand.vmem [shape: f32[1,512], index: 8, kind: input, shape index: {}]
  %s9 = inlined_call_operand.hbm [shape: bf16[512,384], index: 9, kind: input, shape index: {}]
  %s10 = inlined_call_operand.vmem [shape: f32[1,384], index: 10, kind: input, shape index: {}]
  %s11 = inlined_call_operand.vmem [shape: f32[16,384], index: 11, kind: output, shape index: {}]
  %s12 = sld [smem:[#allocation0]]
  $region74: #{fcnn_forward.1} parent=0
    _
  %s14 = ssub.s32 1, %s12
  %s15 = scalar_select 0, %s14, %s12
  $region1: #{fcnn_forward.1} parent=0
    #allocation2 [shape = 'u8[393216]{0}', space=vmem, size = 0x60000, scoped, tag = 'input window, operand 1, single buffered']
    #allocation3 [shape = 's32[1]{0}', space=sflag, size = 0x4, scoped, tag = 'scoped memory for fcnn_forward.1']
    #allocation4 [shape = 'u8[524288]{0}', space=vmem, size = 0x80000, scoped, tag = 'input window, operand 3, single buffered']
    #allocation5 [shape = 's32[1]{0}', space=sflag, size = 0x4, scoped, tag = 'scoped memory for fcnn_forward.1']
    #allocation6 [shape = 'u8[524288]{0}', space=vmem, size = 0x80000, scoped, tag = 'input window, operand 5, single buffered']
    #allocation7 [shape = 'u8[524288]{0}', space=vmem, size = 0x80000, scoped, tag = 'input window, operand 7, single buffered']
    #allocation8 [shape = 's32[1]{0}', space=sflag, size = 0x4, scoped, tag = 'scoped memory for fcnn_forward.1']
    #allocation9 [shape = 'u8[393216]{0}', space=vmem, size = 0x60000, scoped, tag = 'input window, operand 9, single buffered']
    %16 = vsyncpa [#allocation3], 0
    %17 = vsyncpa [#allocation5], 0
    %18 = vsyncpa [#allocation8], 0
    // Predicated region
    $region2: #{fcnn_forward.1} parent=1 // pred_check
      _
    $region3: #{fcnn_forward.1} parent=1 // pred_check_branch
      %20 = sbr.rel (0) target = $region5
    $region4: #{fcnn_forward.1} parent=1 // pred_region
      _
    $region5: #{fcnn_forward.1} parent=1 // pred_fallthru
      _
    // Predicated region
    $region6: #{fcnn_forward.1} parent=1 // pred_check
      _
    $region7: #{fcnn_forward.1} parent=1 // pred_check_branch
      %22 = sbr.rel (0) target = $region9
    $region8: #{fcnn_forward.1} parent=1 // pred_region
      %s24 = ssub.s32 12288, 12288
      %25 = vsyncadd [#allocation3], %s24
      %s26 = sshll.u32 [#allocation2], 4
      %s27 = int_to_ptr.vmem [resolvable:$true] %s26
      %32 = dma.hbm_to_vmem [thread:$0]  %s1, 12288, %s27, [#allocation3], 256, 256, 16
    $region9: #{fcnn_forward.1} parent=1 // pred_fallthru
      _
    // Predicated region
    $region10: #{fcnn_forward.1} parent=1 // pred_check
      _
    $region11: #{fcnn_forward.1} parent=1 // pred_check_branch
      %34 = sbr.rel (0) target = $region13
    $region12: #{fcnn_forward.1} parent=1 // pred_region
      _
    $region13: #{fcnn_forward.1} parent=1 // pred_fallthru
      _
    // Predicated region
    $region14: #{fcnn_forward.1} parent=1 // pred_check
      _
    $region15: #{fcnn_forward.1} parent=1 // pred_check_branch
      %36 = sbr.rel (0) target = $region17
    $region16: #{fcnn_forward.1} parent=1 // pred_region
      %s38 = ssub.s32 16384, 16384
      %39 = vsyncadd [#allocation5], %s38
      %s40 = sshll.u32 [#allocation4], 4
      %s41 = int_to_ptr.vmem [resolvable:$true] %s40
      %46 = dma.hbm_to_vmem [thread:$0]  %s3, 16384, %s41, [#allocation5], 256, 256, 16
    $region17: #{fcnn_forward.1} parent=1 // pred_fallthru
      _
    // Predicated region
    $region18: #{fcnn_forward.1} parent=1 // pred_check
      _
    $region19: #{fcnn_forward.1} parent=1 // pred_check_branch
      %48 = sbr.rel (0) target = $region21
    $region20: #{fcnn_forward.1} parent=1 // pred_region
      _
    $region21: #{fcnn_forward.1} parent=1 // pred_fallthru
      _
    // Predicated region
    $region22: #{fcnn_forward.1} parent=1 // pred_check
      _
    $region23: #{fcnn_forward.1} parent=1 // pred_check_branch
      %50 = sbr.rel (0) target = $region25
    $region24: #{fcnn_forward.1} parent=1 // pred_region
      %s52 = ssub.s32 16384, 16384
      %53 = vsyncadd [#allocation5], %s52
      %s54 = sshll.u32 [#allocation6], 4
      %s55 = int_to_ptr.vmem [resolvable:$true] %s54
      %60 = dma.hbm_to_vmem [thread:$0]  %s5, 16384, %s55, [#allocation5], 256, 256, 16
    $region25: #{fcnn_forward.1} parent=1 // pred_fallthru
      _
    // Predicated region
    $region26: #{fcnn_forward.1} parent=1 // pred_check
      _
    $region27: #{fcnn_forward.1} parent=1 // pred_check_branch
      %62 = sbr.rel (0) target = $region29
    $region28: #{fcnn_forward.1} parent=1 // pred_region
      _
    $region29: #{fcnn_forward.1} parent=1 // pred_fallthru
      _
    // Predicated region
    $region30: #{fcnn_forward.1} parent=1 // pred_check
      _
    $region31: #{fcnn_forward.1} parent=1 // pred_check_branch
      %64 = sbr.rel (0) target = $region33
    $region32: #{fcnn_forward.1} parent=1 // pred_region
      %s66 = ssub.s32 16384, 16384
      %67 = vsyncadd [#allocation8], %s66
      %s68 = sshll.u32 [#allocation7], 4
      %s69 = int_to_ptr.vmem [resolvable:$true] %s68
      %74 = dma.hbm_to_vmem [thread:$0]  %s7, 16384, %s69, [#allocation8], 256, 256, 16
    $region33: #{fcnn_forward.1} parent=1 // pred_fallthru
      _
    // Predicated region
    $region34: #{fcnn_forward.1} parent=1 // pred_check
      _
    $region35: #{fcnn_forward.1} parent=1 // pred_check_branch
      %76 = sbr.rel (0) target = $region37
    $region36: #{fcnn_forward.1} parent=1 // pred_region
      _
    $region37: #{fcnn_forward.1} parent=1 // pred_fallthru
      _
    // Predicated region
    $region38: #{fcnn_forward.1} parent=1 // pred_check
      _
    $region39: #{fcnn_forward.1} parent=1 // pred_check_branch
      %78 = sbr.rel (0) target = $region41
    $region40: #{fcnn_forward.1} parent=1 // pred_region
      %s80 = ssub.s32 12288, 12288
      %81 = vsyncadd [#allocation8], %s80
      %s82 = sshll.u32 [#allocation9], 4
      %s83 = int_to_ptr.vmem [resolvable:$true] %s82
      %88 = dma.hbm_to_vmem [thread:$0]  %s9, 12288, %s83, [#allocation8], 192, 192, 12
    $region41: #{fcnn_forward.1} parent=1 // pred_fallthru
      _
    // Predicated region
    $region42: #{fcnn_forward.1} parent=1 // pred_check
      _
    $region43: #{fcnn_forward.1} parent=1 // pred_check_branch
      %90 = sbr.rel (0) target = $region45
    $region44: #{fcnn_forward.1} parent=1 // pred_region
      _
    $region45: #{fcnn_forward.1} parent=1 // pred_fallthru
      _
    // Predicated region
    $region46: #{fcnn_forward.1} parent=1 // pred_check
      _
    $region47: #{fcnn_forward.1} parent=1 // pred_check_branch
      %92 = sbr.rel (0) target = $region49
    $region48: #{fcnn_forward.1} parent=1 // pred_region
      %93 = dma.done [#allocation3], 12288
    $region49: #{fcnn_forward.1} parent=1 // pred_fallthru
      _
    // Predicated region
    $region50: #{fcnn_forward.1} parent=1 // pred_check
      _
    $region51: #{fcnn_forward.1} parent=1 // pred_check_branch
      %95 = sbr.rel (0) target = $region53
    $region52: #{fcnn_forward.1} parent=1 // pred_region
      %96 = dma.done [#allocation5], 16384
    $region53: #{fcnn_forward.1} parent=1 // pred_fallthru
      _
    // Predicated region
    $region54: #{fcnn_forward.1} parent=1 // pred_check
      _
    $region55: #{fcnn_forward.1} parent=1 // pred_check_branch
      %98 = sbr.rel (0) target = $region57
    $region56: #{fcnn_forward.1} parent=1 // pred_region
      %99 = dma.done [#allocation5], 16384
    $region57: #{fcnn_forward.1} parent=1 // pred_fallthru
      _
    // Predicated region
    $region58: #{fcnn_forward.1} parent=1 // pred_check
      _
    $region59: #{fcnn_forward.1} parent=1 // pred_check_branch
      %101 = sbr.rel (0) target = $region61
    $region60: #{fcnn_forward.1} parent=1 // pred_region
      %102 = dma.done [#allocation8], 16384
    $region61: #{fcnn_forward.1} parent=1 // pred_fallthru
      _
    // Predicated region
    $region62: #{fcnn_forward.1} parent=1 // pred_check
      _
    $region63: #{fcnn_forward.1} parent=1 // pred_check_branch
      %104 = sbr.rel (0) target = $region65
    $region64: #{fcnn_forward.1} parent=1 // pred_region
      %105 = dma.done [#allocation8], 12288
    $region65: #{fcnn_forward.1} parent=1 // pred_fallthru
      _
    %v107 = vld [vmem:[%s0] sm:$0xff]
    %v108 = vld [vmem:[%s0 + $0x8] sm:$0xf]
    %v109 = vld [vmem:[%s0 + $0xc] sm:$0xff]
    %v110 = vld [vmem:[%s0 + $0x14] sm:$0xf]
    %v111 = vld [vmem:[#allocation2] sm:$0xff]
    %v112 = vld [vmem:[#allocation2 + $0x8] sm:$0xff]
    %v113 = vld [vmem:[#allocation2 + $0x10] sm:$0xff]
    %v114 = vld [vmem:[#allocation2 + $0x18] sm:$0xff]
    %v115 = vld [vmem:[#allocation2 + $0x20] sm:$0xff]
    %v116 = vld [vmem:[#allocation2 + $0x28] sm:$0xff]
    %v117 = vld [vmem:[#allocation2 + $0x30] sm:$0xff]
    %v118 = vld [vmem:[#allocation2 + $0x38] sm:$0xff]
    %v119 = vld [vmem:[#allocation2 + $0x40] sm:$0xff]
    %v120 = vld [vmem:[#allocation2 + $0x48] sm:$0xff]
    %v121 = vld [vmem:[#allocation2 + $0x50] sm:$0xff]
    %v122 = vld [vmem:[#allocation2 + $0x58] sm:$0xff]
    %v123 = vld [vmem:[#allocation2 + $0x60] sm:$0xff]
    %v124 = vld [vmem:[#allocation2 + $0x68] sm:$0xff]
    %v125 = vld [vmem:[#allocation2 + $0x70] sm:$0xff]
    %v126 = vld [vmem:[#allocation2 + $0x78] sm:$0xff]
    %v127 = vld [vmem:[#allocation2 + $0x80] sm:$0xff]
    %v128 = vld [vmem:[#allocation2 + $0x88] sm:$0xff]
    %v129 = vld [vmem:[#allocation2 + $0x90] sm:$0xff]
    %v130 = vld [vmem:[#allocation2 + $0x98] sm:$0xff]
    %v131 = vld [vmem:[#allocation2 + $0xa0] sm:$0xff]
    %v132 = vld [vmem:[#allocation2 + $0xa8] sm:$0xff]
    %v133 = vld [vmem:[#allocation2 + $0xb0] sm:$0xff]
    %v134 = vld [vmem:[#allocation2 + $0xb8] sm:$0xff]
    %v135 = vld [vmem:[#allocation2 + $0xc0] sm:$0xff]
    %v136 = vld [vmem:[#allocation2 + $0xc8] sm:$0xff]
    %v137 = vld [vmem:[#allocation2 + $0xd0] sm:$0xff]
    %v138 = vld [vmem:[#allocation2 + $0xd8] sm:$0xff]
    %v139 = vld [vmem:[#allocation2 + $0xe0] sm:$0xff]
    %v140 = vld [vmem:[#allocation2 + $0xe8] sm:$0xff]
    %v141 = vld [vmem:[#allocation2 + $0xf0] sm:$0xff]
    %v142 = vld [vmem:[#allocation2 + $0xf8] sm:$0xff]
    %v143 = vld [vmem:[#allocation2 + $0x100] sm:$0xff]
    %v144 = vld [vmem:[#allocation2 + $0x108] sm:$0xff]
    %v145 = vld [vmem:[#allocation2 + $0x110] sm:$0xff]
    %v146 = vld [vmem:[#allocation2 + $0x118] sm:$0xff]
    %v147 = vld [vmem:[#allocation2 + $0x120] sm:$0xff]
    %v148 = vld [vmem:[#allocation2 + $0x128] sm:$0xff]
    %v149 = vld [vmem:[#allocation2 + $0x130] sm:$0xff]
    %v150 = vld [vmem:[#allocation2 + $0x138] sm:$0xff]
    %v151 = vld [vmem:[#allocation2 + $0x140] sm:$0xff]
    %v152 = vld [vmem:[#allocation2 + $0x148] sm:$0xff]
    %v153 = vld [vmem:[#allocation2 + $0x150] sm:$0xff]
    %v154 = vld [vmem:[#allocation2 + $0x158] sm:$0xff]
    %v155 = vld [vmem:[#allocation2 + $0x160] sm:$0xff]
    %v156 = vld [vmem:[#allocation2 + $0x168] sm:$0xff]
    %v157 = vld [vmem:[#allocation2 + $0x170] sm:$0xff]
    %v158 = vld [vmem:[#allocation2 + $0x178] sm:$0xff]
    %v159 = vld [vmem:[#allocation2 + $0x180] sm:$0xff]
    %v160 = vld [vmem:[#allocation2 + $0x188] sm:$0xff]
    %v161 = vld [vmem:[#allocation2 + $0x190] sm:$0xff]
    %v162 = vld [vmem:[#allocation2 + $0x198] sm:$0xff]
    %v163 = vld [vmem:[#allocation2 + $0x1a0] sm:$0xff]
    %v164 = vld [vmem:[#allocation2 + $0x1a8] sm:$0xff]
    %v165 = vld [vmem:[#allocation2 + $0x1b0] sm:$0xff]
    %v166 = vld [vmem:[#allocation2 + $0x1b8] sm:$0xff]
    %v167 = vld [vmem:[#allocation2 + $0x1c0] sm:$0xff]
    %v168 = vld [vmem:[#allocation2 + $0x1c8] sm:$0xff]
    %v169 = vld [vmem:[#allocation2 + $0x1d0] sm:$0xff]
    %v170 = vld [vmem:[#allocation2 + $0x1d8] sm:$0xff]
    %v171 = vld [vmem:[#allocation2 + $0x1e0] sm:$0xff]
    %v172 = vld [vmem:[#allocation2 + $0x1e8] sm:$0xff]
    %v173 = vld [vmem:[#allocation2 + $0x1f0] sm:$0xff]
    %v174 = vld [vmem:[#allocation2 + $0x1f8] sm:$0xff]
    %v175 = vld [vmem:[#allocation2 + $0x200] sm:$0xff]
    %v176 = vld [vmem:[#allocation2 + $0x208] sm:$0xff]
    %v177 = vld [vmem:[#allocation2 + $0x210] sm:$0xff]
    %v178 = vld [vmem:[#allocation2 + $0x218] sm:$0xff]
    %v179 = vld [vmem:[#allocation2 + $0x220] sm:$0xff]
    %v180 = vld [vmem:[#allocation2 + $0x228] sm:$0xff]
    %v181 = vld [vmem:[#allocation2 + $0x230] sm:$0xff]
    %v182 = vld [vmem:[#allocation2 + $0x238] sm:$0xff]
    %v183 = vld [vmem:[#allocation2 + $0x240] sm:$0xff]
    %v184 = vld [vmem:[#allocation2 + $0x248] sm:$0xff]
    %v185 = vld [vmem:[#allocation2 + $0x250] sm:$0xff]
    %v186 = vld [vmem:[#allocation2 + $0x258] sm:$0xff]
    %v187 = vld [vmem:[#allocation2 + $0x260] sm:$0xff]
    %v188 = vld [vmem:[#allocation2 + $0x268] sm:$0xff]
    %v189 = vld [vmem:[#allocation2 + $0x270] sm:$0xff]
    %v190 = vld [vmem:[#allocation2 + $0x278] sm:$0xff]
    %v191 = vld [vmem:[#allocation2 + $0x280] sm:$0xff]
    %v192 = vld [vmem:[#allocation2 + $0x288] sm:$0xff]
    %v193 = vld [vmem:[#allocation2 + $0x290] sm:$0xff]
    %v194 = vld [vmem:[#allocation2 + $0x298] sm:$0xff]
    %v195 = vld [vmem:[#allocation2 + $0x2a0] sm:$0xff]
    %v196 = vld [vmem:[#allocation2 + $0x2a8] sm:$0xff]
    %v197 = vld [vmem:[#allocation2 + $0x2b0] sm:$0xff]
    %v198 = vld [vmem:[#allocation2 + $0x2b8] sm:$0xff]
    %v199 = vld [vmem:[#allocation2 + $0x2c0] sm:$0xff]
    %v200 = vld [vmem:[#allocation2 + $0x2c8] sm:$0xff]
    %v201 = vld [vmem:[#allocation2 + $0x2d0] sm:$0xff]
    %v202 = vld [vmem:[#allocation2 + $0x2d8] sm:$0xff]
    %v203 = vld [vmem:[#allocation2 + $0x2e0] sm:$0xff]
    %v204 = vld [vmem:[#allocation2 + $0x2e8] sm:$0xff]
    %v205 = vld [vmem:[#allocation2 + $0x2f0] sm:$0xff]
    %v206 = vld [vmem:[#allocation2 + $0x2f8] sm:$0xff]
    %v207 = vld [vmem:[%s2] sm:$0xf]
    %v209 = vlaneseq
    %v210 = vshrl.u32 %v209, 7
    %v211 = vsub.s32 0, %v210
    %v212 = vrot.slane %v207, %v211
    %v213 = vlaneseq
    %v214 = vshrl.u32 %v213, 7
    %v215 = vsub.s32 1, %v214
    %v216 = vrot.slane %v207, %v215
    %v217 = vlaneseq
    %v218 = vshrl.u32 %v217, 7
    %v219 = vsub.s32 2, %v218
    %v220 = vrot.slane %v207, %v219
    %v221 = vlaneseq
    %v222 = vshrl.u32 %v221, 7
    %v223 = vsub.s32 3, %v222
    %v224 = vrot.slane %v207, %v223
    %v233 = vunpack.c.l.b16 %v107
    %v234 = vunpack.c.h.b16 %v107
    %v235 = vunpack.c.l.b16 %v108
    %v236 = vunpack.c.l.b16 %v109
    %v237 = vunpack.c.h.b16 %v109
    %v238 = vunpack.c.l.b16 %v110
    %v239 = vpack.c.b16 %v236, %v233
    %v240 = vpack.c.b16 %v237, %v234
    %v241 = vpack.c.b16 %v238, %v235
    %v341 = vunpack.c.l.b16 %v111
    %v342 = vunpack.c.h.b16 %v111
    %v343 = vunpack.c.l.b16 %v112
    %v344 = vunpack.c.h.b16 %v112
    %v345 = vunpack.c.l.b16 %v113
    %v346 = vunpack.c.h.b16 %v113
    %v347 = vunpack.c.l.b16 %v114
    %v348 = vunpack.c.h.b16 %v114
    %v349 = vunpack.c.l.b16 %v115
    %v350 = vunpack.c.h.b16 %v115
    %v351 = vunpack.c.l.b16 %v116
    %v352 = vunpack.c.h.b16 %v116
    %v353 = vunpack.c.l.b16 %v117
    %v354 = vunpack.c.h.b16 %v117
    %v355 = vunpack.c.l.b16 %v118
    %v356 = vunpack.c.h.b16 %v118
    %v357 = vunpack.c.l.b16 %v119
    %v358 = vunpack.c.h.b16 %v119
    %v359 = vunpack.c.l.b16 %v120
    %v360 = vunpack.c.h.b16 %v120
    %v361 = vunpack.c.l.b16 %v121
    %v362 = vunpack.c.h.b16 %v121
    %v363 = vunpack.c.l.b16 %v122
    %v364 = vunpack.c.h.b16 %v122
    %v365 = vunpack.c.l.b16 %v123
    %v366 = vunpack.c.h.b16 %v123
    %v367 = vunpack.c.l.b16 %v124
    %v368 = vunpack.c.h.b16 %v124
    %v369 = vunpack.c.l.b16 %v125
    %v370 = vunpack.c.h.b16 %v125
    %v371 = vunpack.c.l.b16 %v126
    %v372 = vunpack.c.h.b16 %v126
    %v373 = vunpack.c.l.b16 %v127
    %v374 = vunpack.c.h.b16 %v127
    %v375 = vunpack.c.l.b16 %v128
    %v376 = vunpack.c.h.b16 %v128
    %v377 = vunpack.c.l.b16 %v129
    %v378 = vunpack.c.h.b16 %v129
    %v379 = vunpack.c.l.b16 %v130
    %v380 = vunpack.c.h.b16 %v130
    %v381 = vunpack.c.l.b16 %v131
    %v382 = vunpack.c.h.b16 %v131
    %v383 = vunpack.c.l.b16 %v132
    %v384 = vunpack.c.h.b16 %v132
    %v385 = vunpack.c.l.b16 %v133
    %v386 = vunpack.c.h.b16 %v133
    %v387 = vunpack.c.l.b16 %v134
    %v388 = vunpack.c.h.b16 %v134
    %v389 = vunpack.c.l.b16 %v135
    %v390 = vunpack.c.h.b16 %v135
    %v391 = vunpack.c.l.b16 %v136
    %v392 = vunpack.c.h.b16 %v136
    %v393 = vunpack.c.l.b16 %v137
    %v394 = vunpack.c.h.b16 %v137
    %v395 = vunpack.c.l.b16 %v138
    %v396 = vunpack.c.h.b16 %v138
    %v397 = vunpack.c.l.b16 %v139
    %v398 = vunpack.c.h.b16 %v139
    %v399 = vunpack.c.l.b16 %v140
    %v400 = vunpack.c.h.b16 %v140
    %v401 = vunpack.c.l.b16 %v141
    %v402 = vunpack.c.h.b16 %v141
    %v403 = vunpack.c.l.b16 %v142
    %v404 = vunpack.c.h.b16 %v142
    %v405 = vunpack.c.l.b16 %v143
    %v406 = vunpack.c.h.b16 %v143
    %v407 = vunpack.c.l.b16 %v144
    %v408 = vunpack.c.h.b16 %v144
    %v409 = vunpack.c.l.b16 %v145
    %v410 = vunpack.c.h.b16 %v145
    %v411 = vunpack.c.l.b16 %v146
    %v412 = vunpack.c.h.b16 %v146
    %v413 = vunpack.c.l.b16 %v147
    %v414 = vunpack.c.h.b16 %v147
    %v415 = vunpack.c.l.b16 %v148
    %v416 = vunpack.c.h.b16 %v148
    %v417 = vunpack.c.l.b16 %v149
    %v418 = vunpack.c.h.b16 %v149
    %v419 = vunpack.c.l.b16 %v150
    %v420 = vunpack.c.h.b16 %v150
    %v421 = vunpack.c.l.b16 %v151
    %v422 = vunpack.c.h.b16 %v151
    %v423 = vunpack.c.l.b16 %v152
    %v424 = vunpack.c.h.b16 %v152
    %v425 = vunpack.c.l.b16 %v153
    %v426 = vunpack.c.h.b16 %v153
    %v427 = vunpack.c.l.b16 %v154
    %v428 = vunpack.c.h.b16 %v154
    %v429 = vunpack.c.l.b16 %v155
    %v430 = vunpack.c.h.b16 %v155
    %v431 = vunpack.c.l.b16 %v156
    %v432 = vunpack.c.h.b16 %v156
    %v433 = vunpack.c.l.b16 %v157
    %v434 = vunpack.c.h.b16 %v157
    %v435 = vunpack.c.l.b16 %v158
    %v436 = vunpack.c.h.b16 %v158
    %v437 = vunpack.c.l.b16 %v159
    %v438 = vunpack.c.h.b16 %v159
    %v439 = vunpack.c.l.b16 %v160
    %v440 = vunpack.c.h.b16 %v160
    %v441 = vunpack.c.l.b16 %v161
    %v442 = vunpack.c.h.b16 %v161
    %v443 = vunpack.c.l.b16 %v162
    %v444 = vunpack.c.h.b16 %v162
    %v445 = vunpack.c.l.b16 %v163
    %v446 = vunpack.c.h.b16 %v163
    %v447 = vunpack.c.l.b16 %v164
    %v448 = vunpack.c.h.b16 %v164
    %v449 = vunpack.c.l.b16 %v165
    %v450 = vunpack.c.h.b16 %v165
    %v451 = vunpack.c.l.b16 %v166
    %v452 = vunpack.c.h.b16 %v166
    %v453 = vunpack.c.l.b16 %v167
    %v454 = vunpack.c.h.b16 %v167
    %v455 = vunpack.c.l.b16 %v168
    %v456 = vunpack.c.h.b16 %v168
    %v457 = vunpack.c.l.b16 %v169
    %v458 = vunpack.c.h.b16 %v169
    %v459 = vunpack.c.l.b16 %v170
    %v460 = vunpack.c.h.b16 %v170
    %v461 = vunpack.c.l.b16 %v171
    %v462 = vunpack.c.h.b16 %v171
    %v463 = vunpack.c.l.b16 %v172
    %v464 = vunpack.c.h.b16 %v172
    %v465 = vunpack.c.l.b16 %v173
    %v466 = vunpack.c.h.b16 %v173
    %v467 = vunpack.c.l.b16 %v174
    %v468 = vunpack.c.h.b16 %v174
    %v469 = vunpack.c.l.b16 %v175
    %v470 = vunpack.c.h.b16 %v175
    %v471 = vunpack.c.l.b16 %v176
    %v472 = vunpack.c.h.b16 %v176
    %v473 = vunpack.c.l.b16 %v177
    %v474 = vunpack.c.h.b16 %v177
    %v475 = vunpack.c.l.b16 %v178
    %v476 = vunpack.c.h.b16 %v178
    %v477 = vunpack.c.l.b16 %v179
    %v478 = vunpack.c.h.b16 %v179
    %v479 = vunpack.c.l.b16 %v180
    %v480 = vunpack.c.h.b16 %v180
    %v481 = vunpack.c.l.b16 %v181
    %v482 = vunpack.c.h.b16 %v181
    %v483 = vunpack.c.l.b16 %v182
    %v484 = vunpack.c.h.b16 %v182
    %v485 = vunpack.c.l.b16 %v183
    %v486 = vunpack.c.h.b16 %v183
    %v487 = vunpack.c.l.b16 %v184
    %v488 = vunpack.c.h.b16 %v184
    %v489 = vunpack.c.l.b16 %v185
    %v490 = vunpack.c.h.b16 %v185
    %v491 = vunpack.c.l.b16 %v186
    %v492 = vunpack.c.h.b16 %v186
    %v493 = vunpack.c.l.b16 %v187
    %v494 = vunpack.c.h.b16 %v187
    %v495 = vunpack.c.l.b16 %v188
    %v496 = vunpack.c.h.b16 %v188
    %v497 = vunpack.c.l.b16 %v189
    %v498 = vunpack.c.h.b16 %v189
    %v499 = vunpack.c.l.b16 %v190
    %v500 = vunpack.c.h.b16 %v190
    %v501 = vunpack.c.l.b16 %v191
    %v502 = vunpack.c.h.b16 %v191
    %v503 = vunpack.c.l.b16 %v192
    %v504 = vunpack.c.h.b16 %v192
    %v505 = vunpack.c.l.b16 %v193
    %v506 = vunpack.c.h.b16 %v193
    %v507 = vunpack.c.l.b16 %v194
    %v508 = vunpack.c.h.b16 %v194
    %v509 = vunpack.c.l.b16 %v195
    %v510 = vunpack.c.h.b16 %v195
    %v511 = vunpack.c.l.b16 %v196
    %v512 = vunpack.c.h.b16 %v196
    %v513 = vunpack.c.l.b16 %v197
    %v514 = vunpack.c.h.b16 %v197
    %v515 = vunpack.c.l.b16 %v198
    %v516 = vunpack.c.h.b16 %v198
    %v517 = vunpack.c.l.b16 %v199
    %v518 = vunpack.c.h.b16 %v199
    %v519 = vunpack.c.l.b16 %v200
    %v520 = vunpack.c.h.b16 %v200
    %v521 = vunpack.c.l.b16 %v201
    %v522 = vunpack.c.h.b16 %v201
    %v523 = vunpack.c.l.b16 %v202
    %v524 = vunpack.c.h.b16 %v202
    %v525 = vunpack.c.l.b16 %v203
    %v526 = vunpack.c.h.b16 %v203
    %v527 = vunpack.c.l.b16 %v204
    %v528 = vunpack.c.h.b16 %v204
    %v529 = vunpack.c.l.b16 %v205
    %v530 = vunpack.c.h.b16 %v205
    %v531 = vunpack.c.l.b16 %v206
    %v532 = vunpack.c.h.b16 %v206
    %v533 = vpack.c.b16 %v345, %v341
    %v534 = vpack.c.b16 %v346, %v342
    %v535 = vpack.c.b16 %v347, %v343
    %v536 = vpack.c.b16 %v348, %v344
    %v537 = vpack.c.b16 %v353, %v349
    %v538 = vpack.c.b16 %v354, %v350
    %v539 = vpack.c.b16 %v355, %v351
    %v540 = vpack.c.b16 %v356, %v352
    %v541 = vpack.c.b16 %v361, %v357
    %v542 = vpack.c.b16 %v362, %v358
    %v543 = vpack.c.b16 %v363, %v359
    %v544 = vpack.c.b16 %v364, %v360
    %v545 = vpack.c.b16 %v369, %v365
    %v546 = vpack.c.b16 %v370, %v366
    %v547 = vpack.c.b16 %v371, %v367
    %v548 = vpack.c.b16 %v372, %v368
    %v549 = vpack.c.b16 %v377, %v373
    %v550 = vpack.c.b16 %v378, %v374
    %v551 = vpack.c.b16 %v379, %v375
    %v552 = vpack.c.b16 %v380, %v376
    %v553 = vpack.c.b16 %v385, %v381
    %v554 = vpack.c.b16 %v386, %v382
    %v555 = vpack.c.b16 %v387, %v383
    %v556 = vpack.c.b16 %v388, %v384
    %v557 = vpack.c.b16 %v393, %v389
    %v558 = vpack.c.b16 %v394, %v390
    %v559 = vpack.c.b16 %v395, %v391
    %v560 = vpack.c.b16 %v396, %v392
    %v561 = vpack.c.b16 %v401, %v397
    %v562 = vpack.c.b16 %v402, %v398
    %v563 = vpack.c.b16 %v403, %v399
    %v564 = vpack.c.b16 %v404, %v400
    %v565 = vpack.c.b16 %v409, %v405
    %v566 = vpack.c.b16 %v410, %v406
    %v567 = vpack.c.b16 %v411, %v407
    %v568 = vpack.c.b16 %v412, %v408
    %v569 = vpack.c.b16 %v417, %v413
    %v570 = vpack.c.b16 %v418, %v414
    %v571 = vpack.c.b16 %v419, %v415
    %v572 = vpack.c.b16 %v420, %v416
    %v573 = vpack.c.b16 %v425, %v421
    %v574 = vpack.c.b16 %v426, %v422
    %v575 = vpack.c.b16 %v427, %v423
    %v576 = vpack.c.b16 %v428, %v424
    %v577 = vpack.c.b16 %v433, %v429
    %v578 = vpack.c.b16 %v434, %v430
    %v579 = vpack.c.b16 %v435, %v431
    %v580 = vpack.c.b16 %v436, %v432
    %v581 = vpack.c.b16 %v441, %v437
    %v582 = vpack.c.b16 %v442, %v438
    %v583 = vpack.c.b16 %v443, %v439
    %v584 = vpack.c.b16 %v444, %v440
    %v585 = vpack.c.b16 %v449, %v445
    %v586 = vpack.c.b16 %v450, %v446
    %v587 = vpack.c.b16 %v451, %v447
    %v588 = vpack.c.b16 %v452, %v448
    %v589 = vpack.c.b16 %v457, %v453
    %v590 = vpack.c.b16 %v458, %v454
    %v591 = vpack.c.b16 %v459, %v455
    %v592 = vpack.c.b16 %v460, %v456
    %v593 = vpack.c.b16 %v465, %v461
    %v594 = vpack.c.b16 %v466, %v462
    %v595 = vpack.c.b16 %v467, %v463
    %v596 = vpack.c.b16 %v468, %v464
    %v597 = vpack.c.b16 %v473, %v469
    %v598 = vpack.c.b16 %v474, %v470
    %v599 = vpack.c.b16 %v475, %v471
    %v600 = vpack.c.b16 %v476, %v472
    %v601 = vpack.c.b16 %v481, %v477
    %v602 = vpack.c.b16 %v482, %v478
    %v603 = vpack.c.b16 %v483, %v479
    %v604 = vpack.c.b16 %v484, %v480
    %v605 = vpack.c.b16 %v489, %v485
    %v606 = vpack.c.b16 %v490, %v486
    %v607 = vpack.c.b16 %v491, %v487
    %v608 = vpack.c.b16 %v492, %v488
    %v609 = vpack.c.b16 %v497, %v493
    %v610 = vpack.c.b16 %v498, %v494
    %v611 = vpack.c.b16 %v499, %v495
    %v612 = vpack.c.b16 %v500, %v496
    %v613 = vpack.c.b16 %v505, %v501
    %v614 = vpack.c.b16 %v506, %v502
    %v615 = vpack.c.b16 %v507, %v503
    %v616 = vpack.c.b16 %v508, %v504
    %v617 = vpack.c.b16 %v513, %v509
    %v618 = vpack.c.b16 %v514, %v510
    %v619 = vpack.c.b16 %v515, %v511
    %v620 = vpack.c.b16 %v516, %v512
    %v621 = vpack.c.b16 %v521, %v517
    %v622 = vpack.c.b16 %v522, %v518
    %v623 = vpack.c.b16 %v523, %v519
    %v624 = vpack.c.b16 %v524, %v520
    %v625 = vpack.c.b16 %v529, %v525
    %v626 = vpack.c.b16 %v530, %v526
    %v627 = vpack.c.b16 %v531, %v527
    %v628 = vpack.c.b16 %v532, %v528
    %725 = vmatprep.subr.bf16.mxu0 %v534
    %726 = vmatpush1.bf16.msra.mxu0 %v533
    %727 = vmatprep.subr.bf16.mxu0 %v538
    %728 = vmatpush1.bf16.msra.mxu0 %v537
    %729 = vmatprep.subr.bf16.mxu0 %v542
    %730 = vmatpush1.bf16.msra.mxu0 %v541
    %731 = vmatprep.subr.bf16.mxu0 %v546
    %732 = vmatpush1.bf16.msra.mxu0 %v545
    %733 = vmatprep.subr.bf16.mxu0 %v550
    %734 = vmatpush1.bf16.msra.mxu0 %v549
    %735 = vmatprep.subr.bf16.mxu0 %v554
    %736 = vmatpush1.bf16.msra.mxu0 %v553
    %737 = vmatprep.subr.bf16.mxu0 %v558
    %738 = vmatpush1.bf16.msra.mxu0 %v557
    %739 = vmatprep.subr.bf16.mxu0 %v562
    %740 = vmatpush1.bf16.msra.mxu0 %v561
    %741 = vmatprep.subr.bf16.mxu0 %v566
    %742 = vmatpush1.bf16.msra.mxu0 %v565
    %743 = vmatprep.subr.bf16.mxu0 %v570
    %744 = vmatpush1.bf16.msra.mxu0 %v569
    %745 = vmatprep.subr.bf16.mxu0 %v574
    %746 = vmatpush1.bf16.msra.mxu0 %v573
    %747 = vmatprep.subr.bf16.mxu0 %v578
    %748 = vmatpush1.bf16.msra.mxu0 %v577
    %749 = vmatprep.subr.bf16.mxu0 %v582
    %750 = vmatpush1.bf16.msra.mxu0 %v581
    %751 = vmatprep.subr.bf16.mxu0 %v586
    %752 = vmatpush1.bf16.msra.mxu0 %v585
    %753 = vmatprep.subr.bf16.mxu0 %v590
    %754 = vmatpush1.bf16.msra.mxu0 %v589
    %755 = vmatprep.subr.bf16.mxu0 %v594
    %756 = vmatpush1.bf16.msra.mxu0 %v593
    %757 = vmatprep.mubr.bf16.mxu0 %v240
    %758 = vmatmul.mubr.bf16.gmra.mrb[0].mxu0 %v239
    %v759 = vpop.f32.mrb[0].mxu0
    %v760 = vadd.f32 %v212, %v759
    %v761 = vpop.f32.mrb[0].mxu0
    %v762 = vadd.f32 %v216, %v761
    %v763 = vpop.f32.mrb[0].mxu0
    %v764 = vadd.f32 %v212, %v763
    %v765 = vpop.f32.mrb[0].mxu0
    %v766 = vadd.f32 %v216, %v765
    %767 = vdwg.mxu0
    %768 = vmatprep.subr.bf16.mxu0 %v598
    %769 = vmatpush1.bf16.msra.mxu0 %v597
    %770 = vmatprep.subr.bf16.mxu0 %v602
    %771 = vmatpush1.bf16.msra.mxu0 %v601
    %772 = vmatprep.subr.bf16.mxu0 %v606
    %773 = vmatpush1.bf16.msra.mxu0 %v605
    %774 = vmatprep.subr.bf16.mxu0 %v610
    %775 = vmatpush1.bf16.msra.mxu0 %v609
    %776 = vmatprep.subr.bf16.mxu0 %v614
    %777 = vmatpush1.bf16.msra.mxu0 %v613
    %778 = vmatprep.subr.bf16.mxu0 %v618
    %779 = vmatpush1.bf16.msra.mxu0 %v617
    %780 = vmatprep.subr.bf16.mxu0 %v622
    %781 = vmatpush1.bf16.msra.mxu0 %v621
    %782 = vmatprep.subr.bf16.mxu0 %v626
    %783 = vmatpush1.bf16.msra.mxu0 %v625
    %784 = vmatprep.subr.bf16.mxu0 0
    %785 = vmatpush1.bf16.msra.mxu0 0
    %786 = vmatprep.subr.bf16.mxu0 0
    %787 = vmatpush1.bf16.msra.mxu0 0
    %788 = vmatprep.subr.bf16.mxu0 0
    %789 = vmatpush1.bf16.msra.mxu0 0
    %790 = vmatprep.subr.bf16.mxu0 0
    %791 = vmatpush1.bf16.msra.mxu0 0
    %792 = vmatprep.subr.bf16.mxu0 0
    %793 = vmatpush1.bf16.msra.mxu0 0
    %794 = vmatprep.subr.bf16.mxu0 0
    %795 = vmatpush1.bf16.msra.mxu0 0
    %796 = vmatprep.subr.bf16.mxu0 0
    %797 = vmatpush1.bf16.msra.mxu0 0
    %798 = vmatprep.subr.bf16.mxu0 0
    %799 = vmatpush1.bf16.msra.mxu0 0
    %800 = vmatprep.mubr.bf16.mxu0 0
    %801 = vmatmul.mubr.bf16.gmra.mrb[0].mxu0 %v241
    %v802 = vpop.f32.mrb[0].mxu0
    %v803 = vadd.f32 %v760, %v802
    %v804 = vpop.f32.mrb[0].mxu0
    %v805 = vadd.f32 %v762, %v804
    %v806 = vpop.f32.mrb[0].mxu0
    %v807 = vadd.f32 %v764, %v806
    %v808 = vpop.f32.mrb[0].mxu0
    %v809 = vadd.f32 %v766, %v808
    %810 = vdwg.mxu0
    %811 = vmatprep.subr.bf16.mxu0 %v536
    %812 = vmatpush1.bf16.msra.mxu0 %v535
    %813 = vmatprep.subr.bf16.mxu0 %v540
    %814 = vmatpush1.bf16.msra.mxu0 %v539
    %815 = vmatprep.subr.bf16.mxu0 %v544
    %816 = vmatpush1.bf16.msra.mxu0 %v543
    %817 = vmatprep.subr.bf16.mxu0 %v548
    %818 = vmatpush1.bf16.msra.mxu0 %v547
    %819 = vmatprep.subr.bf16.mxu0 %v552
    %820 = vmatpush1.bf16.msra.mxu0 %v551
    %821 = vmatprep.subr.bf16.mxu0 %v556
    %822 = vmatpush1.bf16.msra.mxu0 %v555
    %823 = vmatprep.subr.bf16.mxu0 %v560
    %824 = vmatpush1.bf16.msra.mxu0 %v559
    %825 = vmatprep.subr.bf16.mxu0 %v564
    %826 = vmatpush1.bf16.msra.mxu0 %v563
    %827 = vmatprep.subr.bf16.mxu0 %v568
    %828 = vmatpush1.bf16.msra.mxu0 %v567
    %829 = vmatprep.subr.bf16.mxu0 %v572
    %830 = vmatpush1.bf16.msra.mxu0 %v571
    %831 = vmatprep.subr.bf16.mxu0 %v576
    %832 = vmatpush1.bf16.msra.mxu0 %v575
    %833 = vmatprep.subr.bf16.mxu0 %v580
    %834 = vmatpush1.bf16.msra.mxu0 %v579
    %835 = vmatprep.subr.bf16.mxu0 %v584
    %836 = vmatpush1.bf16.msra.mxu0 %v583
    %837 = vmatprep.subr.bf16.mxu0 %v588
    %838 = vmatpush1.bf16.msra.mxu0 %v587
    %839 = vmatprep.subr.bf16.mxu0 %v592
    %840 = vmatpush1.bf16.msra.mxu0 %v591
    %841 = vmatprep.subr.bf16.mxu0 %v596
    %842 = vmatpush1.bf16.msra.mxu0 %v595
    %843 = vmatprep.mubr.bf16.mxu0 %v240
    %844 = vmatmul.mubr.bf16.gmra.mrb[0].mxu0 %v239
    %v845 = vpop.f32.mrb[0].mxu0
    %v846 = vadd.f32 %v220, %v845
    %v847 = vpop.f32.mrb[0].mxu0
    %v848 = vadd.f32 %v224, %v847
    %v849 = vpop.f32.mrb[0].mxu0
    %v850 = vadd.f32 %v220, %v849
    %v851 = vpop.f32.mrb[0].mxu0
    %v852 = vadd.f32 %v224, %v851
    %853 = vdwg.mxu0
    %854 = vmatprep.subr.bf16.mxu0 %v600
    %855 = vmatpush1.bf16.msra.mxu0 %v599
    %856 = vmatprep.subr.bf16.mxu0 %v604
    %857 = vmatpush1.bf16.msra.mxu0 %v603
    %858 = vmatprep.subr.bf16.mxu0 %v608
    %859 = vmatpush1.bf16.msra.mxu0 %v607
    %860 = vmatprep.subr.bf16.mxu0 %v612
    %861 = vmatpush1.bf16.msra.mxu0 %v611
    %862 = vmatprep.subr.bf16.mxu0 %v616
    %863 = vmatpush1.bf16.msra.mxu0 %v615
    %864 = vmatprep.subr.bf16.mxu0 %v620
    %865 = vmatpush1.bf16.msra.mxu0 %v619
    %866 = vmatprep.subr.bf16.mxu0 %v624
    %867 = vmatpush1.bf16.msra.mxu0 %v623
    %868 = vmatprep.subr.bf16.mxu0 %v628
    %869 = vmatpush1.bf16.msra.mxu0 %v627
    %870 = vmatprep.subr.bf16.mxu0 0
    %871 = vmatpush1.bf16.msra.mxu0 0
    %872 = vmatprep.subr.bf16.mxu0 0
    %873 = vmatpush1.bf16.msra.mxu0 0
    %874 = vmatprep.subr.bf16.mxu0 0
    %875 = vmatpush1.bf16.msra.mxu0 0
    %876 = vmatprep.subr.bf16.mxu0 0
    %877 = vmatpush1.bf16.msra.mxu0 0
    %878 = vmatprep.subr.bf16.mxu0 0
    %879 = vmatpush1.bf16.msra.mxu0 0
    %880 = vmatprep.subr.bf16.mxu0 0
    %881 = vmatpush1.bf16.msra.mxu0 0
    %882 = vmatprep.subr.bf16.mxu0 0
    %883 = vmatpush1.bf16.msra.mxu0 0
    %884 = vmatprep.subr.bf16.mxu0 0
    %885 = vmatpush1.bf16.msra.mxu0 0
    %886 = vmatprep.mubr.bf16.mxu0 0
    %887 = vmatmul.mubr.bf16.gmra.mrb[0].mxu0 %v241
    %v888 = vpop.f32.mrb[0].mxu0
    %v889 = vadd.f32 %v846, %v888
    %v890 = vpop.f32.mrb[0].mxu0
    %v891 = vadd.f32 %v848, %v890
    %v892 = vpop.f32.mrb[0].mxu0
    %v893 = vadd.f32 %v850, %v892
    %v894 = vpop.f32.mrb[0].mxu0
    %v895 = vadd.f32 %v852, %v894
    %896 = vdwg.mxu0
    %v897 = vmax.f32 %v803, 0.0
    %v898 = vmax.f32 %v805, 0.0
    %v899 = vmax.f32 %v889, 0.0
    %v900 = vmax.f32 %v891, 0.0
    %v901 = vmax.f32 %v807, 0.0
    %v902 = vmax.f32 %v809, 0.0
    %v903 = vmax.f32 %v893, 0.0
    %v904 = vmax.f32 %v895, 0.0
    %v905 = vpack.c.bf16 %v901, %v897
    %v906 = vpack.c.bf16 %v902, %v898
    %v907 = vpack.c.bf16 %v903, %v899
    %v908 = vpack.c.bf16 %v904, %v900
    %v909 = vld [vmem:[#allocation4] sm:$0xff]
    %v910 = vld [vmem:[#allocation4 + $0x8] sm:$0xff]
    %v911 = vld [vmem:[#allocation4 + $0x10] sm:$0xff]
    %v912 = vld [vmem:[#allocation4 + $0x18] sm:$0xff]
    %v913 = vld [vmem:[#allocation4 + $0x20] sm:$0xff]
    %v914 = vld [vmem:[#allocation4 + $0x28] sm:$0xff]
    %v915 = vld [vmem:[#allocation4 + $0x30] sm:$0xff]
    %v916 = vld [vmem:[#allocation4 + $0x38] sm:$0xff]
    %v917 = vld [vmem:[#allocation4 + $0x40] sm:$0xff]
    %v918 = vld [vmem:[#allocation4 + $0x48] sm:$0xff]
    %v919 = vld [vmem:[#allocation4 + $0x50] sm:$0xff]
    %v920 = vld [vmem:[#allocation4 + $0x58] sm:$0xff]
    %v921 = vld [vmem:[#allocation4 + $0x60] sm:$0xff]
    %v922 = vld [vmem:[#allocation4 + $0x68] sm:$0xff]
    %v923 = vld [vmem:[#allocation4 + $0x70] sm:$0xff]
    %v924 = vld [vmem:[#allocation4 + $0x78] sm:$0xff]
    %v925 = vld [vmem:[#allocation4 + $0x80] sm:$0xff]
    %v926 = vld [vmem:[#allocation4 + $0x88] sm:$0xff]
    %v927 = vld [vmem:[#allocation4 + $0x90] sm:$0xff]
    %v928 = vld [vmem:[#allocation4 + $0x98] sm:$0xff]
    %v929 = vld [vmem:[#allocation4 + $0xa0] sm:$0xff]
    %v930 = vld [vmem:[#allocation4 + $0xa8] sm:$0xff]
    %v931 = vld [vmem:[#allocation4 + $0xb0] sm:$0xff]
    %v932 = vld [vmem:[#allocation4 + $0xb8] sm:$0xff]
    %v933 = vld [vmem:[#allocation4 + $0xc0] sm:$0xff]
    %v934 = vld [vmem:[#allocation4 + $0xc8] sm:$0xff]
    %v935 = vld [vmem:[#allocation4 + $0xd0] sm:$0xff]
    %v936 = vld [vmem:[#allocation4 + $0xd8] sm:$0xff]
    %v937 = vld [vmem:[#allocation4 + $0xe0] sm:$0xff]
    %v938 = vld [vmem:[#allocation4 + $0xe8] sm:$0xff]
    %v939 = vld [vmem:[#allocation4 + $0xf0] sm:$0xff]
    %v940 = vld [vmem:[#allocation4 + $0xf8] sm:$0xff]
    %v941 = vld [vmem:[#allocation4 + $0x100] sm:$0xff]
    %v942 = vld [vmem:[#allocation4 + $0x108] sm:$0xff]
    %v943 = vld [vmem:[#allocation4 + $0x110] sm:$0xff]
    %v944 = vld [vmem:[#allocation4 + $0x118] sm:$0xff]
    %v945 = vld [vmem:[#allocation4 + $0x120] sm:$0xff]
    %v946 = vld [vmem:[#allocation4 + $0x128] sm:$0xff]
    %v947 = vld [vmem:[#allocation4 + $0x130] sm:$0xff]
    %v948 = vld [vmem:[#allocation4 + $0x138] sm:$0xff]
    %v949 = vld [vmem:[#allocation4 + $0x140] sm:$0xff]
    %v950 = vld [vmem:[#allocation4 + $0x148] sm:$0xff]
    %v951 = vld [vmem:[#allocation4 + $0x150] sm:$0xff]
    %v952 = vld [vmem:[#allocation4 + $0x158] sm:$0xff]
    %v953 = vld [vmem:[#allocation4 + $0x160] sm:$0xff]
    %v954 = vld [vmem:[#allocation4 + $0x168] sm:$0xff]
    %v955 = vld [vmem:[#allocation4 + $0x170] sm:$0xff]
    %v956 = vld [vmem:[#allocation4 + $0x178] sm:$0xff]
    %v957 = vld [vmem:[#allocation4 + $0x180] sm:$0xff]
    %v958 = vld [vmem:[#allocation4 + $0x188] sm:$0xff]
    %v959 = vld [vmem:[#allocation4 + $0x190] sm:$0xff]
    %v960 = vld [vmem:[#allocation4 + $0x198] sm:$0xff]
    %v961 = vld [vmem:[#allocation4 + $0x1a0] sm:$0xff]
    %v962 = vld [vmem:[#allocation4 + $0x1a8] sm:$0xff]
    %v963 = vld [vmem:[#allocation4 + $0x1b0] sm:$0xff]
    %v964 = vld [vmem:[#allocation4 + $0x1b8] sm:$0xff]
    %v965 = vld [vmem:[#allocation4 + $0x1c0] sm:$0xff]
    %v966 = vld [vmem:[#allocation4 + $0x1c8] sm:$0xff]
    %v967 = vld [vmem:[#allocation4 + $0x1d0] sm:$0xff]
    %v968 = vld [vmem:[#allocation4 + $0x1d8] sm:$0xff]
    %v969 = vld [vmem:[#allocation4 + $0x1e0] sm:$0xff]
    %v970 = vld [vmem:[#allocation4 + $0x1e8] sm:$0xff]
    %v971 = vld [vmem:[#allocation4 + $0x1f0] sm:$0xff]
    %v972 = vld [vmem:[#allocation4 + $0x1f8] sm:$0xff]
    %v973 = vld [vmem:[#allocation4 + $0x200] sm:$0xff]
    %v974 = vld [vmem:[#allocation4 + $0x208] sm:$0xff]
    %v975 = vld [vmem:[#allocation4 + $0x210] sm:$0xff]
    %v976 = vld [vmem:[#allocation4 + $0x218] sm:$0xff]
    %v977 = vld [vmem:[#allocation4 + $0x220] sm:$0xff]
    %v978 = vld [vmem:[#allocation4 + $0x228] sm:$0xff]
    %v979 = vld [vmem:[#allocation4 + $0x230] sm:$0xff]
    %v980 = vld [vmem:[#allocation4 + $0x238] sm:$0xff]
    %v981 = vld [vmem:[#allocation4 + $0x240] sm:$0xff]
    %v982 = vld [vmem:[#allocation4 + $0x248] sm:$0xff]
    %v983 = vld [vmem:[#allocation4 + $0x250] sm:$0xff]
    %v984 = vld [vmem:[#allocation4 + $0x258] sm:$0xff]
    %v985 = vld [vmem:[#allocation4 + $0x260] sm:$0xff]
    %v986 = vld [vmem:[#allocation4 + $0x268] sm:$0xff]
    %v987 = vld [vmem:[#allocation4 + $0x270] sm:$0xff]
    %v988 = vld [vmem:[#allocation4 + $0x278] sm:$0xff]
    %v989 = vld [vmem:[#allocation4 + $0x280] sm:$0xff]
    %v990 = vld [vmem:[#allocation4 + $0x288] sm:$0xff]
    %v991 = vld [vmem:[#allocation4 + $0x290] sm:$0xff]
    %v992 = vld [vmem:[#allocation4 + $0x298] sm:$0xff]
    %v993 = vld [vmem:[#allocation4 + $0x2a0] sm:$0xff]
    %v994 = vld [vmem:[#allocation4 + $0x2a8] sm:$0xff]
    %v995 = vld [vmem:[#allocation4 + $0x2b0] sm:$0xff]
    %v996 = vld [vmem:[#allocation4 + $0x2b8] sm:$0xff]
    %v997 = vld [vmem:[#allocation4 + $0x2c0] sm:$0xff]
    %v998 = vld [vmem:[#allocation4 + $0x2c8] sm:$0xff]
    %v999 = vld [vmem:[#allocation4 + $0x2d0] sm:$0xff]
    %v1000 = vld [vmem:[#allocation4 + $0x2d8] sm:$0xff]
    %v1001 = vld [vmem:[#allocation4 + $0x2e0] sm:$0xff]
    %v1002 = vld [vmem:[#allocation4 + $0x2e8] sm:$0xff]
    %v1003 = vld [vmem:[#allocation4 + $0x2f0] sm:$0xff]
    %v1004 = vld [vmem:[#allocation4 + $0x2f8] sm:$0xff]
    %v1005 = vld [vmem:[#allocation4 + $0x300] sm:$0xff]
    %v1006 = vld [vmem:[#allocation4 + $0x308] sm:$0xff]
    %v1007 = vld [vmem:[#allocation4 + $0x310] sm:$0xff]
    %v1008 = vld [vmem:[#allocation4 + $0x318] sm:$0xff]
    %v1009 = vld [vmem:[#allocation4 + $0x320] sm:$0xff]
    %v1010 = vld [vmem:[#allocation4 + $0x328] sm:$0xff]
    %v1011 = vld [vmem:[#allocation4 + $0x330] sm:$0xff]
    %v1012 = vld [vmem:[#allocation4 + $0x338] sm:$0xff]
    %v1013 = vld [vmem:[#allocation4 + $0x340] sm:$0xff]
    %v1014 = vld [vmem:[#allocation4 + $0x348] sm:$0xff]
    %v1015 = vld [vmem:[#allocation4 + $0x350] sm:$0xff]
    %v1016 = vld [vmem:[#allocation4 + $0x358] sm:$0xff]
    %v1017 = vld [vmem:[#allocation4 + $0x360] sm:$0xff]
    %v1018 = vld [vmem:[#allocation4 + $0x368] sm:$0xff]
    %v1019 = vld [vmem:[#allocation4 + $0x370] sm:$0xff]
    %v1020 = vld [vmem:[#allocation4 + $0x378] sm:$0xff]
    %v1021 = vld [vmem:[#allocation4 + $0x380] sm:$0xff]
    %v1022 = vld [vmem:[#allocation4 + $0x388] sm:$0xff]
    %v1023 = vld [vmem:[#allocation4 + $0x390] sm:$0xff]
    %v1024 = vld [vmem:[#allocation4 + $0x398] sm:$0xff]
    %v1025 = vld [vmem:[#allocation4 + $0x3a0] sm:$0xff]
    %v1026 = vld [vmem:[#allocation4 + $0x3a8] sm:$0xff]
    %v1027 = vld [vmem:[#allocation4 + $0x3b0] sm:$0xff]
    %v1028 = vld [vmem:[#allocation4 + $0x3b8] sm:$0xff]
    %v1029 = vld [vmem:[#allocation4 + $0x3c0] sm:$0xff]
    %v1030 = vld [vmem:[#allocation4 + $0x3c8] sm:$0xff]
    %v1031 = vld [vmem:[#allocation4 + $0x3d0] sm:$0xff]
    %v1032 = vld [vmem:[#allocation4 + $0x3d8] sm:$0xff]
    %v1033 = vld [vmem:[#allocation4 + $0x3e0] sm:$0xff]
    %v1034 = vld [vmem:[#allocation4 + $0x3e8] sm:$0xff]
    %v1035 = vld [vmem:[#allocation4 + $0x3f0] sm:$0xff]
    %v1036 = vld [vmem:[#allocation4 + $0x3f8] sm:$0xff]
    %v1037 = vld [vmem:[%s4] sm:$0xf]
    %v1039 = vlaneseq
    %v1040 = vshrl.u32 %v1039, 7
    %v1041 = vsub.s32 0, %v1040
    %v1042 = vrot.slane %v1037, %v1041
    %v1043 = vlaneseq
    %v1044 = vshrl.u32 %v1043, 7
    %v1045 = vsub.s32 1, %v1044
    %v1046 = vrot.slane %v1037, %v1045
    %v1047 = vlaneseq
    %v1048 = vshrl.u32 %v1047, 7
    %v1049 = vsub.s32 2, %v1048
    %v1050 = vrot.slane %v1037, %v1049
    %v1051 = vlaneseq
    %v1052 = vshrl.u32 %v1051, 7
    %v1053 = vsub.s32 3, %v1052
    %v1054 = vrot.slane %v1037, %v1053
    %v1187 = vunpack.c.l.b16 %v909
    %v1188 = vunpack.c.h.b16 %v909
    %v1189 = vunpack.c.l.b16 %v910
    %v1190 = vunpack.c.h.b16 %v910
    %v1191 = vunpack.c.l.b16 %v911
    %v1192 = vunpack.c.h.b16 %v911
    %v1193 = vunpack.c.l.b16 %v912
    %v1194 = vunpack.c.h.b16 %v912
    %v1195 = vunpack.c.l.b16 %v913
    %v1196 = vunpack.c.h.b16 %v913
    %v1197 = vunpack.c.l.b16 %v914
    %v1198 = vunpack.c.h.b16 %v914
    %v1199 = vunpack.c.l.b16 %v915
    %v1200 = vunpack.c.h.b16 %v915
    %v1201 = vunpack.c.l.b16 %v916
    %v1202 = vunpack.c.h.b16 %v916
    %v1203 = vunpack.c.l.b16 %v917
    %v1204 = vunpack.c.h.b16 %v917
    %v1205 = vunpack.c.l.b16 %v918
    %v1206 = vunpack.c.h.b16 %v918
    %v1207 = vunpack.c.l.b16 %v919
    %v1208 = vunpack.c.h.b16 %v919
    %v1209 = vunpack.c.l.b16 %v920
    %v1210 = vunpack.c.h.b16 %v920
    %v1211 = vunpack.c.l.b16 %v921
    %v1212 = vunpack.c.h.b16 %v921
    %v1213 = vunpack.c.l.b16 %v922
    %v1214 = vunpack.c.h.b16 %v922
    %v1215 = vunpack.c.l.b16 %v923
    %v1216 = vunpack.c.h.b16 %v923
    %v1217 = vunpack.c.l.b16 %v924
    %v1218 = vunpack.c.h.b16 %v924
    %v1219 = vunpack.c.l.b16 %v925
    %v1220 = vunpack.c.h.b16 %v925
    %v1221 = vunpack.c.l.b16 %v926
    %v1222 = vunpack.c.h.b16 %v926
    %v1223 = vunpack.c.l.b16 %v927
    %v1224 = vunpack.c.h.b16 %v927
    %v1225 = vunpack.c.l.b16 %v928
    %v1226 = vunpack.c.h.b16 %v928
    %v1227 = vunpack.c.l.b16 %v929
    %v1228 = vunpack.c.h.b16 %v929
    %v1229 = vunpack.c.l.b16 %v930
    %v1230 = vunpack.c.h.b16 %v930
    %v1231 = vunpack.c.l.b16 %v931
    %v1232 = vunpack.c.h.b16 %v931
    %v1233 = vunpack.c.l.b16 %v932
    %v1234 = vunpack.c.h.b16 %v932
    %v1235 = vunpack.c.l.b16 %v933
    %v1236 = vunpack.c.h.b16 %v933
    %v1237 = vunpack.c.l.b16 %v934
    %v1238 = vunpack.c.h.b16 %v934
    %v1239 = vunpack.c.l.b16 %v935
    %v1240 = vunpack.c.h.b16 %v935
    %v1241 = vunpack.c.l.b16 %v936
    %v1242 = vunpack.c.h.b16 %v936
    %v1243 = vunpack.c.l.b16 %v937
    %v1244 = vunpack.c.h.b16 %v937
    %v1245 = vunpack.c.l.b16 %v938
    %v1246 = vunpack.c.h.b16 %v938
    %v1247 = vunpack.c.l.b16 %v939
    %v1248 = vunpack.c.h.b16 %v939
    %v1249 = vunpack.c.l.b16 %v940
    %v1250 = vunpack.c.h.b16 %v940
    %v1251 = vunpack.c.l.b16 %v941
    %v1252 = vunpack.c.h.b16 %v941
    %v1253 = vunpack.c.l.b16 %v942
    %v1254 = vunpack.c.h.b16 %v942
    %v1255 = vunpack.c.l.b16 %v943
    %v1256 = vunpack.c.h.b16 %v943
    %v1257 = vunpack.c.l.b16 %v944
    %v1258 = vunpack.c.h.b16 %v944
    %v1259 = vunpack.c.l.b16 %v945
    %v1260 = vunpack.c.h.b16 %v945
    %v1261 = vunpack.c.l.b16 %v946
    %v1262 = vunpack.c.h.b16 %v946
    %v1263 = vunpack.c.l.b16 %v947
    %v1264 = vunpack.c.h.b16 %v947
    %v1265 = vunpack.c.l.b16 %v948
    %v1266 = vunpack.c.h.b16 %v948
    %v1267 = vunpack.c.l.b16 %v949
    %v1268 = vunpack.c.h.b16 %v949
    %v1269 = vunpack.c.l.b16 %v950
    %v1270 = vunpack.c.h.b16 %v950
    %v1271 = vunpack.c.l.b16 %v951
    %v1272 = vunpack.c.h.b16 %v951
    %v1273 = vunpack.c.l.b16 %v952
    %v1274 = vunpack.c.h.b16 %v952
    %v1275 = vunpack.c.l.b16 %v953
    %v1276 = vunpack.c.h.b16 %v953
    %v1277 = vunpack.c.l.b16 %v954
    %v1278 = vunpack.c.h.b16 %v954
    %v1279 = vunpack.c.l.b16 %v955
    %v1280 = vunpack.c.h.b16 %v955
    %v1281 = vunpack.c.l.b16 %v956
    %v1282 = vunpack.c.h.b16 %v956
    %v1283 = vunpack.c.l.b16 %v957
    %v1284 = vunpack.c.h.b16 %v957
    %v1285 = vunpack.c.l.b16 %v958
    %v1286 = vunpack.c.h.b16 %v958
    %v1287 = vunpack.c.l.b16 %v959
    %v1288 = vunpack.c.h.b16 %v959
    %v1289 = vunpack.c.l.b16 %v960
    %v1290 = vunpack.c.h.b16 %v960
    %v1291 = vunpack.c.l.b16 %v961
    %v1292 = vunpack.c.h.b16 %v961
    %v1293 = vunpack.c.l.b16 %v962
    %v1294 = vunpack.c.h.b16 %v962
    %v1295 = vunpack.c.l.b16 %v963
    %v1296 = vunpack.c.h.b16 %v963
    %v1297 = vunpack.c.l.b16 %v964
    %v1298 = vunpack.c.h.b16 %v964
    %v1299 = vunpack.c.l.b16 %v965
    %v1300 = vunpack.c.h.b16 %v965
    %v1301 = vunpack.c.l.b16 %v966
    %v1302 = vunpack.c.h.b16 %v966
    %v1303 = vunpack.c.l.b16 %v967
    %v1304 = vunpack.c.h.b16 %v967
    %v1305 = vunpack.c.l.b16 %v968
    %v1306 = vunpack.c.h.b16 %v968
    %v1307 = vunpack.c.l.b16 %v969
    %v1308 = vunpack.c.h.b16 %v969
    %v1309 = vunpack.c.l.b16 %v970
    %v1310 = vunpack.c.h.b16 %v970
    %v1311 = vunpack.c.l.b16 %v971
    %v1312 = vunpack.c.h.b16 %v971
    %v1313 = vunpack.c.l.b16 %v972
    %v1314 = vunpack.c.h.b16 %v972
    %v1315 = vunpack.c.l.b16 %v973
    %v1316 = vunpack.c.h.b16 %v973
    %v1317 = vunpack.c.l.b16 %v974
    %v1318 = vunpack.c.h.b16 %v974
    %v1319 = vunpack.c.l.b16 %v975
    %v1320 = vunpack.c.h.b16 %v975
    %v1321 = vunpack.c.l.b16 %v976
    %v1322 = vunpack.c.h.b16 %v976
    %v1323 = vunpack.c.l.b16 %v977
    %v1324 = vunpack.c.h.b16 %v977
    %v1325 = vunpack.c.l.b16 %v978
    %v1326 = vunpack.c.h.b16 %v978
    %v1327 = vunpack.c.l.b16 %v979
    %v1328 = vunpack.c.h.b16 %v979
    %v1329 = vunpack.c.l.b16 %v980
    %v1330 = vunpack.c.h.b16 %v980
    %v1331 = vunpack.c.l.b16 %v981
    %v1332 = vunpack.c.h.b16 %v981
    %v1333 = vunpack.c.l.b16 %v982
    %v1334 = vunpack.c.h.b16 %v982
    %v1335 = vunpack.c.l.b16 %v983
    %v1336 = vunpack.c.h.b16 %v983
    %v1337 = vunpack.c.l.b16 %v984
    %v1338 = vunpack.c.h.b16 %v984
    %v1339 = vunpack.c.l.b16 %v985
    %v1340 = vunpack.c.h.b16 %v985
    %v1341 = vunpack.c.l.b16 %v986
    %v1342 = vunpack.c.h.b16 %v986
    %v1343 = vunpack.c.l.b16 %v987
    %v1344 = vunpack.c.h.b16 %v987
    %v1345 = vunpack.c.l.b16 %v988
    %v1346 = vunpack.c.h.b16 %v988
    %v1347 = vunpack.c.l.b16 %v989
    %v1348 = vunpack.c.h.b16 %v989
    %v1349 = vunpack.c.l.b16 %v990
    %v1350 = vunpack.c.h.b16 %v990
    %v1351 = vunpack.c.l.b16 %v991
    %v1352 = vunpack.c.h.b16 %v991
    %v1353 = vunpack.c.l.b16 %v992
    %v1354 = vunpack.c.h.b16 %v992
    %v1355 = vunpack.c.l.b16 %v993
    %v1356 = vunpack.c.h.b16 %v993
    %v1357 = vunpack.c.l.b16 %v994
    %v1358 = vunpack.c.h.b16 %v994
    %v1359 = vunpack.c.l.b16 %v995
    %v1360 = vunpack.c.h.b16 %v995
    %v1361 = vunpack.c.l.b16 %v996
    %v1362 = vunpack.c.h.b16 %v996
    %v1363 = vunpack.c.l.b16 %v997
    %v1364 = vunpack.c.h.b16 %v997
    %v1365 = vunpack.c.l.b16 %v998
    %v1366 = vunpack.c.h.b16 %v998
    %v1367 = vunpack.c.l.b16 %v999
    %v1368 = vunpack.c.h.b16 %v999
    %v1369 = vunpack.c.l.b16 %v1000
    %v1370 = vunpack.c.h.b16 %v1000
    %v1371 = vunpack.c.l.b16 %v1001
    %v1372 = vunpack.c.h.b16 %v1001
    %v1373 = vunpack.c.l.b16 %v1002
    %v1374 = vunpack.c.h.b16 %v1002
    %v1375 = vunpack.c.l.b16 %v1003
    %v1376 = vunpack.c.h.b16 %v1003
    %v1377 = vunpack.c.l.b16 %v1004
    %v1378 = vunpack.c.h.b16 %v1004
    %v1379 = vunpack.c.l.b16 %v1005
    %v1380 = vunpack.c.h.b16 %v1005
    %v1381 = vunpack.c.l.b16 %v1006
    %v1382 = vunpack.c.h.b16 %v1006
    %v1383 = vunpack.c.l.b16 %v1007
    %v1384 = vunpack.c.h.b16 %v1007
    %v1385 = vunpack.c.l.b16 %v1008
    %v1386 = vunpack.c.h.b16 %v1008
    %v1387 = vunpack.c.l.b16 %v1009
    %v1388 = vunpack.c.h.b16 %v1009
    %v1389 = vunpack.c.l.b16 %v1010
    %v1390 = vunpack.c.h.b16 %v1010
    %v1391 = vunpack.c.l.b16 %v1011
    %v1392 = vunpack.c.h.b16 %v1011
    %v1393 = vunpack.c.l.b16 %v1012
    %v1394 = vunpack.c.h.b16 %v1012
    %v1395 = vunpack.c.l.b16 %v1013
    %v1396 = vunpack.c.h.b16 %v1013
    %v1397 = vunpack.c.l.b16 %v1014
    %v1398 = vunpack.c.h.b16 %v1014
    %v1399 = vunpack.c.l.b16 %v1015
    %v1400 = vunpack.c.h.b16 %v1015
    %v1401 = vunpack.c.l.b16 %v1016
    %v1402 = vunpack.c.h.b16 %v1016
    %v1403 = vunpack.c.l.b16 %v1017
    %v1404 = vunpack.c.h.b16 %v1017
    %v1405 = vunpack.c.l.b16 %v1018
    %v1406 = vunpack.c.h.b16 %v1018
    %v1407 = vunpack.c.l.b16 %v1019
    %v1408 = vunpack.c.h.b16 %v1019
    %v1409 = vunpack.c.l.b16 %v1020
    %v1410 = vunpack.c.h.b16 %v1020
    %v1411 = vunpack.c.l.b16 %v1021
    %v1412 = vunpack.c.h.b16 %v1021
    %v1413 = vunpack.c.l.b16 %v1022
    %v1414 = vunpack.c.h.b16 %v1022
    %v1415 = vunpack.c.l.b16 %v1023
    %v1416 = vunpack.c.h.b16 %v1023
    %v1417 = vunpack.c.l.b16 %v1024
    %v1418 = vunpack.c.h.b16 %v1024
    %v1419 = vunpack.c.l.b16 %v1025
    %v1420 = vunpack.c.h.b16 %v1025
    %v1421 = vunpack.c.l.b16 %v1026
    %v1422 = vunpack.c.h.b16 %v1026
    %v1423 = vunpack.c.l.b16 %v1027
    %v1424 = vunpack.c.h.b16 %v1027
    %v1425 = vunpack.c.l.b16 %v1028
    %v1426 = vunpack.c.h.b16 %v1028
    %v1427 = vunpack.c.l.b16 %v1029
    %v1428 = vunpack.c.h.b16 %v1029
    %v1429 = vunpack.c.l.b16 %v1030
    %v1430 = vunpack.c.h.b16 %v1030
    %v1431 = vunpack.c.l.b16 %v1031
    %v1432 = vunpack.c.h.b16 %v1031
    %v1433 = vunpack.c.l.b16 %v1032
    %v1434 = vunpack.c.h.b16 %v1032
    %v1435 = vunpack.c.l.b16 %v1033
    %v1436 = vunpack.c.h.b16 %v1033
    %v1437 = vunpack.c.l.b16 %v1034
    %v1438 = vunpack.c.h.b16 %v1034
    %v1439 = vunpack.c.l.b16 %v1035
    %v1440 = vunpack.c.h.b16 %v1035
    %v1441 = vunpack.c.l.b16 %v1036
    %v1442 = vunpack.c.h.b16 %v1036
    %v1443 = vpack.c.b16 %v1191, %v1187
    %v1444 = vpack.c.b16 %v1192, %v1188
    %v1445 = vpack.c.b16 %v1193, %v1189
    %v1446 = vpack.c.b16 %v1194, %v1190
    %v1447 = vpack.c.b16 %v1199, %v1195
    %v1448 = vpack.c.b16 %v1200, %v1196
    %v1449 = vpack.c.b16 %v1201, %v1197
    %v1450 = vpack.c.b16 %v1202, %v1198
    %v1451 = vpack.c.b16 %v1207, %v1203
    %v1452 = vpack.c.b16 %v1208, %v1204
    %v1453 = vpack.c.b16 %v1209, %v1205
    %v1454 = vpack.c.b16 %v1210, %v1206
    %v1455 = vpack.c.b16 %v1215, %v1211
    %v1456 = vpack.c.b16 %v1216, %v1212
    %v1457 = vpack.c.b16 %v1217, %v1213
    %v1458 = vpack.c.b16 %v1218, %v1214
    %v1459 = vpack.c.b16 %v1223, %v1219
    %v1460 = vpack.c.b16 %v1224, %v1220
    %v1461 = vpack.c.b16 %v1225, %v1221
    %v1462 = vpack.c.b16 %v1226, %v1222
    %v1463 = vpack.c.b16 %v1231, %v1227
    %v1464 = vpack.c.b16 %v1232, %v1228
    %v1465 = vpack.c.b16 %v1233, %v1229
    %v1466 = vpack.c.b16 %v1234, %v1230
    %v1467 = vpack.c.b16 %v1239, %v1235
    %v1468 = vpack.c.b16 %v1240, %v1236
    %v1469 = vpack.c.b16 %v1241, %v1237
    %v1470 = vpack.c.b16 %v1242, %v1238
    %v1471 = vpack.c.b16 %v1247, %v1243
    %v1472 = vpack.c.b16 %v1248, %v1244
    %v1473 = vpack.c.b16 %v1249, %v1245
    %v1474 = vpack.c.b16 %v1250, %v1246
    %v1475 = vpack.c.b16 %v1255, %v1251
    %v1476 = vpack.c.b16 %v1256, %v1252
    %v1477 = vpack.c.b16 %v1257, %v1253
    %v1478 = vpack.c.b16 %v1258, %v1254
    %v1479 = vpack.c.b16 %v1263, %v1259
    %v1480 = vpack.c.b16 %v1264, %v1260
    %v1481 = vpack.c.b16 %v1265, %v1261
    %v1482 = vpack.c.b16 %v1266, %v1262
    %v1483 = vpack.c.b16 %v1271, %v1267
    %v1484 = vpack.c.b16 %v1272, %v1268
    %v1485 = vpack.c.b16 %v1273, %v1269
    %v1486 = vpack.c.b16 %v1274, %v1270
    %v1487 = vpack.c.b16 %v1279, %v1275
    %v1488 = vpack.c.b16 %v1280, %v1276
    %v1489 = vpack.c.b16 %v1281, %v1277
    %v1490 = vpack.c.b16 %v1282, %v1278
    %v1491 = vpack.c.b16 %v1287, %v1283
    %v1492 = vpack.c.b16 %v1288, %v1284
    %v1493 = vpack.c.b16 %v1289, %v1285
    %v1494 = vpack.c.b16 %v1290, %v1286
    %v1495 = vpack.c.b16 %v1295, %v1291
    %v1496 = vpack.c.b16 %v1296, %v1292
    %v1497 = vpack.c.b16 %v1297, %v1293
    %v1498 = vpack.c.b16 %v1298, %v1294
    %v1499 = vpack.c.b16 %v1303, %v1299
    %v1500 = vpack.c.b16 %v1304, %v1300
    %v1501 = vpack.c.b16 %v1305, %v1301
    %v1502 = vpack.c.b16 %v1306, %v1302
    %v1503 = vpack.c.b16 %v1311, %v1307
    %v1504 = vpack.c.b16 %v1312, %v1308
    %v1505 = vpack.c.b16 %v1313, %v1309
    %v1506 = vpack.c.b16 %v1314, %v1310
    %v1507 = vpack.c.b16 %v1319, %v1315
    %v1508 = vpack.c.b16 %v1320, %v1316
    %v1509 = vpack.c.b16 %v1321, %v1317
    %v1510 = vpack.c.b16 %v1322, %v1318
    %v1511 = vpack.c.b16 %v1327, %v1323
    %v1512 = vpack.c.b16 %v1328, %v1324
    %v1513 = vpack.c.b16 %v1329, %v1325
    %v1514 = vpack.c.b16 %v1330, %v1326
    %v1515 = vpack.c.b16 %v1335, %v1331
    %v1516 = vpack.c.b16 %v1336, %v1332
    %v1517 = vpack.c.b16 %v1337, %v1333
    %v1518 = vpack.c.b16 %v1338, %v1334
    %v1519 = vpack.c.b16 %v1343, %v1339
    %v1520 = vpack.c.b16 %v1344, %v1340
    %v1521 = vpack.c.b16 %v1345, %v1341
    %v1522 = vpack.c.b16 %v1346, %v1342
    %v1523 = vpack.c.b16 %v1351, %v1347
    %v1524 = vpack.c.b16 %v1352, %v1348
    %v1525 = vpack.c.b16 %v1353, %v1349
    %v1526 = vpack.c.b16 %v1354, %v1350
    %v1527 = vpack.c.b16 %v1359, %v1355
    %v1528 = vpack.c.b16 %v1360, %v1356
    %v1529 = vpack.c.b16 %v1361, %v1357
    %v1530 = vpack.c.b16 %v1362, %v1358
    %v1531 = vpack.c.b16 %v1367, %v1363
    %v1532 = vpack.c.b16 %v1368, %v1364
    %v1533 = vpack.c.b16 %v1369, %v1365
    %v1534 = vpack.c.b16 %v1370, %v1366
    %v1535 = vpack.c.b16 %v1375, %v1371
    %v1536 = vpack.c.b16 %v1376, %v1372
    %v1537 = vpack.c.b16 %v1377, %v1373
    %v1538 = vpack.c.b16 %v1378, %v1374
    %v1539 = vpack.c.b16 %v1383, %v1379
    %v1540 = vpack.c.b16 %v1384, %v1380
    %v1541 = vpack.c.b16 %v1385, %v1381
    %v1542 = vpack.c.b16 %v1386, %v1382
    %v1543 = vpack.c.b16 %v1391, %v1387
    %v1544 = vpack.c.b16 %v1392, %v1388
    %v1545 = vpack.c.b16 %v1393, %v1389
    %v1546 = vpack.c.b16 %v1394, %v1390
    %v1547 = vpack.c.b16 %v1399, %v1395
    %v1548 = vpack.c.b16 %v1400, %v1396
    %v1549 = vpack.c.b16 %v1401, %v1397
    %v1550 = vpack.c.b16 %v1402, %v1398
    %v1551 = vpack.c.b16 %v1407, %v1403
    %v1552 = vpack.c.b16 %v1408, %v1404
    %v1553 = vpack.c.b16 %v1409, %v1405
    %v1554 = vpack.c.b16 %v1410, %v1406
    %v1555 = vpack.c.b16 %v1415, %v1411
    %v1556 = vpack.c.b16 %v1416, %v1412
    %v1557 = vpack.c.b16 %v1417, %v1413
    %v1558 = vpack.c.b16 %v1418, %v1414
    %v1559 = vpack.c.b16 %v1423, %v1419
    %v1560 = vpack.c.b16 %v1424, %v1420
    %v1561 = vpack.c.b16 %v1425, %v1421
    %v1562 = vpack.c.b16 %v1426, %v1422
    %v1563 = vpack.c.b16 %v1431, %v1427
    %v1564 = vpack.c.b16 %v1432, %v1428
    %v1565 = vpack.c.b16 %v1433, %v1429
    %v1566 = vpack.c.b16 %v1434, %v1430
    %v1567 = vpack.c.b16 %v1439, %v1435
    %v1568 = vpack.c.b16 %v1440, %v1436
    %v1569 = vpack.c.b16 %v1441, %v1437
    %v1570 = vpack.c.b16 %v1442, %v1438
    %1699 = vmatprep.subr.bf16.mxu0 %v1444
    %1700 = vmatpush1.bf16.msra.mxu0 %v1443
    %1701 = vmatprep.subr.bf16.mxu0 %v1448
    %1702 = vmatpush1.bf16.msra.mxu0 %v1447
    %1703 = vmatprep.subr.bf16.mxu0 %v1452
    %1704 = vmatpush1.bf16.msra.mxu0 %v1451
    %1705 = vmatprep.subr.bf16.mxu0 %v1456
    %1706 = vmatpush1.bf16.msra.mxu0 %v1455
    %1707 = vmatprep.subr.bf16.mxu0 %v1460
    %1708 = vmatpush1.bf16.msra.mxu0 %v1459
    %1709 = vmatprep.subr.bf16.mxu0 %v1464
    %1710 = vmatpush1.bf16.msra.mxu0 %v1463
    %1711 = vmatprep.subr.bf16.mxu0 %v1468
    %1712 = vmatpush1.bf16.msra.mxu0 %v1467
    %1713 = vmatprep.subr.bf16.mxu0 %v1472
    %1714 = vmatpush1.bf16.msra.mxu0 %v1471
    %1715 = vmatprep.subr.bf16.mxu0 %v1476
    %1716 = vmatpush1.bf16.msra.mxu0 %v1475
    %1717 = vmatprep.subr.bf16.mxu0 %v1480
    %1718 = vmatpush1.bf16.msra.mxu0 %v1479
    %1719 = vmatprep.subr.bf16.mxu0 %v1484
    %1720 = vmatpush1.bf16.msra.mxu0 %v1483
    %1721 = vmatprep.subr.bf16.mxu0 %v1488
    %1722 = vmatpush1.bf16.msra.mxu0 %v1487
    %1723 = vmatprep.subr.bf16.mxu0 %v1492
    %1724 = vmatpush1.bf16.msra.mxu0 %v1491
    %1725 = vmatprep.subr.bf16.mxu0 %v1496
    %1726 = vmatpush1.bf16.msra.mxu0 %v1495
    %1727 = vmatprep.subr.bf16.mxu0 %v1500
    %1728 = vmatpush1.bf16.msra.mxu0 %v1499
    %1729 = vmatprep.subr.bf16.mxu0 %v1504
    %1730 = vmatpush1.bf16.msra.mxu0 %v1503
    %1731 = vmatprep.mubr.bf16.mxu0 %v906
    %1732 = vmatmul.mubr.bf16.gmra.mrb[0].mxu0 %v905
    %v1733 = vpop.f32.mrb[0].mxu0
    %v1734 = vadd.f32 %v1042, %v1733
    %v1735 = vpop.f32.mrb[0].mxu0
    %v1736 = vadd.f32 %v1046, %v1735
    %v1737 = vpop.f32.mrb[0].mxu0
    %v1738 = vadd.f32 %v1042, %v1737
    %v1739 = vpop.f32.mrb[0].mxu0
    %v1740 = vadd.f32 %v1046, %v1739
    %1741 = vdwg.mxu0
    %1742 = vmatprep.subr.bf16.mxu0 %v1508
    %1743 = vmatpush1.bf16.msra.mxu0 %v1507
    %1744 = vmatprep.subr.bf16.mxu0 %v1512
    %1745 = vmatpush1.bf16.msra.mxu0 %v1511
    %1746 = vmatprep.subr.bf16.mxu0 %v1516
    %1747 = vmatpush1.bf16.msra.mxu0 %v1515
    %1748 = vmatprep.subr.bf16.mxu0 %v1520
    %1749 = vmatpush1.bf16.msra.mxu0 %v1519
    %1750 = vmatprep.subr.bf16.mxu0 %v1524
    %1751 = vmatpush1.bf16.msra.mxu0 %v1523
    %1752 = vmatprep.subr.bf16.mxu0 %v1528
    %1753 = vmatpush1.bf16.msra.mxu0 %v1527
    %1754 = vmatprep.subr.bf16.mxu0 %v1532
    %1755 = vmatpush1.bf16.msra.mxu0 %v1531
    %1756 = vmatprep.subr.bf16.mxu0 %v1536
    %1757 = vmatpush1.bf16.msra.mxu0 %v1535
    %1758 = vmatprep.subr.bf16.mxu0 %v1540
    %1759 = vmatpush1.bf16.msra.mxu0 %v1539
    %1760 = vmatprep.subr.bf16.mxu0 %v1544
    %1761 = vmatpush1.bf16.msra.mxu0 %v1543
    %1762 = vmatprep.subr.bf16.mxu0 %v1548
    %1763 = vmatpush1.bf16.msra.mxu0 %v1547
    %1764 = vmatprep.subr.bf16.mxu0 %v1552
    %1765 = vmatpush1.bf16.msra.mxu0 %v1551
    %1766 = vmatprep.subr.bf16.mxu0 %v1556
    %1767 = vmatpush1.bf16.msra.mxu0 %v1555
    %1768 = vmatprep.subr.bf16.mxu0 %v1560
    %1769 = vmatpush1.bf16.msra.mxu0 %v1559
    %1770 = vmatprep.subr.bf16.mxu0 %v1564
    %1771 = vmatpush1.bf16.msra.mxu0 %v1563
    %1772 = vmatprep.subr.bf16.mxu0 %v1568
    %1773 = vmatpush1.bf16.msra.mxu0 %v1567
    %1774 = vmatprep.mubr.bf16.mxu0 %v908
    %1775 = vmatmul.mubr.bf16.gmra.mrb[0].mxu0 %v907
    %v1776 = vpop.f32.mrb[0].mxu0
    %v1777 = vadd.f32 %v1734, %v1776
    %v1778 = vpop.f32.mrb[0].mxu0
    %v1779 = vadd.f32 %v1736, %v1778
    %v1780 = vpop.f32.mrb[0].mxu0
    %v1781 = vadd.f32 %v1738, %v1780
    %v1782 = vpop.f32.mrb[0].mxu0
    %v1783 = vadd.f32 %v1740, %v1782
    %1784 = vdwg.mxu0
    %1785 = vmatprep.subr.bf16.mxu0 %v1446
    %1786 = vmatpush1.bf16.msra.mxu0 %v1445
    %1787 = vmatprep.subr.bf16.mxu0 %v1450
    %1788 = vmatpush1.bf16.msra.mxu0 %v1449
    %1789 = vmatprep.subr.bf16.mxu0 %v1454
    %1790 = vmatpush1.bf16.msra.mxu0 %v1453
    %1791 = vmatprep.subr.bf16.mxu0 %v1458
    %1792 = vmatpush1.bf16.msra.mxu0 %v1457
    %1793 = vmatprep.subr.bf16.mxu0 %v1462
    %1794 = vmatpush1.bf16.msra.mxu0 %v1461
    %1795 = vmatprep.subr.bf16.mxu0 %v1466
    %1796 = vmatpush1.bf16.msra.mxu0 %v1465
    %1797 = vmatprep.subr.bf16.mxu0 %v1470
    %1798 = vmatpush1.bf16.msra.mxu0 %v1469
    %1799 = vmatprep.subr.bf16.mxu0 %v1474
    %1800 = vmatpush1.bf16.msra.mxu0 %v1473
    %1801 = vmatprep.subr.bf16.mxu0 %v1478
    %1802 = vmatpush1.bf16.msra.mxu0 %v1477
    %1803 = vmatprep.subr.bf16.mxu0 %v1482
    %1804 = vmatpush1.bf16.msra.mxu0 %v1481
    %1805 = vmatprep.subr.bf16.mxu0 %v1486
    %1806 = vmatpush1.bf16.msra.mxu0 %v1485
    %1807 = vmatprep.subr.bf16.mxu0 %v1490
    %1808 = vmatpush1.bf16.msra.mxu0 %v1489
    %1809 = vmatprep.subr.bf16.mxu0 %v1494
    %1810 = vmatpush1.bf16.msra.mxu0 %v1493
    %1811 = vmatprep.subr.bf16.mxu0 %v1498
    %1812 = vmatpush1.bf16.msra.mxu0 %v1497
    %1813 = vmatprep.subr.bf16.mxu0 %v1502
    %1814 = vmatpush1.bf16.msra.mxu0 %v1501
    %1815 = vmatprep.subr.bf16.mxu0 %v1506
    %1816 = vmatpush1.bf16.msra.mxu0 %v1505
    %1817 = vmatprep.mubr.bf16.mxu0 %v906
    %1818 = vmatmul.mubr.bf16.gmra.mrb[0].mxu0 %v905
    %v1819 = vpop.f32.mrb[0].mxu0
    %v1820 = vadd.f32 %v1050, %v1819
    %v1821 = vpop.f32.mrb[0].mxu0
    %v1822 = vadd.f32 %v1054, %v1821
    %v1823 = vpop.f32.mrb[0].mxu0
    %v1824 = vadd.f32 %v1050, %v1823
    %v1825 = vpop.f32.mrb[0].mxu0
    %v1826 = vadd.f32 %v1054, %v1825
    %1827 = vdwg.mxu0
    %1828 = vmatprep.subr.bf16.mxu0 %v1510
    %1829 = vmatpush1.bf16.msra.mxu0 %v1509
    %1830 = vmatprep.subr.bf16.mxu0 %v1514
    %1831 = vmatpush1.bf16.msra.mxu0 %v1513
    %1832 = vmatprep.subr.bf16.mxu0 %v1518
    %1833 = vmatpush1.bf16.msra.mxu0 %v1517
    %1834 = vmatprep.subr.bf16.mxu0 %v1522
    %1835 = vmatpush1.bf16.msra.mxu0 %v1521
    %1836 = vmatprep.subr.bf16.mxu0 %v1526
    %1837 = vmatpush1.bf16.msra.mxu0 %v1525
    %1838 = vmatprep.subr.bf16.mxu0 %v1530
    %1839 = vmatpush1.bf16.msra.mxu0 %v1529
    %1840 = vmatprep.subr.bf16.mxu0 %v1534
    %1841 = vmatpush1.bf16.msra.mxu0 %v1533
    %1842 = vmatprep.subr.bf16.mxu0 %v1538
    %1843 = vmatpush1.bf16.msra.mxu0 %v1537
    %1844 = vmatprep.subr.bf16.mxu0 %v1542
    %1845 = vmatpush1.bf16.msra.mxu0 %v1541
    %1846 = vmatprep.subr.bf16.mxu0 %v1546
    %1847 = vmatpush1.bf16.msra.mxu0 %v1545
    %1848 = vmatprep.subr.bf16.mxu0 %v1550
    %1849 = vmatpush1.bf16.msra.mxu0 %v1549
    %1850 = vmatprep.subr.bf16.mxu0 %v1554
    %1851 = vmatpush1.bf16.msra.mxu0 %v1553
    %1852 = vmatprep.subr.bf16.mxu0 %v1558
    %1853 = vmatpush1.bf16.msra.mxu0 %v1557
    %1854 = vmatprep.subr.bf16.mxu0 %v1562
    %1855 = vmatpush1.bf16.msra.mxu0 %v1561
    %1856 = vmatprep.subr.bf16.mxu0 %v1566
    %1857 = vmatpush1.bf16.msra.mxu0 %v1565
    %1858 = vmatprep.subr.bf16.mxu0 %v1570
    %1859 = vmatpush1.bf16.msra.mxu0 %v1569
    %1860 = vmatprep.mubr.bf16.mxu0 %v908
    %1861 = vmatmul.mubr.bf16.gmra.mrb[0].mxu0 %v907
    %v1862 = vpop.f32.mrb[0].mxu0
    %v1863 = vadd.f32 %v1820, %v1862
    %v1864 = vpop.f32.mrb[0].mxu0
    %v1865 = vadd.f32 %v1822, %v1864
    %v1866 = vpop.f32.mrb[0].mxu0
    %v1867 = vadd.f32 %v1824, %v1866
    %v1868 = vpop.f32.mrb[0].mxu0
    %v1869 = vadd.f32 %v1826, %v1868
    %1870 = vdwg.mxu0
    %v1871 = vmax.f32 %v1777, 0.0
    %v1872 = vmax.f32 %v1779, 0.0
    %v1873 = vmax.f32 %v1863, 0.0
    %v1874 = vmax.f32 %v1865, 0.0
    %v1875 = vmax.f32 %v1781, 0.0
    %v1876 = vmax.f32 %v1783, 0.0
    %v1877 = vmax.f32 %v1867, 0.0
    %v1878 = vmax.f32 %v1869, 0.0
    %v1879 = vpack.c.bf16 %v1875, %v1871
    %v1880 = vpack.c.bf16 %v1876, %v1872
    %v1881 = vpack.c.bf16 %v1877, %v1873
    %v1882 = vpack.c.bf16 %v1878, %v1874
    %v1883 = vld [vmem:[#allocation6] sm:$0xff]
    %v1884 = vld [vmem:[#allocation6 + $0x8] sm:$0xff]
    %v1885 = vld [vmem:[#allocation6 + $0x10] sm:$0xff]
    %v1886 = vld [vmem:[#allocation6 + $0x18] sm:$0xff]
    %v1887 = vld [vmem:[#allocation6 + $0x20] sm:$0xff]
    %v1888 = vld [vmem:[#allocation6 + $0x28] sm:$0xff]
    %v1889 = vld [vmem:[#allocation6 + $0x30] sm:$0xff]
    %v1890 = vld [vmem:[#allocation6 + $0x38] sm:$0xff]
    %v1891 = vld [vmem:[#allocation6 + $0x40] sm:$0xff]
    %v1892 = vld [vmem:[#allocation6 + $0x48] sm:$0xff]
    %v1893 = vld [vmem:[#allocation6 + $0x50] sm:$0xff]
    %v1894 = vld [vmem:[#allocation6 + $0x58] sm:$0xff]
    %v1895 = vld [vmem:[#allocation6 + $0x60] sm:$0xff]
    %v1896 = vld [vmem:[#allocation6 + $0x68] sm:$0xff]
    %v1897 = vld [vmem:[#allocation6 + $0x70] sm:$0xff]
    %v1898 = vld [vmem:[#allocation6 + $0x78] sm:$0xff]
    %v1899 = vld [vmem:[#allocation6 + $0x80] sm:$0xff]
    %v1900 = vld [vmem:[#allocation6 + $0x88] sm:$0xff]
    %v1901 = vld [vmem:[#allocation6 + $0x90] sm:$0xff]
    %v1902 = vld [vmem:[#allocation6 + $0x98] sm:$0xff]
    %v1903 = vld [vmem:[#allocation6 + $0xa0] sm:$0xff]
    %v1904 = vld [vmem:[#allocation6 + $0xa8] sm:$0xff]
    %v1905 = vld [vmem:[#allocation6 + $0xb0] sm:$0xff]
    %v1906 = vld [vmem:[#allocation6 + $0xb8] sm:$0xff]
    %v1907 = vld [vmem:[#allocation6 + $0xc0] sm:$0xff]
    %v1908 = vld [vmem:[#allocation6 + $0xc8] sm:$0xff]
    %v1909 = vld [vmem:[#allocation6 + $0xd0] sm:$0xff]
    %v1910 = vld [vmem:[#allocation6 + $0xd8] sm:$0xff]
    %v1911 = vld [vmem:[#allocation6 + $0xe0] sm:$0xff]
    %v1912 = vld [vmem:[#allocation6 + $0xe8] sm:$0xff]
    %v1913 = vld [vmem:[#allocation6 + $0xf0] sm:$0xff]
    %v1914 = vld [vmem:[#allocation6 + $0xf8] sm:$0xff]
    %v1915 = vld [vmem:[#allocation6 + $0x100] sm:$0xff]
    %v1916 = vld [vmem:[#allocation6 + $0x108] sm:$0xff]
    %v1917 = vld [vmem:[#allocation6 + $0x110] sm:$0xff]
    %v1918 = vld [vmem:[#allocation6 + $0x118] sm:$0xff]
    %v1919 = vld [vmem:[#allocation6 + $0x120] sm:$0xff]
    %v1920 = vld [vmem:[#allocation6 + $0x128] sm:$0xff]
    %v1921 = vld [vmem:[#allocation6 + $0x130] sm:$0xff]
    %v1922 = vld [vmem:[#allocation6 + $0x138] sm:$0xff]
    %v1923 = vld [vmem:[#allocation6 + $0x140] sm:$0xff]
    %v1924 = vld [vmem:[#allocation6 + $0x148] sm:$0xff]
    %v1925 = vld [vmem:[#allocation6 + $0x150] sm:$0xff]
    %v1926 = vld [vmem:[#allocation6 + $0x158] sm:$0xff]
    %v1927 = vld [vmem:[#allocation6 + $0x160] sm:$0xff]
    %v1928 = vld [vmem:[#allocation6 + $0x168] sm:$0xff]
    %v1929 = vld [vmem:[#allocation6 + $0x170] sm:$0xff]
    %v1930 = vld [vmem:[#allocation6 + $0x178] sm:$0xff]
    %v1931 = vld [vmem:[#allocation6 + $0x180] sm:$0xff]
    %v1932 = vld [vmem:[#allocation6 + $0x188] sm:$0xff]
    %v1933 = vld [vmem:[#allocation6 + $0x190] sm:$0xff]
    %v1934 = vld [vmem:[#allocation6 + $0x198] sm:$0xff]
    %v1935 = vld [vmem:[#allocation6 + $0x1a0] sm:$0xff]
    %v1936 = vld [vmem:[#allocation6 + $0x1a8] sm:$0xff]
    %v1937 = vld [vmem:[#allocation6 + $0x1b0] sm:$0xff]
    %v1938 = vld [vmem:[#allocation6 + $0x1b8] sm:$0xff]
    %v1939 = vld [vmem:[#allocation6 + $0x1c0] sm:$0xff]
    %v1940 = vld [vmem:[#allocation6 + $0x1c8] sm:$0xff]
    %v1941 = vld [vmem:[#allocation6 + $0x1d0] sm:$0xff]
    %v1942 = vld [vmem:[#allocation6 + $0x1d8] sm:$0xff]
    %v1943 = vld [vmem:[#allocation6 + $0x1e0] sm:$0xff]
    %v1944 = vld [vmem:[#allocation6 + $0x1e8] sm:$0xff]
    %v1945 = vld [vmem:[#allocation6 + $0x1f0] sm:$0xff]
    %v1946 = vld [vmem:[#allocation6 + $0x1f8] sm:$0xff]
    %v1947 = vld [vmem:[#allocation6 + $0x200] sm:$0xff]
    %v1948 = vld [vmem:[#allocation6 + $0x208] sm:$0xff]
    %v1949 = vld [vmem:[#allocation6 + $0x210] sm:$0xff]
    %v1950 = vld [vmem:[#allocation6 + $0x218] sm:$0xff]
    %v1951 = vld [vmem:[#allocation6 + $0x220] sm:$0xff]
    %v1952 = vld [vmem:[#allocation6 + $0x228] sm:$0xff]
    %v1953 = vld [vmem:[#allocation6 + $0x230] sm:$0xff]
    %v1954 = vld [vmem:[#allocation6 + $0x238] sm:$0xff]
    %v1955 = vld [vmem:[#allocation6 + $0x240] sm:$0xff]
    %v1956 = vld [vmem:[#allocation6 + $0x248] sm:$0xff]
    %v1957 = vld [vmem:[#allocation6 + $0x250] sm:$0xff]
    %v1958 = vld [vmem:[#allocation6 + $0x258] sm:$0xff]
    %v1959 = vld [vmem:[#allocation6 + $0x260] sm:$0xff]
    %v1960 = vld [vmem:[#allocation6 + $0x268] sm:$0xff]
    %v1961 = vld [vmem:[#allocation6 + $0x270] sm:$0xff]
    %v1962 = vld [vmem:[#allocation6 + $0x278] sm:$0xff]
    %v1963 = vld [vmem:[#allocation6 + $0x280] sm:$0xff]
    %v1964 = vld [vmem:[#allocation6 + $0x288] sm:$0xff]
    %v1965 = vld [vmem:[#allocation6 + $0x290] sm:$0xff]
    %v1966 = vld [vmem:[#allocation6 + $0x298] sm:$0xff]
    %v1967 = vld [vmem:[#allocation6 + $0x2a0] sm:$0xff]
    %v1968 = vld [vmem:[#allocation6 + $0x2a8] sm:$0xff]
    %v1969 = vld [vmem:[#allocation6 + $0x2b0] sm:$0xff]
    %v1970 = vld [vmem:[#allocation6 + $0x2b8] sm:$0xff]
    %v1971 = vld [vmem:[#allocation6 + $0x2c0] sm:$0xff]
    %v1972 = vld [vmem:[#allocation6 + $0x2c8] sm:$0xff]
    %v1973 = vld [vmem:[#allocation6 + $0x2d0] sm:$0xff]
    %v1974 = vld [vmem:[#allocation6 + $0x2d8] sm:$0xff]
    %v1975 = vld [vmem:[#allocation6 + $0x2e0] sm:$0xff]
    %v1976 = vld [vmem:[#allocation6 + $0x2e8] sm:$0xff]
    %v1977 = vld [vmem:[#allocation6 + $0x2f0] sm:$0xff]
    %v1978 = vld [vmem:[#allocation6 + $0x2f8] sm:$0xff]
    %v1979 = vld [vmem:[#allocation6 + $0x300] sm:$0xff]
    %v1980 = vld [vmem:[#allocation6 + $0x308] sm:$0xff]
    %v1981 = vld [vmem:[#allocation6 + $0x310] sm:$0xff]
    %v1982 = vld [vmem:[#allocation6 + $0x318] sm:$0xff]
    %v1983 = vld [vmem:[#allocation6 + $0x320] sm:$0xff]
    %v1984 = vld [vmem:[#allocation6 + $0x328] sm:$0xff]
    %v1985 = vld [vmem:[#allocation6 + $0x330] sm:$0xff]
    %v1986 = vld [vmem:[#allocation6 + $0x338] sm:$0xff]
    %v1987 = vld [vmem:[#allocation6 + $0x340] sm:$0xff]
    %v1988 = vld [vmem:[#allocation6 + $0x348] sm:$0xff]
    %v1989 = vld [vmem:[#allocation6 + $0x350] sm:$0xff]
    %v1990 = vld [vmem:[#allocation6 + $0x358] sm:$0xff]
    %v1991 = vld [vmem:[#allocation6 + $0x360] sm:$0xff]
    %v1992 = vld [vmem:[#allocation6 + $0x368] sm:$0xff]
    %v1993 = vld [vmem:[#allocation6 + $0x370] sm:$0xff]
    %v1994 = vld [vmem:[#allocation6 + $0x378] sm:$0xff]
    %v1995 = vld [vmem:[#allocation6 + $0x380] sm:$0xff]
    %v1996 = vld [vmem:[#allocation6 + $0x388] sm:$0xff]
    %v1997 = vld [vmem:[#allocation6 + $0x390] sm:$0xff]
    %v1998 = vld [vmem:[#allocation6 + $0x398] sm:$0xff]
    %v1999 = vld [vmem:[#allocation6 + $0x3a0] sm:$0xff]
    %v2000 = vld [vmem:[#allocation6 + $0x3a8] sm:$0xff]
    %v2001 = vld [vmem:[#allocation6 + $0x3b0] sm:$0xff]
    %v2002 = vld [vmem:[#allocation6 + $0x3b8] sm:$0xff]
    %v2003 = vld [vmem:[#allocation6 + $0x3c0] sm:$0xff]
    %v2004 = vld [vmem:[#allocation6 + $0x3c8] sm:$0xff]
    %v2005 = vld [vmem:[#allocation6 + $0x3d0] sm:$0xff]
    %v2006 = vld [vmem:[#allocation6 + $0x3d8] sm:$0xff]
    %v2007 = vld [vmem:[#allocation6 + $0x3e0] sm:$0xff]
    %v2008 = vld [vmem:[#allocation6 + $0x3e8] sm:$0xff]
    %v2009 = vld [vmem:[#allocation6 + $0x3f0] sm:$0xff]
    %v2010 = vld [vmem:[#allocation6 + $0x3f8] sm:$0xff]
    %v2011 = vld [vmem:[%s6] sm:$0xf]
    %v2013 = vlaneseq
    %v2014 = vshrl.u32 %v2013, 7
    %v2015 = vsub.s32 0, %v2014
    %v2016 = vrot.slane %v2011, %v2015
    %v2017 = vlaneseq
    %v2018 = vshrl.u32 %v2017, 7
    %v2019 = vsub.s32 1, %v2018
    %v2020 = vrot.slane %v2011, %v2019
    %v2021 = vlaneseq
    %v2022 = vshrl.u32 %v2021, 7
    %v2023 = vsub.s32 2, %v2022
    %v2024 = vrot.slane %v2011, %v2023
    %v2025 = vlaneseq
    %v2026 = vshrl.u32 %v2025, 7
    %v2027 = vsub.s32 3, %v2026
    %v2028 = vrot.slane %v2011, %v2027
    %v2161 = vunpack.c.l.b16 %v1883
    %v2162 = vunpack.c.h.b16 %v1883
    %v2163 = vunpack.c.l.b16 %v1884
    %v2164 = vunpack.c.h.b16 %v1884
    %v2165 = vunpack.c.l.b16 %v1885
    %v2166 = vunpack.c.h.b16 %v1885
    %v2167 = vunpack.c.l.b16 %v1886
    %v2168 = vunpack.c.h.b16 %v1886
    %v2169 = vunpack.c.l.b16 %v1887
    %v2170 = vunpack.c.h.b16 %v1887
    %v2171 = vunpack.c.l.b16 %v1888
    %v2172 = vunpack.c.h.b16 %v1888
    %v2173 = vunpack.c.l.b16 %v1889
    %v2174 = vunpack.c.h.b16 %v1889
    %v2175 = vunpack.c.l.b16 %v1890
    %v2176 = vunpack.c.h.b16 %v1890
    %v2177 = vunpack.c.l.b16 %v1891
    %v2178 = vunpack.c.h.b16 %v1891
    %v2179 = vunpack.c.l.b16 %v1892
    %v2180 = vunpack.c.h.b16 %v1892
    %v2181 = vunpack.c.l.b16 %v1893
    %v2182 = vunpack.c.h.b16 %v1893
    %v2183 = vunpack.c.l.b16 %v1894
    %v2184 = vunpack.c.h.b16 %v1894
    %v2185 = vunpack.c.l.b16 %v1895
    %v2186 = vunpack.c.h.b16 %v1895
    %v2187 = vunpack.c.l.b16 %v1896
    %v2188 = vunpack.c.h.b16 %v1896
    %v2189 = vunpack.c.l.b16 %v1897
    %v2190 = vunpack.c.h.b16 %v1897
    %v2191 = vunpack.c.l.b16 %v1898
    %v2192 = vunpack.c.h.b16 %v1898
    %v2193 = vunpack.c.l.b16 %v1899
    %v2194 = vunpack.c.h.b16 %v1899
    %v2195 = vunpack.c.l.b16 %v1900
    %v2196 = vunpack.c.h.b16 %v1900
    %v2197 = vunpack.c.l.b16 %v1901
    %v2198 = vunpack.c.h.b16 %v1901
    %v2199 = vunpack.c.l.b16 %v1902
    %v2200 = vunpack.c.h.b16 %v1902
    %v2201 = vunpack.c.l.b16 %v1903
    %v2202 = vunpack.c.h.b16 %v1903
    %v2203 = vunpack.c.l.b16 %v1904
    %v2204 = vunpack.c.h.b16 %v1904
    %v2205 = vunpack.c.l.b16 %v1905
    %v2206 = vunpack.c.h.b16 %v1905
    %v2207 = vunpack.c.l.b16 %v1906
    %v2208 = vunpack.c.h.b16 %v1906
    %v2209 = vunpack.c.l.b16 %v1907
    %v2210 = vunpack.c.h.b16 %v1907
    %v2211 = vunpack.c.l.b16 %v1908
    %v2212 = vunpack.c.h.b16 %v1908
    %v2213 = vunpack.c.l.b16 %v1909
    %v2214 = vunpack.c.h.b16 %v1909
    %v2215 = vunpack.c.l.b16 %v1910
    %v2216 = vunpack.c.h.b16 %v1910
    %v2217 = vunpack.c.l.b16 %v1911
    %v2218 = vunpack.c.h.b16 %v1911
    %v2219 = vunpack.c.l.b16 %v1912
    %v2220 = vunpack.c.h.b16 %v1912
    %v2221 = vunpack.c.l.b16 %v1913
    %v2222 = vunpack.c.h.b16 %v1913
    %v2223 = vunpack.c.l.b16 %v1914
    %v2224 = vunpack.c.h.b16 %v1914
    %v2225 = vunpack.c.l.b16 %v1915
    %v2226 = vunpack.c.h.b16 %v1915
    %v2227 = vunpack.c.l.b16 %v1916
    %v2228 = vunpack.c.h.b16 %v1916
    %v2229 = vunpack.c.l.b16 %v1917
    %v2230 = vunpack.c.h.b16 %v1917
    %v2231 = vunpack.c.l.b16 %v1918
    %v2232 = vunpack.c.h.b16 %v1918
    %v2233 = vunpack.c.l.b16 %v1919
    %v2234 = vunpack.c.h.b16 %v1919
    %v2235 = vunpack.c.l.b16 %v1920
    %v2236 = vunpack.c.h.b16 %v1920
    %v2237 = vunpack.c.l.b16 %v1921
    %v2238 = vunpack.c.h.b16 %v1921
    %v2239 = vunpack.c.l.b16 %v1922
    %v2240 = vunpack.c.h.b16 %v1922
    %v2241 = vunpack.c.l.b16 %v1923
    %v2242 = vunpack.c.h.b16 %v1923
    %v2243 = vunpack.c.l.b16 %v1924
    %v2244 = vunpack.c.h.b16 %v1924
    %v2245 = vunpack.c.l.b16 %v1925
    %v2246 = vunpack.c.h.b16 %v1925
    %v2247 = vunpack.c.l.b16 %v1926
    %v2248 = vunpack.c.h.b16 %v1926
    %v2249 = vunpack.c.l.b16 %v1927
    %v2250 = vunpack.c.h.b16 %v1927
    %v2251 = vunpack.c.l.b16 %v1928
    %v2252 = vunpack.c.h.b16 %v1928
    %v2253 = vunpack.c.l.b16 %v1929
    %v2254 = vunpack.c.h.b16 %v1929
    %v2255 = vunpack.c.l.b16 %v1930
    %v2256 = vunpack.c.h.b16 %v1930
    %v2257 = vunpack.c.l.b16 %v1931
    %v2258 = vunpack.c.h.b16 %v1931
    %v2259 = vunpack.c.l.b16 %v1932
    %v2260 = vunpack.c.h.b16 %v1932
    %v2261 = vunpack.c.l.b16 %v1933
    %v2262 = vunpack.c.h.b16 %v1933
    %v2263 = vunpack.c.l.b16 %v1934
    %v2264 = vunpack.c.h.b16 %v1934
    %v2265 = vunpack.c.l.b16 %v1935
    %v2266 = vunpack.c.h.b16 %v1935
    %v2267 = vunpack.c.l.b16 %v1936
    %v2268 = vunpack.c.h.b16 %v1936
    %v2269 = vunpack.c.l.b16 %v1937
    %v2270 = vunpack.c.h.b16 %v1937
    %v2271 = vunpack.c.l.b16 %v1938
    %v2272 = vunpack.c.h.b16 %v1938
    %v2273 = vunpack.c.l.b16 %v1939
    %v2274 = vunpack.c.h.b16 %v1939
    %v2275 = vunpack.c.l.b16 %v1940
    %v2276 = vunpack.c.h.b16 %v1940
    %v2277 = vunpack.c.l.b16 %v1941
    %v2278 = vunpack.c.h.b16 %v1941
    %v2279 = vunpack.c.l.b16 %v1942
    %v2280 = vunpack.c.h.b16 %v1942
    %v2281 = vunpack.c.l.b16 %v1943
    %v2282 = vunpack.c.h.b16 %v1943
    %v2283 = vunpack.c.l.b16 %v1944
    %v2284 = vunpack.c.h.b16 %v1944
    %v2285 = vunpack.c.l.b16 %v1945
    %v2286 = vunpack.c.h.b16 %v1945
    %v2287 = vunpack.c.l.b16 %v1946
    %v2288 = vunpack.c.h.b16 %v1946
    %v2289 = vunpack.c.l.b16 %v1947
    %v2290 = vunpack.c.h.b16 %v1947
    %v2291 = vunpack.c.l.b16 %v1948
    %v2292 = vunpack.c.h.b16 %v1948
    %v2293 = vunpack.c.l.b16 %v1949
    %v2294 = vunpack.c.h.b16 %v1949
    %v2295 = vunpack.c.l.b16 %v1950
    %v2296 = vunpack.c.h.b16 %v1950
    %v2297 = vunpack.c.l.b16 %v1951
    %v2298 = vunpack.c.h.b16 %v1951
    %v2299 = vunpack.c.l.b16 %v1952
    %v2300 = vunpack.c.h.b16 %v1952
    %v2301 = vunpack.c.l.b16 %v1953
    %v2302 = vunpack.c.h.b16 %v1953
    %v2303 = vunpack.c.l.b16 %v1954
    %v2304 = vunpack.c.h.b16 %v1954
    %v2305 = vunpack.c.l.b16 %v1955
    %v2306 = vunpack.c.h.b16 %v1955
    %v2307 = vunpack.c.l.b16 %v1956
    %v2308 = vunpack.c.h.b16 %v1956
    %v2309 = vunpack.c.l.b16 %v1957
    %v2310 = vunpack.c.h.b16 %v1957
    %v2311 = vunpack.c.l.b16 %v1958
    %v2312 = vunpack.c.h.b16 %v1958
    %v2313 = vunpack.c.l.b16 %v1959
    %v2314 = vunpack.c.h.b16 %v1959
    %v2315 = vunpack.c.l.b16 %v1960
    %v2316 = vunpack.c.h.b16 %v1960
    %v2317 = vunpack.c.l.b16 %v1961
    %v2318 = vunpack.c.h.b16 %v1961
    %v2319 = vunpack.c.l.b16 %v1962
    %v2320 = vunpack.c.h.b16 %v1962
    %v2321 = vunpack.c.l.b16 %v1963
    %v2322 = vunpack.c.h.b16 %v1963
    %v2323 = vunpack.c.l.b16 %v1964
    %v2324 = vunpack.c.h.b16 %v1964
    %v2325 = vunpack.c.l.b16 %v1965
    %v2326 = vunpack.c.h.b16 %v1965
    %v2327 = vunpack.c.l.b16 %v1966
    %v2328 = vunpack.c.h.b16 %v1966
    %v2329 = vunpack.c.l.b16 %v1967
    %v2330 = vunpack.c.h.b16 %v1967
    %v2331 = vunpack.c.l.b16 %v1968
    %v2332 = vunpack.c.h.b16 %v1968
    %v2333 = vunpack.c.l.b16 %v1969
    %v2334 = vunpack.c.h.b16 %v1969
    %v2335 = vunpack.c.l.b16 %v1970
    %v2336 = vunpack.c.h.b16 %v1970
    %v2337 = vunpack.c.l.b16 %v1971
    %v2338 = vunpack.c.h.b16 %v1971
    %v2339 = vunpack.c.l.b16 %v1972
    %v2340 = vunpack.c.h.b16 %v1972
    %v2341 = vunpack.c.l.b16 %v1973
    %v2342 = vunpack.c.h.b16 %v1973
    %v2343 = vunpack.c.l.b16 %v1974
    %v2344 = vunpack.c.h.b16 %v1974
    %v2345 = vunpack.c.l.b16 %v1975
    %v2346 = vunpack.c.h.b16 %v1975
    %v2347 = vunpack.c.l.b16 %v1976
    %v2348 = vunpack.c.h.b16 %v1976
    %v2349 = vunpack.c.l.b16 %v1977
    %v2350 = vunpack.c.h.b16 %v1977
    %v2351 = vunpack.c.l.b16 %v1978
    %v2352 = vunpack.c.h.b16 %v1978
    %v2353 = vunpack.c.l.b16 %v1979
    %v2354 = vunpack.c.h.b16 %v1979
    %v2355 = vunpack.c.l.b16 %v1980
    %v2356 = vunpack.c.h.b16 %v1980
    %v2357 = vunpack.c.l.b16 %v1981
    %v2358 = vunpack.c.h.b16 %v1981
    %v2359 = vunpack.c.l.b16 %v1982
    %v2360 = vunpack.c.h.b16 %v1982
    %v2361 = vunpack.c.l.b16 %v1983
    %v2362 = vunpack.c.h.b16 %v1983
    %v2363 = vunpack.c.l.b16 %v1984
    %v2364 = vunpack.c.h.b16 %v1984
    %v2365 = vunpack.c.l.b16 %v1985
    %v2366 = vunpack.c.h.b16 %v1985
    %v2367 = vunpack.c.l.b16 %v1986
    %v2368 = vunpack.c.h.b16 %v1986
    %v2369 = vunpack.c.l.b16 %v1987
    %v2370 = vunpack.c.h.b16 %v1987
    %v2371 = vunpack.c.l.b16 %v1988
    %v2372 = vunpack.c.h.b16 %v1988
    %v2373 = vunpack.c.l.b16 %v1989
    %v2374 = vunpack.c.h.b16 %v1989
    %v2375 = vunpack.c.l.b16 %v1990
    %v2376 = vunpack.c.h.b16 %v1990
    %v2377 = vunpack.c.l.b16 %v1991
    %v2378 = vunpack.c.h.b16 %v1991
    %v2379 = vunpack.c.l.b16 %v1992
    %v2380 = vunpack.c.h.b16 %v1992
    %v2381 = vunpack.c.l.b16 %v1993
    %v2382 = vunpack.c.h.b16 %v1993
    %v2383 = vunpack.c.l.b16 %v1994
    %v2384 = vunpack.c.h.b16 %v1994
    %v2385 = vunpack.c.l.b16 %v1995
    %v2386 = vunpack.c.h.b16 %v1995
    %v2387 = vunpack.c.l.b16 %v1996
    %v2388 = vunpack.c.h.b16 %v1996
    %v2389 = vunpack.c.l.b16 %v1997
    %v2390 = vunpack.c.h.b16 %v1997
    %v2391 = vunpack.c.l.b16 %v1998
    %v2392 = vunpack.c.h.b16 %v1998
    %v2393 = vunpack.c.l.b16 %v1999
    %v2394 = vunpack.c.h.b16 %v1999
    %v2395 = vunpack.c.l.b16 %v2000
    %v2396 = vunpack.c.h.b16 %v2000
    %v2397 = vunpack.c.l.b16 %v2001
    %v2398 = vunpack.c.h.b16 %v2001
    %v2399 = vunpack.c.l.b16 %v2002
    %v2400 = vunpack.c.h.b16 %v2002
    %v2401 = vunpack.c.l.b16 %v2003
    %v2402 = vunpack.c.h.b16 %v2003
    %v2403 = vunpack.c.l.b16 %v2004
    %v2404 = vunpack.c.h.b16 %v2004
    %v2405 = vunpack.c.l.b16 %v2005
    %v2406 = vunpack.c.h.b16 %v2005
    %v2407 = vunpack.c.l.b16 %v2006
    %v2408 = vunpack.c.h.b16 %v2006
    %v2409 = vunpack.c.l.b16 %v2007
    %v2410 = vunpack.c.h.b16 %v2007
    %v2411 = vunpack.c.l.b16 %v2008
    %v2412 = vunpack.c.h.b16 %v2008
    %v2413 = vunpack.c.l.b16 %v2009
    %v2414 = vunpack.c.h.b16 %v2009
    %v2415 = vunpack.c.l.b16 %v2010
    %v2416 = vunpack.c.h.b16 %v2010
    %v2417 = vpack.c.b16 %v2165, %v2161
    %v2418 = vpack.c.b16 %v2166, %v2162
    %v2419 = vpack.c.b16 %v2167, %v2163
    %v2420 = vpack.c.b16 %v2168, %v2164
    %v2421 = vpack.c.b16 %v2173, %v2169
    %v2422 = vpack.c.b16 %v2174, %v2170
    %v2423 = vpack.c.b16 %v2175, %v2171
    %v2424 = vpack.c.b16 %v2176, %v2172
    %v2425 = vpack.c.b16 %v2181, %v2177
    %v2426 = vpack.c.b16 %v2182, %v2178
    %v2427 = vpack.c.b16 %v2183, %v2179
    %v2428 = vpack.c.b16 %v2184, %v2180
    %v2429 = vpack.c.b16 %v2189, %v2185
    %v2430 = vpack.c.b16 %v2190, %v2186
    %v2431 = vpack.c.b16 %v2191, %v2187
    %v2432 = vpack.c.b16 %v2192, %v2188
    %v2433 = vpack.c.b16 %v2197, %v2193
    %v2434 = vpack.c.b16 %v2198, %v2194
    %v2435 = vpack.c.b16 %v2199, %v2195
    %v2436 = vpack.c.b16 %v2200, %v2196
    %v2437 = vpack.c.b16 %v2205, %v2201
    %v2438 = vpack.c.b16 %v2206, %v2202
    %v2439 = vpack.c.b16 %v2207, %v2203
    %v2440 = vpack.c.b16 %v2208, %v2204
    %v2441 = vpack.c.b16 %v2213, %v2209
    %v2442 = vpack.c.b16 %v2214, %v2210
    %v2443 = vpack.c.b16 %v2215, %v2211
    %v2444 = vpack.c.b16 %v2216, %v2212
    %v2445 = vpack.c.b16 %v2221, %v2217
    %v2446 = vpack.c.b16 %v2222, %v2218
    %v2447 = vpack.c.b16 %v2223, %v2219
    %v2448 = vpack.c.b16 %v2224, %v2220
    %v2449 = vpack.c.b16 %v2229, %v2225
    %v2450 = vpack.c.b16 %v2230, %v2226
    %v2451 = vpack.c.b16 %v2231, %v2227
    %v2452 = vpack.c.b16 %v2232, %v2228
    %v2453 = vpack.c.b16 %v2237, %v2233
    %v2454 = vpack.c.b16 %v2238, %v2234
    %v2455 = vpack.c.b16 %v2239, %v2235
    %v2456 = vpack.c.b16 %v2240, %v2236
    %v2457 = vpack.c.b16 %v2245, %v2241
    %v2458 = vpack.c.b16 %v2246, %v2242
    %v2459 = vpack.c.b16 %v2247, %v2243
    %v2460 = vpack.c.b16 %v2248, %v2244
    %v2461 = vpack.c.b16 %v2253, %v2249
    %v2462 = vpack.c.b16 %v2254, %v2250
    %v2463 = vpack.c.b16 %v2255, %v2251
    %v2464 = vpack.c.b16 %v2256, %v2252
    %v2465 = vpack.c.b16 %v2261, %v2257
    %v2466 = vpack.c.b16 %v2262, %v2258
    %v2467 = vpack.c.b16 %v2263, %v2259
    %v2468 = vpack.c.b16 %v2264, %v2260
    %v2469 = vpack.c.b16 %v2269, %v2265
    %v2470 = vpack.c.b16 %v2270, %v2266
    %v2471 = vpack.c.b16 %v2271, %v2267
    %v2472 = vpack.c.b16 %v2272, %v2268
    %v2473 = vpack.c.b16 %v2277, %v2273
    %v2474 = vpack.c.b16 %v2278, %v2274
    %v2475 = vpack.c.b16 %v2279, %v2275
    %v2476 = vpack.c.b16 %v2280, %v2276
    %v2477 = vpack.c.b16 %v2285, %v2281
    %v2478 = vpack.c.b16 %v2286, %v2282
    %v2479 = vpack.c.b16 %v2287, %v2283
    %v2480 = vpack.c.b16 %v2288, %v2284
    %v2481 = vpack.c.b16 %v2293, %v2289
    %v2482 = vpack.c.b16 %v2294, %v2290
    %v2483 = vpack.c.b16 %v2295, %v2291
    %v2484 = vpack.c.b16 %v2296, %v2292
    %v2485 = vpack.c.b16 %v2301, %v2297
    %v2486 = vpack.c.b16 %v2302, %v2298
    %v2487 = vpack.c.b16 %v2303, %v2299
    %v2488 = vpack.c.b16 %v2304, %v2300
    %v2489 = vpack.c.b16 %v2309, %v2305
    %v2490 = vpack.c.b16 %v2310, %v2306
    %v2491 = vpack.c.b16 %v2311, %v2307
    %v2492 = vpack.c.b16 %v2312, %v2308
    %v2493 = vpack.c.b16 %v2317, %v2313
    %v2494 = vpack.c.b16 %v2318, %v2314
    %v2495 = vpack.c.b16 %v2319, %v2315
    %v2496 = vpack.c.b16 %v2320, %v2316
    %v2497 = vpack.c.b16 %v2325, %v2321
    %v2498 = vpack.c.b16 %v2326, %v2322
    %v2499 = vpack.c.b16 %v2327, %v2323
    %v2500 = vpack.c.b16 %v2328, %v2324
    %v2501 = vpack.c.b16 %v2333, %v2329
    %v2502 = vpack.c.b16 %v2334, %v2330
    %v2503 = vpack.c.b16 %v2335, %v2331
    %v2504 = vpack.c.b16 %v2336, %v2332
    %v2505 = vpack.c.b16 %v2341, %v2337
    %v2506 = vpack.c.b16 %v2342, %v2338
    %v2507 = vpack.c.b16 %v2343, %v2339
    %v2508 = vpack.c.b16 %v2344, %v2340
    %v2509 = vpack.c.b16 %v2349, %v2345
    %v2510 = vpack.c.b16 %v2350, %v2346
    %v2511 = vpack.c.b16 %v2351, %v2347
    %v2512 = vpack.c.b16 %v2352, %v2348
    %v2513 = vpack.c.b16 %v2357, %v2353
    %v2514 = vpack.c.b16 %v2358, %v2354
    %v2515 = vpack.c.b16 %v2359, %v2355
    %v2516 = vpack.c.b16 %v2360, %v2356
    %v2517 = vpack.c.b16 %v2365, %v2361
    %v2518 = vpack.c.b16 %v2366, %v2362
    %v2519 = vpack.c.b16 %v2367, %v2363
    %v2520 = vpack.c.b16 %v2368, %v2364
    %v2521 = vpack.c.b16 %v2373, %v2369
    %v2522 = vpack.c.b16 %v2374, %v2370
    %v2523 = vpack.c.b16 %v2375, %v2371
    %v2524 = vpack.c.b16 %v2376, %v2372
    %v2525 = vpack.c.b16 %v2381, %v2377
    %v2526 = vpack.c.b16 %v2382, %v2378
    %v2527 = vpack.c.b16 %v2383, %v2379
    %v2528 = vpack.c.b16 %v2384, %v2380
    %v2529 = vpack.c.b16 %v2389, %v2385
    %v2530 = vpack.c.b16 %v2390, %v2386
    %v2531 = vpack.c.b16 %v2391, %v2387
    %v2532 = vpack.c.b16 %v2392, %v2388
    %v2533 = vpack.c.b16 %v2397, %v2393
    %v2534 = vpack.c.b16 %v2398, %v2394
    %v2535 = vpack.c.b16 %v2399, %v2395
    %v2536 = vpack.c.b16 %v2400, %v2396
    %v2537 = vpack.c.b16 %v2405, %v2401
    %v2538 = vpack.c.b16 %v2406, %v2402
    %v2539 = vpack.c.b16 %v2407, %v2403
    %v2540 = vpack.c.b16 %v2408, %v2404
    %v2541 = vpack.c.b16 %v2413, %v2409
    %v2542 = vpack.c.b16 %v2414, %v2410
    %v2543 = vpack.c.b16 %v2415, %v2411
    %v2544 = vpack.c.b16 %v2416, %v2412
    %2673 = vmatprep.subr.bf16.mxu0 %v2418
    %2674 = vmatpush1.bf16.msra.mxu0 %v2417
    %2675 = vmatprep.subr.bf16.mxu0 %v2422
    %2676 = vmatpush1.bf16.msra.mxu0 %v2421
    %2677 = vmatprep.subr.bf16.mxu0 %v2426
    %2678 = vmatpush1.bf16.msra.mxu0 %v2425
    %2679 = vmatprep.subr.bf16.mxu0 %v2430
    %2680 = vmatpush1.bf16.msra.mxu0 %v2429
    %2681 = vmatprep.subr.bf16.mxu0 %v2434
    %2682 = vmatpush1.bf16.msra.mxu0 %v2433
    %2683 = vmatprep.subr.bf16.mxu0 %v2438
    %2684 = vmatpush1.bf16.msra.mxu0 %v2437
    %2685 = vmatprep.subr.bf16.mxu0 %v2442
    %2686 = vmatpush1.bf16.msra.mxu0 %v2441
    %2687 = vmatprep.subr.bf16.mxu0 %v2446
    %2688 = vmatpush1.bf16.msra.mxu0 %v2445
    %2689 = vmatprep.subr.bf16.mxu0 %v2450
    %2690 = vmatpush1.bf16.msra.mxu0 %v2449
    %2691 = vmatprep.subr.bf16.mxu0 %v2454
    %2692 = vmatpush1.bf16.msra.mxu0 %v2453
    %2693 = vmatprep.subr.bf16.mxu0 %v2458
    %2694 = vmatpush1.bf16.msra.mxu0 %v2457
    %2695 = vmatprep.subr.bf16.mxu0 %v2462
    %2696 = vmatpush1.bf16.msra.mxu0 %v2461
    %2697 = vmatprep.subr.bf16.mxu0 %v2466
    %2698 = vmatpush1.bf16.msra.mxu0 %v2465
    %2699 = vmatprep.subr.bf16.mxu0 %v2470
    %2700 = vmatpush1.bf16.msra.mxu0 %v2469
    %2701 = vmatprep.subr.bf16.mxu0 %v2474
    %2702 = vmatpush1.bf16.msra.mxu0 %v2473
    %2703 = vmatprep.subr.bf16.mxu0 %v2478
    %2704 = vmatpush1.bf16.msra.mxu0 %v2477
    %2705 = vmatprep.mubr.bf16.mxu0 %v1880
    %2706 = vmatmul.mubr.bf16.gmra.mrb[0].mxu0 %v1879
    %v2707 = vpop.f32.mrb[0].mxu0
    %v2708 = vadd.f32 %v2016, %v2707
    %v2709 = vpop.f32.mrb[0].mxu0
    %v2710 = vadd.f32 %v2020, %v2709
    %v2711 = vpop.f32.mrb[0].mxu0
    %v2712 = vadd.f32 %v2016, %v2711
    %v2713 = vpop.f32.mrb[0].mxu0
    %v2714 = vadd.f32 %v2020, %v2713
    %2715 = vdwg.mxu0
    %2716 = vmatprep.subr.bf16.mxu0 %v2482
    %2717 = vmatpush1.bf16.msra.mxu0 %v2481
    %2718 = vmatprep.subr.bf16.mxu0 %v2486
    %2719 = vmatpush1.bf16.msra.mxu0 %v2485
    %2720 = vmatprep.subr.bf16.mxu0 %v2490
    %2721 = vmatpush1.bf16.msra.mxu0 %v2489
    %2722 = vmatprep.subr.bf16.mxu0 %v2494
    %2723 = vmatpush1.bf16.msra.mxu0 %v2493
    %2724 = vmatprep.subr.bf16.mxu0 %v2498
    %2725 = vmatpush1.bf16.msra.mxu0 %v2497
    %2726 = vmatprep.subr.bf16.mxu0 %v2502
    %2727 = vmatpush1.bf16.msra.mxu0 %v2501
    %2728 = vmatprep.subr.bf16.mxu0 %v2506
    %2729 = vmatpush1.bf16.msra.mxu0 %v2505
    %2730 = vmatprep.subr.bf16.mxu0 %v2510
    %2731 = vmatpush1.bf16.msra.mxu0 %v2509
    %2732 = vmatprep.subr.bf16.mxu0 %v2514
    %2733 = vmatpush1.bf16.msra.mxu0 %v2513
    %2734 = vmatprep.subr.bf16.mxu0 %v2518
    %2735 = vmatpush1.bf16.msra.mxu0 %v2517
    %2736 = vmatprep.subr.bf16.mxu0 %v2522
    %2737 = vmatpush1.bf16.msra.mxu0 %v2521
    %2738 = vmatprep.subr.bf16.mxu0 %v2526
    %2739 = vmatpush1.bf16.msra.mxu0 %v2525
    %2740 = vmatprep.subr.bf16.mxu0 %v2530
    %2741 = vmatpush1.bf16.msra.mxu0 %v2529
    %2742 = vmatprep.subr.bf16.mxu0 %v2534
    %2743 = vmatpush1.bf16.msra.mxu0 %v2533
    %2744 = vmatprep.subr.bf16.mxu0 %v2538
    %2745 = vmatpush1.bf16.msra.mxu0 %v2537
    %2746 = vmatprep.subr.bf16.mxu0 %v2542
    %2747 = vmatpush1.bf16.msra.mxu0 %v2541
    %2748 = vmatprep.mubr.bf16.mxu0 %v1882
    %2749 = vmatmul.mubr.bf16.gmra.mrb[0].mxu0 %v1881
    %v2750 = vpop.f32.mrb[0].mxu0
    %v2751 = vadd.f32 %v2708, %v2750
    %v2752 = vpop.f32.mrb[0].mxu0
    %v2753 = vadd.f32 %v2710, %v2752
    %v2754 = vpop.f32.mrb[0].mxu0
    %v2755 = vadd.f32 %v2712, %v2754
    %v2756 = vpop.f32.mrb[0].mxu0
    %v2757 = vadd.f32 %v2714, %v2756
    %2758 = vdwg.mxu0
    %2759 = vmatprep.subr.bf16.mxu0 %v2420
    %2760 = vmatpush1.bf16.msra.mxu0 %v2419
    %2761 = vmatprep.subr.bf16.mxu0 %v2424
    %2762 = vmatpush1.bf16.msra.mxu0 %v2423
    %2763 = vmatprep.subr.bf16.mxu0 %v2428
    %2764 = vmatpush1.bf16.msra.mxu0 %v2427
    %2765 = vmatprep.subr.bf16.mxu0 %v2432
    %2766 = vmatpush1.bf16.msra.mxu0 %v2431
    %2767 = vmatprep.subr.bf16.mxu0 %v2436
    %2768 = vmatpush1.bf16.msra.mxu0 %v2435
    %2769 = vmatprep.subr.bf16.mxu0 %v2440
    %2770 = vmatpush1.bf16.msra.mxu0 %v2439
    %2771 = vmatprep.subr.bf16.mxu0 %v2444
    %2772 = vmatpush1.bf16.msra.mxu0 %v2443
    %2773 = vmatprep.subr.bf16.mxu0 %v2448
    %2774 = vmatpush1.bf16.msra.mxu0 %v2447
    %2775 = vmatprep.subr.bf16.mxu0 %v2452
    %2776 = vmatpush1.bf16.msra.mxu0 %v2451
    %2777 = vmatprep.subr.bf16.mxu0 %v2456
    %2778 = vmatpush1.bf16.msra.mxu0 %v2455
    %2779 = vmatprep.subr.bf16.mxu0 %v2460
    %2780 = vmatpush1.bf16.msra.mxu0 %v2459
    %2781 = vmatprep.subr.bf16.mxu0 %v2464
    %2782 = vmatpush1.bf16.msra.mxu0 %v2463
    %2783 = vmatprep.subr.bf16.mxu0 %v2468
    %2784 = vmatpush1.bf16.msra.mxu0 %v2467
    %2785 = vmatprep.subr.bf16.mxu0 %v2472
    %2786 = vmatpush1.bf16.msra.mxu0 %v2471
    %2787 = vmatprep.subr.bf16.mxu0 %v2476
    %2788 = vmatpush1.bf16.msra.mxu0 %v2475
    %2789 = vmatprep.subr.bf16.mxu0 %v2480
    %2790 = vmatpush1.bf16.msra.mxu0 %v2479
    %2791 = vmatprep.mubr.bf16.mxu0 %v1880
    %2792 = vmatmul.mubr.bf16.gmra.mrb[0].mxu0 %v1879
    %v2793 = vpop.f32.mrb[0].mxu0
    %v2794 = vadd.f32 %v2024, %v2793
    %v2795 = vpop.f32.mrb[0].mxu0
    %v2796 = vadd.f32 %v2028, %v2795
    %v2797 = vpop.f32.mrb[0].mxu0
    %v2798 = vadd.f32 %v2024, %v2797
    %v2799 = vpop.f32.mrb[0].mxu0
    %v2800 = vadd.f32 %v2028, %v2799
    %2801 = vdwg.mxu0
    %2802 = vmatprep.subr.bf16.mxu0 %v2484
    %2803 = vmatpush1.bf16.msra.mxu0 %v2483
    %2804 = vmatprep.subr.bf16.mxu0 %v2488
    %2805 = vmatpush1.bf16.msra.mxu0 %v2487
    %2806 = vmatprep.subr.bf16.mxu0 %v2492
    %2807 = vmatpush1.bf16.msra.mxu0 %v2491
    %2808 = vmatprep.subr.bf16.mxu0 %v2496
    %2809 = vmatpush1.bf16.msra.mxu0 %v2495
    %2810 = vmatprep.subr.bf16.mxu0 %v2500
    %2811 = vmatpush1.bf16.msra.mxu0 %v2499
    %2812 = vmatprep.subr.bf16.mxu0 %v2504
    %2813 = vmatpush1.bf16.msra.mxu0 %v2503
    %2814 = vmatprep.subr.bf16.mxu0 %v2508
    %2815 = vmatpush1.bf16.msra.mxu0 %v2507
    %2816 = vmatprep.subr.bf16.mxu0 %v2512
    %2817 = vmatpush1.bf16.msra.mxu0 %v2511
    %2818 = vmatprep.subr.bf16.mxu0 %v2516
    %2819 = vmatpush1.bf16.msra.mxu0 %v2515
    %2820 = vmatprep.subr.bf16.mxu0 %v2520
    %2821 = vmatpush1.bf16.msra.mxu0 %v2519
    %2822 = vmatprep.subr.bf16.mxu0 %v2524
    %2823 = vmatpush1.bf16.msra.mxu0 %v2523
    %2824 = vmatprep.subr.bf16.mxu0 %v2528
    %2825 = vmatpush1.bf16.msra.mxu0 %v2527
    %2826 = vmatprep.subr.bf16.mxu0 %v2532
    %2827 = vmatpush1.bf16.msra.mxu0 %v2531
    %2828 = vmatprep.subr.bf16.mxu0 %v2536
    %2829 = vmatpush1.bf16.msra.mxu0 %v2535
    %2830 = vmatprep.subr.bf16.mxu0 %v2540
    %2831 = vmatpush1.bf16.msra.mxu0 %v2539
    %2832 = vmatprep.subr.bf16.mxu0 %v2544
    %2833 = vmatpush1.bf16.msra.mxu0 %v2543
    %2834 = vmatprep.mubr.bf16.mxu0 %v1882
    %2835 = vmatmul.mubr.bf16.gmra.mrb[0].mxu0 %v1881
    %v2836 = vpop.f32.mrb[0].mxu0
    %v2837 = vadd.f32 %v2794, %v2836
    %v2838 = vpop.f32.mrb[0].mxu0
    %v2839 = vadd.f32 %v2796, %v2838
    %v2840 = vpop.f32.mrb[0].mxu0
    %v2841 = vadd.f32 %v2798, %v2840
    %v2842 = vpop.f32.mrb[0].mxu0
    %v2843 = vadd.f32 %v2800, %v2842
    %2844 = vdwg.mxu0
    %v2845 = vmax.f32 %v2751, 0.0
    %v2846 = vmax.f32 %v2753, 0.0
    %v2847 = vmax.f32 %v2837, 0.0
    %v2848 = vmax.f32 %v2839, 0.0
    %v2849 = vmax.f32 %v2755, 0.0
    %v2850 = vmax.f32 %v2757, 0.0
    %v2851 = vmax.f32 %v2841, 0.0
    %v2852 = vmax.f32 %v2843, 0.0
    %v2853 = vpack.c.bf16 %v2849, %v2845
    %v2854 = vpack.c.bf16 %v2850, %v2846
    %v2855 = vpack.c.bf16 %v2851, %v2847
    %v2856 = vpack.c.bf16 %v2852, %v2848
    %v2857 = vld [vmem:[#allocation7] sm:$0xff]
    %v2858 = vld [vmem:[#allocation7 + $0x8] sm:$0xff]
    %v2859 = vld [vmem:[#allocation7 + $0x10] sm:$0xff]
    %v2860 = vld [vmem:[#allocation7 + $0x18] sm:$0xff]
    %v2861 = vld [vmem:[#allocation7 + $0x20] sm:$0xff]
    %v2862 = vld [vmem:[#allocation7 + $0x28] sm:$0xff]
    %v2863 = vld [vmem:[#allocation7 + $0x30] sm:$0xff]
    %v2864 = vld [vmem:[#allocation7 + $0x38] sm:$0xff]
    %v2865 = vld [vmem:[#allocation7 + $0x40] sm:$0xff]
    %v2866 = vld [vmem:[#allocation7 + $0x48] sm:$0xff]
    %v2867 = vld [vmem:[#allocation7 + $0x50] sm:$0xff]
    %v2868 = vld [vmem:[#allocation7 + $0x58] sm:$0xff]
    %v2869 = vld [vmem:[#allocation7 + $0x60] sm:$0xff]
    %v2870 = vld [vmem:[#allocation7 + $0x68] sm:$0xff]
    %v2871 = vld [vmem:[#allocation7 + $0x70] sm:$0xff]
    %v2872 = vld [vmem:[#allocation7 + $0x78] sm:$0xff]
    %v2873 = vld [vmem:[#allocation7 + $0x80] sm:$0xff]
    %v2874 = vld [vmem:[#allocation7 + $0x88] sm:$0xff]
    %v2875 = vld [vmem:[#allocation7 + $0x90] sm:$0xff]
    %v2876 = vld [vmem:[#allocation7 + $0x98] sm:$0xff]
    %v2877 = vld [vmem:[#allocation7 + $0xa0] sm:$0xff]
    %v2878 = vld [vmem:[#allocation7 + $0xa8] sm:$0xff]
    %v2879 = vld [vmem:[#allocation7 + $0xb0] sm:$0xff]
    %v2880 = vld [vmem:[#allocation7 + $0xb8] sm:$0xff]
    %v2881 = vld [vmem:[#allocation7 + $0xc0] sm:$0xff]
    %v2882 = vld [vmem:[#allocation7 + $0xc8] sm:$0xff]
    %v2883 = vld [vmem:[#allocation7 + $0xd0] sm:$0xff]
    %v2884 = vld [vmem:[#allocation7 + $0xd8] sm:$0xff]
    %v2885 = vld [vmem:[#allocation7 + $0xe0] sm:$0xff]
    %v2886 = vld [vmem:[#allocation7 + $0xe8] sm:$0xff]
    %v2887 = vld [vmem:[#allocation7 + $0xf0] sm:$0xff]
    %v2888 = vld [vmem:[#allocation7 + $0xf8] sm:$0xff]
    %v2889 = vld [vmem:[#allocation7 + $0x100] sm:$0xff]
    %v2890 = vld [vmem:[#allocation7 + $0x108] sm:$0xff]
    %v2891 = vld [vmem:[#allocation7 + $0x110] sm:$0xff]
    %v2892 = vld [vmem:[#allocation7 + $0x118] sm:$0xff]
    %v2893 = vld [vmem:[#allocation7 + $0x120] sm:$0xff]
    %v2894 = vld [vmem:[#allocation7 + $0x128] sm:$0xff]
    %v2895 = vld [vmem:[#allocation7 + $0x130] sm:$0xff]
    %v2896 = vld [vmem:[#allocation7 + $0x138] sm:$0xff]
    %v2897 = vld [vmem:[#allocation7 + $0x140] sm:$0xff]
    %v2898 = vld [vmem:[#allocation7 + $0x148] sm:$0xff]
    %v2899 = vld [vmem:[#allocation7 + $0x150] sm:$0xff]
    %v2900 = vld [vmem:[#allocation7 + $0x158] sm:$0xff]
    %v2901 = vld [vmem:[#allocation7 + $0x160] sm:$0xff]
    %v2902 = vld [vmem:[#allocation7 + $0x168] sm:$0xff]
    %v2903 = vld [vmem:[#allocation7 + $0x170] sm:$0xff]
    %v2904 = vld [vmem:[#allocation7 + $0x178] sm:$0xff]
    %v2905 = vld [vmem:[#allocation7 + $0x180] sm:$0xff]
    %v2906 = vld [vmem:[#allocation7 + $0x188] sm:$0xff]
    %v2907 = vld [vmem:[#allocation7 + $0x190] sm:$0xff]
    %v2908 = vld [vmem:[#allocation7 + $0x198] sm:$0xff]
    %v2909 = vld [vmem:[#allocation7 + $0x1a0] sm:$0xff]
    %v2910 = vld [vmem:[#allocation7 + $0x1a8] sm:$0xff]
    %v2911 = vld [vmem:[#allocation7 + $0x1b0] sm:$0xff]
    %v2912 = vld [vmem:[#allocation7 + $0x1b8] sm:$0xff]
    %v2913 = vld [vmem:[#allocation7 + $0x1c0] sm:$0xff]
    %v2914 = vld [vmem:[#allocation7 + $0x1c8] sm:$0xff]
    %v2915 = vld [vmem:[#allocation7 + $0x1d0] sm:$0xff]
    %v2916 = vld [vmem:[#allocation7 + $0x1d8] sm:$0xff]
    %v2917 = vld [vmem:[#allocation7 + $0x1e0] sm:$0xff]
    %v2918 = vld [vmem:[#allocation7 + $0x1e8] sm:$0xff]
    %v2919 = vld [vmem:[#allocation7 + $0x1f0] sm:$0xff]
    %v2920 = vld [vmem:[#allocation7 + $0x1f8] sm:$0xff]
    %v2921 = vld [vmem:[#allocation7 + $0x200] sm:$0xff]
    %v2922 = vld [vmem:[#allocation7 + $0x208] sm:$0xff]
    %v2923 = vld [vmem:[#allocation7 + $0x210] sm:$0xff]
    %v2924 = vld [vmem:[#allocation7 + $0x218] sm:$0xff]
    %v2925 = vld [vmem:[#allocation7 + $0x220] sm:$0xff]
    %v2926 = vld [vmem:[#allocation7 + $0x228] sm:$0xff]
    %v2927 = vld [vmem:[#allocation7 + $0x230] sm:$0xff]
    %v2928 = vld [vmem:[#allocation7 + $0x238] sm:$0xff]
    %v2929 = vld [vmem:[#allocation7 + $0x240] sm:$0xff]
    %v2930 = vld [vmem:[#allocation7 + $0x248] sm:$0xff]
    %v2931 = vld [vmem:[#allocation7 + $0x250] sm:$0xff]
    %v2932 = vld [vmem:[#allocation7 + $0x258] sm:$0xff]
    %v2933 = vld [vmem:[#allocation7 + $0x260] sm:$0xff]
    %v2934 = vld [vmem:[#allocation7 + $0x268] sm:$0xff]
    %v2935 = vld [vmem:[#allocation7 + $0x270] sm:$0xff]
    %v2936 = vld [vmem:[#allocation7 + $0x278] sm:$0xff]
    %v2937 = vld [vmem:[#allocation7 + $0x280] sm:$0xff]
    %v2938 = vld [vmem:[#allocation7 + $0x288] sm:$0xff]
    %v2939 = vld [vmem:[#allocation7 + $0x290] sm:$0xff]
    %v2940 = vld [vmem:[#allocation7 + $0x298] sm:$0xff]
    %v2941 = vld [vmem:[#allocation7 + $0x2a0] sm:$0xff]
    %v2942 = vld [vmem:[#allocation7 + $0x2a8] sm:$0xff]
    %v2943 = vld [vmem:[#allocation7 + $0x2b0] sm:$0xff]
    %v2944 = vld [vmem:[#allocation7 + $0x2b8] sm:$0xff]
    %v2945 = vld [vmem:[#allocation7 + $0x2c0] sm:$0xff]
    %v2946 = vld [vmem:[#allocation7 + $0x2c8] sm:$0xff]
    %v2947 = vld [vmem:[#allocation7 + $0x2d0] sm:$0xff]
    %v2948 = vld [vmem:[#allocation7 + $0x2d8] sm:$0xff]
    %v2949 = vld [vmem:[#allocation7 + $0x2e0] sm:$0xff]
    %v2950 = vld [vmem:[#allocation7 + $0x2e8] sm:$0xff]
    %v2951 = vld [vmem:[#allocation7 + $0x2f0] sm:$0xff]
    %v2952 = vld [vmem:[#allocation7 + $0x2f8] sm:$0xff]
    %v2953 = vld [vmem:[#allocation7 + $0x300] sm:$0xff]
    %v2954 = vld [vmem:[#allocation7 + $0x308] sm:$0xff]
    %v2955 = vld [vmem:[#allocation7 + $0x310] sm:$0xff]
    %v2956 = vld [vmem:[#allocation7 + $0x318] sm:$0xff]
    %v2957 = vld [vmem:[#allocation7 + $0x320] sm:$0xff]
    %v2958 = vld [vmem:[#allocation7 + $0x328] sm:$0xff]
    %v2959 = vld [vmem:[#allocation7 + $0x330] sm:$0xff]
    %v2960 = vld [vmem:[#allocation7 + $0x338] sm:$0xff]
    %v2961 = vld [vmem:[#allocation7 + $0x340] sm:$0xff]
    %v2962 = vld [vmem:[#allocation7 + $0x348] sm:$0xff]
    %v2963 = vld [vmem:[#allocation7 + $0x350] sm:$0xff]
    %v2964 = vld [vmem:[#allocation7 + $0x358] sm:$0xff]
    %v2965 = vld [vmem:[#allocation7 + $0x360] sm:$0xff]
    %v2966 = vld [vmem:[#allocation7 + $0x368] sm:$0xff]
    %v2967 = vld [vmem:[#allocation7 + $0x370] sm:$0xff]
    %v2968 = vld [vmem:[#allocation7 + $0x378] sm:$0xff]
    %v2969 = vld [vmem:[#allocation7 + $0x380] sm:$0xff]
    %v2970 = vld [vmem:[#allocation7 + $0x388] sm:$0xff]
    %v2971 = vld [vmem:[#allocation7 + $0x390] sm:$0xff]
    %v2972 = vld [vmem:[#allocation7 + $0x398] sm:$0xff]
    %v2973 = vld [vmem:[#allocation7 + $0x3a0] sm:$0xff]
    %v2974 = vld [vmem:[#allocation7 + $0x3a8] sm:$0xff]
    %v2975 = vld [vmem:[#allocation7 + $0x3b0] sm:$0xff]
    %v2976 = vld [vmem:[#allocation7 + $0x3b8] sm:$0xff]
    %v2977 = vld [vmem:[#allocation7 + $0x3c0] sm:$0xff]
    %v2978 = vld [vmem:[#allocation7 + $0x3c8] sm:$0xff]
    %v2979 = vld [vmem:[#allocation7 + $0x3d0] sm:$0xff]
    %v2980 = vld [vmem:[#allocation7 + $0x3d8] sm:$0xff]
    %v2981 = vld [vmem:[#allocation7 + $0x3e0] sm:$0xff]
    %v2982 = vld [vmem:[#allocation7 + $0x3e8] sm:$0xff]
    %v2983 = vld [vmem:[#allocation7 + $0x3f0] sm:$0xff]
    %v2984 = vld [vmem:[#allocation7 + $0x3f8] sm:$0xff]
    %v2985 = vld [vmem:[%s8] sm:$0xf]
    %v2987 = vlaneseq
    %v2988 = vshrl.u32 %v2987, 7
    %v2989 = vsub.s32 0, %v2988
    %v2990 = vrot.slane %v2985, %v2989
    %v2991 = vlaneseq
    %v2992 = vshrl.u32 %v2991, 7
    %v2993 = vsub.s32 1, %v2992
    %v2994 = vrot.slane %v2985, %v2993
    %v2995 = vlaneseq
    %v2996 = vshrl.u32 %v2995, 7
    %v2997 = vsub.s32 2, %v2996
    %v2998 = vrot.slane %v2985, %v2997
    %v2999 = vlaneseq
    %v3000 = vshrl.u32 %v2999, 7
    %v3001 = vsub.s32 3, %v3000
    %v3002 = vrot.slane %v2985, %v3001
    %v3135 = vunpack.c.l.b16 %v2857
    %v3136 = vunpack.c.h.b16 %v2857
    %v3137 = vunpack.c.l.b16 %v2858
    %v3138 = vunpack.c.h.b16 %v2858
    %v3139 = vunpack.c.l.b16 %v2859
    %v3140 = vunpack.c.h.b16 %v2859
    %v3141 = vunpack.c.l.b16 %v2860
    %v3142 = vunpack.c.h.b16 %v2860
    %v3143 = vunpack.c.l.b16 %v2861
    %v3144 = vunpack.c.h.b16 %v2861
    %v3145 = vunpack.c.l.b16 %v2862
    %v3146 = vunpack.c.h.b16 %v2862
    %v3147 = vunpack.c.l.b16 %v2863
    %v3148 = vunpack.c.h.b16 %v2863
    %v3149 = vunpack.c.l.b16 %v2864
    %v3150 = vunpack.c.h.b16 %v2864
    %v3151 = vunpack.c.l.b16 %v2865
    %v3152 = vunpack.c.h.b16 %v2865
    %v3153 = vunpack.c.l.b16 %v2866
    %v3154 = vunpack.c.h.b16 %v2866
    %v3155 = vunpack.c.l.b16 %v2867
    %v3156 = vunpack.c.h.b16 %v2867
    %v3157 = vunpack.c.l.b16 %v2868
    %v3158 = vunpack.c.h.b16 %v2868
    %v3159 = vunpack.c.l.b16 %v2869
    %v3160 = vunpack.c.h.b16 %v2869
    %v3161 = vunpack.c.l.b16 %v2870
    %v3162 = vunpack.c.h.b16 %v2870
    %v3163 = vunpack.c.l.b16 %v2871
    %v3164 = vunpack.c.h.b16 %v2871
    %v3165 = vunpack.c.l.b16 %v2872
    %v3166 = vunpack.c.h.b16 %v2872
    %v3167 = vunpack.c.l.b16 %v2873
    %v3168 = vunpack.c.h.b16 %v2873
    %v3169 = vunpack.c.l.b16 %v2874
    %v3170 = vunpack.c.h.b16 %v2874
    %v3171 = vunpack.c.l.b16 %v2875
    %v3172 = vunpack.c.h.b16 %v2875
    %v3173 = vunpack.c.l.b16 %v2876
    %v3174 = vunpack.c.h.b16 %v2876
    %v3175 = vunpack.c.l.b16 %v2877
    %v3176 = vunpack.c.h.b16 %v2877
    %v3177 = vunpack.c.l.b16 %v2878
    %v3178 = vunpack.c.h.b16 %v2878
    %v3179 = vunpack.c.l.b16 %v2879
    %v3180 = vunpack.c.h.b16 %v2879
    %v3181 = vunpack.c.l.b16 %v2880
    %v3182 = vunpack.c.h.b16 %v2880
    %v3183 = vunpack.c.l.b16 %v2881
    %v3184 = vunpack.c.h.b16 %v2881
    %v3185 = vunpack.c.l.b16 %v2882
    %v3186 = vunpack.c.h.b16 %v2882
    %v3187 = vunpack.c.l.b16 %v2883
    %v3188 = vunpack.c.h.b16 %v2883
    %v3189 = vunpack.c.l.b16 %v2884
    %v3190 = vunpack.c.h.b16 %v2884
    %v3191 = vunpack.c.l.b16 %v2885
    %v3192 = vunpack.c.h.b16 %v2885
    %v3193 = vunpack.c.l.b16 %v2886
    %v3194 = vunpack.c.h.b16 %v2886
    %v3195 = vunpack.c.l.b16 %v2887
    %v3196 = vunpack.c.h.b16 %v2887
    %v3197 = vunpack.c.l.b16 %v2888
    %v3198 = vunpack.c.h.b16 %v2888
    %v3199 = vunpack.c.l.b16 %v2889
    %v3200 = vunpack.c.h.b16 %v2889
    %v3201 = vunpack.c.l.b16 %v2890
    %v3202 = vunpack.c.h.b16 %v2890
    %v3203 = vunpack.c.l.b16 %v2891
    %v3204 = vunpack.c.h.b16 %v2891
    %v3205 = vunpack.c.l.b16 %v2892
    %v3206 = vunpack.c.h.b16 %v2892
    %v3207 = vunpack.c.l.b16 %v2893
    %v3208 = vunpack.c.h.b16 %v2893
    %v3209 = vunpack.c.l.b16 %v2894
    %v3210 = vunpack.c.h.b16 %v2894
    %v3211 = vunpack.c.l.b16 %v2895
    %v3212 = vunpack.c.h.b16 %v2895
    %v3213 = vunpack.c.l.b16 %v2896
    %v3214 = vunpack.c.h.b16 %v2896
    %v3215 = vunpack.c.l.b16 %v2897
    %v3216 = vunpack.c.h.b16 %v2897
    %v3217 = vunpack.c.l.b16 %v2898
    %v3218 = vunpack.c.h.b16 %v2898
    %v3219 = vunpack.c.l.b16 %v2899
    %v3220 = vunpack.c.h.b16 %v2899
    %v3221 = vunpack.c.l.b16 %v2900
    %v3222 = vunpack.c.h.b16 %v2900
    %v3223 = vunpack.c.l.b16 %v2901
    %v3224 = vunpack.c.h.b16 %v2901
    %v3225 = vunpack.c.l.b16 %v2902
    %v3226 = vunpack.c.h.b16 %v2902
    %v3227 = vunpack.c.l.b16 %v2903
    %v3228 = vunpack.c.h.b16 %v2903
    %v3229 = vunpack.c.l.b16 %v2904
    %v3230 = vunpack.c.h.b16 %v2904
    %v3231 = vunpack.c.l.b16 %v2905
    %v3232 = vunpack.c.h.b16 %v2905
    %v3233 = vunpack.c.l.b16 %v2906
    %v3234 = vunpack.c.h.b16 %v2906
    %v3235 = vunpack.c.l.b16 %v2907
    %v3236 = vunpack.c.h.b16 %v2907
    %v3237 = vunpack.c.l.b16 %v2908
    %v3238 = vunpack.c.h.b16 %v2908
    %v3239 = vunpack.c.l.b16 %v2909
    %v3240 = vunpack.c.h.b16 %v2909
    %v3241 = vunpack.c.l.b16 %v2910
    %v3242 = vunpack.c.h.b16 %v2910
    %v3243 = vunpack.c.l.b16 %v2911
    %v3244 = vunpack.c.h.b16 %v2911
    %v3245 = vunpack.c.l.b16 %v2912
    %v3246 = vunpack.c.h.b16 %v2912
    %v3247 = vunpack.c.l.b16 %v2913
    %v3248 = vunpack.c.h.b16 %v2913
    %v3249 = vunpack.c.l.b16 %v2914
    %v3250 = vunpack.c.h.b16 %v2914
    %v3251 = vunpack.c.l.b16 %v2915
    %v3252 = vunpack.c.h.b16 %v2915
    %v3253 = vunpack.c.l.b16 %v2916
    %v3254 = vunpack.c.h.b16 %v2916
    %v3255 = vunpack.c.l.b16 %v2917
    %v3256 = vunpack.c.h.b16 %v2917
    %v3257 = vunpack.c.l.b16 %v2918
    %v3258 = vunpack.c.h.b16 %v2918
    %v3259 = vunpack.c.l.b16 %v2919
    %v3260 = vunpack.c.h.b16 %v2919
    %v3261 = vunpack.c.l.b16 %v2920
    %v3262 = vunpack.c.h.b16 %v2920
    %v3263 = vunpack.c.l.b16 %v2921
    %v3264 = vunpack.c.h.b16 %v2921
    %v3265 = vunpack.c.l.b16 %v2922
    %v3266 = vunpack.c.h.b16 %v2922
    %v3267 = vunpack.c.l.b16 %v2923
    %v3268 = vunpack.c.h.b16 %v2923
    %v3269 = vunpack.c.l.b16 %v2924
    %v3270 = vunpack.c.h.b16 %v2924
    %v3271 = vunpack.c.l.b16 %v2925
    %v3272 = vunpack.c.h.b16 %v2925
    %v3273 = vunpack.c.l.b16 %v2926
    %v3274 = vunpack.c.h.b16 %v2926
    %v3275 = vunpack.c.l.b16 %v2927
    %v3276 = vunpack.c.h.b16 %v2927
    %v3277 = vunpack.c.l.b16 %v2928
    %v3278 = vunpack.c.h.b16 %v2928
    %v3279 = vunpack.c.l.b16 %v2929
    %v3280 = vunpack.c.h.b16 %v2929
    %v3281 = vunpack.c.l.b16 %v2930
    %v3282 = vunpack.c.h.b16 %v2930
    %v3283 = vunpack.c.l.b16 %v2931
    %v3284 = vunpack.c.h.b16 %v2931
    %v3285 = vunpack.c.l.b16 %v2932
    %v3286 = vunpack.c.h.b16 %v2932
    %v3287 = vunpack.c.l.b16 %v2933
    %v3288 = vunpack.c.h.b16 %v2933
    %v3289 = vunpack.c.l.b16 %v2934
    %v3290 = vunpack.c.h.b16 %v2934
    %v3291 = vunpack.c.l.b16 %v2935
    %v3292 = vunpack.c.h.b16 %v2935
    %v3293 = vunpack.c.l.b16 %v2936
    %v3294 = vunpack.c.h.b16 %v2936
    %v3295 = vunpack.c.l.b16 %v2937
    %v3296 = vunpack.c.h.b16 %v2937
    %v3297 = vunpack.c.l.b16 %v2938
    %v3298 = vunpack.c.h.b16 %v2938
    %v3299 = vunpack.c.l.b16 %v2939
    %v3300 = vunpack.c.h.b16 %v2939
    %v3301 = vunpack.c.l.b16 %v2940
    %v3302 = vunpack.c.h.b16 %v2940
    %v3303 = vunpack.c.l.b16 %v2941
    %v3304 = vunpack.c.h.b16 %v2941
    %v3305 = vunpack.c.l.b16 %v2942
    %v3306 = vunpack.c.h.b16 %v2942
    %v3307 = vunpack.c.l.b16 %v2943
    %v3308 = vunpack.c.h.b16 %v2943
    %v3309 = vunpack.c.l.b16 %v2944
    %v3310 = vunpack.c.h.b16 %v2944
    %v3311 = vunpack.c.l.b16 %v2945
    %v3312 = vunpack.c.h.b16 %v2945
    %v3313 = vunpack.c.l.b16 %v2946
    %v3314 = vunpack.c.h.b16 %v2946
    %v3315 = vunpack.c.l.b16 %v2947
    %v3316 = vunpack.c.h.b16 %v2947
    %v3317 = vunpack.c.l.b16 %v2948
    %v3318 = vunpack.c.h.b16 %v2948
    %v3319 = vunpack.c.l.b16 %v2949
    %v3320 = vunpack.c.h.b16 %v2949
    %v3321 = vunpack.c.l.b16 %v2950
    %v3322 = vunpack.c.h.b16 %v2950
    %v3323 = vunpack.c.l.b16 %v2951
    %v3324 = vunpack.c.h.b16 %v2951
    %v3325 = vunpack.c.l.b16 %v2952
    %v3326 = vunpack.c.h.b16 %v2952
    %v3327 = vunpack.c.l.b16 %v2953
    %v3328 = vunpack.c.h.b16 %v2953
    %v3329 = vunpack.c.l.b16 %v2954
    %v3330 = vunpack.c.h.b16 %v2954
    %v3331 = vunpack.c.l.b16 %v2955
    %v3332 = vunpack.c.h.b16 %v2955
    %v3333 = vunpack.c.l.b16 %v2956
    %v3334 = vunpack.c.h.b16 %v2956
    %v3335 = vunpack.c.l.b16 %v2957
    %v3336 = vunpack.c.h.b16 %v2957
    %v3337 = vunpack.c.l.b16 %v2958
    %v3338 = vunpack.c.h.b16 %v2958
    %v3339 = vunpack.c.l.b16 %v2959
    %v3340 = vunpack.c.h.b16 %v2959
    %v3341 = vunpack.c.l.b16 %v2960
    %v3342 = vunpack.c.h.b16 %v2960
    %v3343 = vunpack.c.l.b16 %v2961
    %v3344 = vunpack.c.h.b16 %v2961
    %v3345 = vunpack.c.l.b16 %v2962
    %v3346 = vunpack.c.h.b16 %v2962
    %v3347 = vunpack.c.l.b16 %v2963
    %v3348 = vunpack.c.h.b16 %v2963
    %v3349 = vunpack.c.l.b16 %v2964
    %v3350 = vunpack.c.h.b16 %v2964
    %v3351 = vunpack.c.l.b16 %v2965
    %v3352 = vunpack.c.h.b16 %v2965
    %v3353 = vunpack.c.l.b16 %v2966
    %v3354 = vunpack.c.h.b16 %v2966
    %v3355 = vunpack.c.l.b16 %v2967
    %v3356 = vunpack.c.h.b16 %v2967
    %v3357 = vunpack.c.l.b16 %v2968
    %v3358 = vunpack.c.h.b16 %v2968
    %v3359 = vunpack.c.l.b16 %v2969
    %v3360 = vunpack.c.h.b16 %v2969
    %v3361 = vunpack.c.l.b16 %v2970
    %v3362 = vunpack.c.h.b16 %v2970
    %v3363 = vunpack.c.l.b16 %v2971
    %v3364 = vunpack.c.h.b16 %v2971
    %v3365 = vunpack.c.l.b16 %v2972
    %v3366 = vunpack.c.h.b16 %v2972
    %v3367 = vunpack.c.l.b16 %v2973
    %v3368 = vunpack.c.h.b16 %v2973
    %v3369 = vunpack.c.l.b16 %v2974
    %v3370 = vunpack.c.h.b16 %v2974
    %v3371 = vunpack.c.l.b16 %v2975
    %v3372 = vunpack.c.h.b16 %v2975
    %v3373 = vunpack.c.l.b16 %v2976
    %v3374 = vunpack.c.h.b16 %v2976
    %v3375 = vunpack.c.l.b16 %v2977
    %v3376 = vunpack.c.h.b16 %v2977
    %v3377 = vunpack.c.l.b16 %v2978
    %v3378 = vunpack.c.h.b16 %v2978
    %v3379 = vunpack.c.l.b16 %v2979
    %v3380 = vunpack.c.h.b16 %v2979
    %v3381 = vunpack.c.l.b16 %v2980
    %v3382 = vunpack.c.h.b16 %v2980
    %v3383 = vunpack.c.l.b16 %v2981
    %v3384 = vunpack.c.h.b16 %v2981
    %v3385 = vunpack.c.l.b16 %v2982
    %v3386 = vunpack.c.h.b16 %v2982
    %v3387 = vunpack.c.l.b16 %v2983
    %v3388 = vunpack.c.h.b16 %v2983
    %v3389 = vunpack.c.l.b16 %v2984
    %v3390 = vunpack.c.h.b16 %v2984
    %v3391 = vpack.c.b16 %v3139, %v3135
    %v3392 = vpack.c.b16 %v3140, %v3136
    %v3393 = vpack.c.b16 %v3141, %v3137
    %v3394 = vpack.c.b16 %v3142, %v3138
    %v3395 = vpack.c.b16 %v3147, %v3143
    %v3396 = vpack.c.b16 %v3148, %v3144
    %v3397 = vpack.c.b16 %v3149, %v3145
    %v3398 = vpack.c.b16 %v3150, %v3146
    %v3399 = vpack.c.b16 %v3155, %v3151
    %v3400 = vpack.c.b16 %v3156, %v3152
    %v3401 = vpack.c.b16 %v3157, %v3153
    %v3402 = vpack.c.b16 %v3158, %v3154
    %v3403 = vpack.c.b16 %v3163, %v3159
    %v3404 = vpack.c.b16 %v3164, %v3160
    %v3405 = vpack.c.b16 %v3165, %v3161
    %v3406 = vpack.c.b16 %v3166, %v3162
    %v3407 = vpack.c.b16 %v3171, %v3167
    %v3408 = vpack.c.b16 %v3172, %v3168
    %v3409 = vpack.c.b16 %v3173, %v3169
    %v3410 = vpack.c.b16 %v3174, %v3170
    %v3411 = vpack.c.b16 %v3179, %v3175
    %v3412 = vpack.c.b16 %v3180, %v3176
    %v3413 = vpack.c.b16 %v3181, %v3177
    %v3414 = vpack.c.b16 %v3182, %v3178
    %v3415 = vpack.c.b16 %v3187, %v3183
    %v3416 = vpack.c.b16 %v3188, %v3184
    %v3417 = vpack.c.b16 %v3189, %v3185
    %v3418 = vpack.c.b16 %v3190, %v3186
    %v3419 = vpack.c.b16 %v3195, %v3191
    %v3420 = vpack.c.b16 %v3196, %v3192
    %v3421 = vpack.c.b16 %v3197, %v3193
    %v3422 = vpack.c.b16 %v3198, %v3194
    %v3423 = vpack.c.b16 %v3203, %v3199
    %v3424 = vpack.c.b16 %v3204, %v3200
    %v3425 = vpack.c.b16 %v3205, %v3201
    %v3426 = vpack.c.b16 %v3206, %v3202
    %v3427 = vpack.c.b16 %v3211, %v3207
    %v3428 = vpack.c.b16 %v3212, %v3208
    %v3429 = vpack.c.b16 %v3213, %v3209
    %v3430 = vpack.c.b16 %v3214, %v3210
    %v3431 = vpack.c.b16 %v3219, %v3215
    %v3432 = vpack.c.b16 %v3220, %v3216
    %v3433 = vpack.c.b16 %v3221, %v3217
    %v3434 = vpack.c.b16 %v3222, %v3218
    %v3435 = vpack.c.b16 %v3227, %v3223
    %v3436 = vpack.c.b16 %v3228, %v3224
    %v3437 = vpack.c.b16 %v3229, %v3225
    %v3438 = vpack.c.b16 %v3230, %v3226
    %v3439 = vpack.c.b16 %v3235, %v3231
    %v3440 = vpack.c.b16 %v3236, %v3232
    %v3441 = vpack.c.b16 %v3237, %v3233
    %v3442 = vpack.c.b16 %v3238, %v3234
    %v3443 = vpack.c.b16 %v3243, %v3239
    %v3444 = vpack.c.b16 %v3244, %v3240
    %v3445 = vpack.c.b16 %v3245, %v3241
    %v3446 = vpack.c.b16 %v3246, %v3242
    %v3447 = vpack.c.b16 %v3251, %v3247
    %v3448 = vpack.c.b16 %v3252, %v3248
    %v3449 = vpack.c.b16 %v3253, %v3249
    %v3450 = vpack.c.b16 %v3254, %v3250
    %v3451 = vpack.c.b16 %v3259, %v3255
    %v3452 = vpack.c.b16 %v3260, %v3256
    %v3453 = vpack.c.b16 %v3261, %v3257
    %v3454 = vpack.c.b16 %v3262, %v3258
    %v3455 = vpack.c.b16 %v3267, %v3263
    %v3456 = vpack.c.b16 %v3268, %v3264
    %v3457 = vpack.c.b16 %v3269, %v3265
    %v3458 = vpack.c.b16 %v3270, %v3266
    %v3459 = vpack.c.b16 %v3275, %v3271
    %v3460 = vpack.c.b16 %v3276, %v3272
    %v3461 = vpack.c.b16 %v3277, %v3273
    %v3462 = vpack.c.b16 %v3278, %v3274
    %v3463 = vpack.c.b16 %v3283, %v3279
    %v3464 = vpack.c.b16 %v3284, %v3280
    %v3465 = vpack.c.b16 %v3285, %v3281
    %v3466 = vpack.c.b16 %v3286, %v3282
    %v3467 = vpack.c.b16 %v3291, %v3287
    %v3468 = vpack.c.b16 %v3292, %v3288
    %v3469 = vpack.c.b16 %v3293, %v3289
    %v3470 = vpack.c.b16 %v3294, %v3290
    %v3471 = vpack.c.b16 %v3299, %v3295
    %v3472 = vpack.c.b16 %v3300, %v3296
    %v3473 = vpack.c.b16 %v3301, %v3297
    %v3474 = vpack.c.b16 %v3302, %v3298
    %v3475 = vpack.c.b16 %v3307, %v3303
    %v3476 = vpack.c.b16 %v3308, %v3304
    %v3477 = vpack.c.b16 %v3309, %v3305
    %v3478 = vpack.c.b16 %v3310, %v3306
    %v3479 = vpack.c.b16 %v3315, %v3311
    %v3480 = vpack.c.b16 %v3316, %v3312
    %v3481 = vpack.c.b16 %v3317, %v3313
    %v3482 = vpack.c.b16 %v3318, %v3314
    %v3483 = vpack.c.b16 %v3323, %v3319
    %v3484 = vpack.c.b16 %v3324, %v3320
    %v3485 = vpack.c.b16 %v3325, %v3321
    %v3486 = vpack.c.b16 %v3326, %v3322
    %v3487 = vpack.c.b16 %v3331, %v3327
    %v3488 = vpack.c.b16 %v3332, %v3328
    %v3489 = vpack.c.b16 %v3333, %v3329
    %v3490 = vpack.c.b16 %v3334, %v3330
    %v3491 = vpack.c.b16 %v3339, %v3335
    %v3492 = vpack.c.b16 %v3340, %v3336
    %v3493 = vpack.c.b16 %v3341, %v3337
    %v3494 = vpack.c.b16 %v3342, %v3338
    %v3495 = vpack.c.b16 %v3347, %v3343
    %v3496 = vpack.c.b16 %v3348, %v3344
    %v3497 = vpack.c.b16 %v3349, %v3345
    %v3498 = vpack.c.b16 %v3350, %v3346
    %v3499 = vpack.c.b16 %v3355, %v3351
    %v3500 = vpack.c.b16 %v3356, %v3352
    %v3501 = vpack.c.b16 %v3357, %v3353
    %v3502 = vpack.c.b16 %v3358, %v3354
    %v3503 = vpack.c.b16 %v3363, %v3359
    %v3504 = vpack.c.b16 %v3364, %v3360
    %v3505 = vpack.c.b16 %v3365, %v3361
    %v3506 = vpack.c.b16 %v3366, %v3362
    %v3507 = vpack.c.b16 %v3371, %v3367
    %v3508 = vpack.c.b16 %v3372, %v3368
    %v3509 = vpack.c.b16 %v3373, %v3369
    %v3510 = vpack.c.b16 %v3374, %v3370
    %v3511 = vpack.c.b16 %v3379, %v3375
    %v3512 = vpack.c.b16 %v3380, %v3376
    %v3513 = vpack.c.b16 %v3381, %v3377
    %v3514 = vpack.c.b16 %v3382, %v3378
    %v3515 = vpack.c.b16 %v3387, %v3383
    %v3516 = vpack.c.b16 %v3388, %v3384
    %v3517 = vpack.c.b16 %v3389, %v3385
    %v3518 = vpack.c.b16 %v3390, %v3386
    %3647 = vmatprep.subr.bf16.mxu0 %v3392
    %3648 = vmatpush1.bf16.msra.mxu0 %v3391
    %3649 = vmatprep.subr.bf16.mxu0 %v3396
    %3650 = vmatpush1.bf16.msra.mxu0 %v3395
    %3651 = vmatprep.subr.bf16.mxu0 %v3400
    %3652 = vmatpush1.bf16.msra.mxu0 %v3399
    %3653 = vmatprep.subr.bf16.mxu0 %v3404
    %3654 = vmatpush1.bf16.msra.mxu0 %v3403
    %3655 = vmatprep.subr.bf16.mxu0 %v3408
    %3656 = vmatpush1.bf16.msra.mxu0 %v3407
    %3657 = vmatprep.subr.bf16.mxu0 %v3412
    %3658 = vmatpush1.bf16.msra.mxu0 %v3411
    %3659 = vmatprep.subr.bf16.mxu0 %v3416
    %3660 = vmatpush1.bf16.msra.mxu0 %v3415
    %3661 = vmatprep.subr.bf16.mxu0 %v3420
    %3662 = vmatpush1.bf16.msra.mxu0 %v3419
    %3663 = vmatprep.subr.bf16.mxu0 %v3424
    %3664 = vmatpush1.bf16.msra.mxu0 %v3423
    %3665 = vmatprep.subr.bf16.mxu0 %v3428
    %3666 = vmatpush1.bf16.msra.mxu0 %v3427
    %3667 = vmatprep.subr.bf16.mxu0 %v3432
    %3668 = vmatpush1.bf16.msra.mxu0 %v3431
    %3669 = vmatprep.subr.bf16.mxu0 %v3436
    %3670 = vmatpush1.bf16.msra.mxu0 %v3435
    %3671 = vmatprep.subr.bf16.mxu0 %v3440
    %3672 = vmatpush1.bf16.msra.mxu0 %v3439
    %3673 = vmatprep.subr.bf16.mxu0 %v3444
    %3674 = vmatpush1.bf16.msra.mxu0 %v3443
    %3675 = vmatprep.subr.bf16.mxu0 %v3448
    %3676 = vmatpush1.bf16.msra.mxu0 %v3447
    %3677 = vmatprep.subr.bf16.mxu0 %v3452
    %3678 = vmatpush1.bf16.msra.mxu0 %v3451
    %3679 = vmatprep.mubr.bf16.mxu0 %v2854
    %3680 = vmatmul.mubr.bf16.gmra.mrb[0].mxu0 %v2853
    %v3681 = vpop.f32.mrb[0].mxu0
    %v3682 = vadd.f32 %v2990, %v3681
    %v3683 = vpop.f32.mrb[0].mxu0
    %v3684 = vadd.f32 %v2994, %v3683
    %v3685 = vpop.f32.mrb[0].mxu0
    %v3686 = vadd.f32 %v2990, %v3685
    %v3687 = vpop.f32.mrb[0].mxu0
    %v3688 = vadd.f32 %v2994, %v3687
    %3689 = vdwg.mxu0
    %3690 = vmatprep.subr.bf16.mxu0 %v3456
    %3691 = vmatpush1.bf16.msra.mxu0 %v3455
    %3692 = vmatprep.subr.bf16.mxu0 %v3460
    %3693 = vmatpush1.bf16.msra.mxu0 %v3459
    %3694 = vmatprep.subr.bf16.mxu0 %v3464
    %3695 = vmatpush1.bf16.msra.mxu0 %v3463
    %3696 = vmatprep.subr.bf16.mxu0 %v3468
    %3697 = vmatpush1.bf16.msra.mxu0 %v3467
    %3698 = vmatprep.subr.bf16.mxu0 %v3472
    %3699 = vmatpush1.bf16.msra.mxu0 %v3471
    %3700 = vmatprep.subr.bf16.mxu0 %v3476
    %3701 = vmatpush1.bf16.msra.mxu0 %v3475
    %3702 = vmatprep.subr.bf16.mxu0 %v3480
    %3703 = vmatpush1.bf16.msra.mxu0 %v3479
    %3704 = vmatprep.subr.bf16.mxu0 %v3484
    %3705 = vmatpush1.bf16.msra.mxu0 %v3483
    %3706 = vmatprep.subr.bf16.mxu0 %v3488
    %3707 = vmatpush1.bf16.msra.mxu0 %v3487
    %3708 = vmatprep.subr.bf16.mxu0 %v3492
    %3709 = vmatpush1.bf16.msra.mxu0 %v3491
    %3710 = vmatprep.subr.bf16.mxu0 %v3496
    %3711 = vmatpush1.bf16.msra.mxu0 %v3495
    %3712 = vmatprep.subr.bf16.mxu0 %v3500
    %3713 = vmatpush1.bf16.msra.mxu0 %v3499
    %3714 = vmatprep.subr.bf16.mxu0 %v3504
    %3715 = vmatpush1.bf16.msra.mxu0 %v3503
    %3716 = vmatprep.subr.bf16.mxu0 %v3508
    %3717 = vmatpush1.bf16.msra.mxu0 %v3507
    %3718 = vmatprep.subr.bf16.mxu0 %v3512
    %3719 = vmatpush1.bf16.msra.mxu0 %v3511
    %3720 = vmatprep.subr.bf16.mxu0 %v3516
    %3721 = vmatpush1.bf16.msra.mxu0 %v3515
    %3722 = vmatprep.mubr.bf16.mxu0 %v2856
    %3723 = vmatmul.mubr.bf16.gmra.mrb[0].mxu0 %v2855
    %v3724 = vpop.f32.mrb[0].mxu0
    %v3725 = vadd.f32 %v3682, %v3724
    %v3726 = vpop.f32.mrb[0].mxu0
    %v3727 = vadd.f32 %v3684, %v3726
    %v3728 = vpop.f32.mrb[0].mxu0
    %v3729 = vadd.f32 %v3686, %v3728
    %v3730 = vpop.f32.mrb[0].mxu0
    %v3731 = vadd.f32 %v3688, %v3730
    %3732 = vdwg.mxu0
    %3733 = vmatprep.subr.bf16.mxu0 %v3394
    %3734 = vmatpush1.bf16.msra.mxu0 %v3393
    %3735 = vmatprep.subr.bf16.mxu0 %v3398
    %3736 = vmatpush1.bf16.msra.mxu0 %v3397
    %3737 = vmatprep.subr.bf16.mxu0 %v3402
    %3738 = vmatpush1.bf16.msra.mxu0 %v3401
    %3739 = vmatprep.subr.bf16.mxu0 %v3406
    %3740 = vmatpush1.bf16.msra.mxu0 %v3405
    %3741 = vmatprep.subr.bf16.mxu0 %v3410
    %3742 = vmatpush1.bf16.msra.mxu0 %v3409
    %3743 = vmatprep.subr.bf16.mxu0 %v3414
    %3744 = vmatpush1.bf16.msra.mxu0 %v3413
    %3745 = vmatprep.subr.bf16.mxu0 %v3418
    %3746 = vmatpush1.bf16.msra.mxu0 %v3417
    %3747 = vmatprep.subr.bf16.mxu0 %v3422
    %3748 = vmatpush1.bf16.msra.mxu0 %v3421
    %3749 = vmatprep.subr.bf16.mxu0 %v3426
    %3750 = vmatpush1.bf16.msra.mxu0 %v3425
    %3751 = vmatprep.subr.bf16.mxu0 %v3430
    %3752 = vmatpush1.bf16.msra.mxu0 %v3429
    %3753 = vmatprep.subr.bf16.mxu0 %v3434
    %3754 = vmatpush1.bf16.msra.mxu0 %v3433
    %3755 = vmatprep.subr.bf16.mxu0 %v3438
    %3756 = vmatpush1.bf16.msra.mxu0 %v3437
    %3757 = vmatprep.subr.bf16.mxu0 %v3442
    %3758 = vmatpush1.bf16.msra.mxu0 %v3441
    %3759 = vmatprep.subr.bf16.mxu0 %v3446
    %3760 = vmatpush1.bf16.msra.mxu0 %v3445
    %3761 = vmatprep.subr.bf16.mxu0 %v3450
    %3762 = vmatpush1.bf16.msra.mxu0 %v3449
    %3763 = vmatprep.subr.bf16.mxu0 %v3454
    %3764 = vmatpush1.bf16.msra.mxu0 %v3453
    %3765 = vmatprep.mubr.bf16.mxu0 %v2854
    %3766 = vmatmul.mubr.bf16.gmra.mrb[0].mxu0 %v2853
    %v3767 = vpop.f32.mrb[0].mxu0
    %v3768 = vadd.f32 %v2998, %v3767
    %v3769 = vpop.f32.mrb[0].mxu0
    %v3770 = vadd.f32 %v3002, %v3769
    %v3771 = vpop.f32.mrb[0].mxu0
    %v3772 = vadd.f32 %v2998, %v3771
    %v3773 = vpop.f32.mrb[0].mxu0
    %v3774 = vadd.f32 %v3002, %v3773
    %3775 = vdwg.mxu0
    %3776 = vmatprep.subr.bf16.mxu0 %v3458
    %3777 = vmatpush1.bf16.msra.mxu0 %v3457
    %3778 = vmatprep.subr.bf16.mxu0 %v3462
    %3779 = vmatpush1.bf16.msra.mxu0 %v3461
    %3780 = vmatprep.subr.bf16.mxu0 %v3466
    %3781 = vmatpush1.bf16.msra.mxu0 %v3465
    %3782 = vmatprep.subr.bf16.mxu0 %v3470
    %3783 = vmatpush1.bf16.msra.mxu0 %v3469
    %3784 = vmatprep.subr.bf16.mxu0 %v3474
    %3785 = vmatpush1.bf16.msra.mxu0 %v3473
    %3786 = vmatprep.subr.bf16.mxu0 %v3478
    %3787 = vmatpush1.bf16.msra.mxu0 %v3477
    %3788 = vmatprep.subr.bf16.mxu0 %v3482
    %3789 = vmatpush1.bf16.msra.mxu0 %v3481
    %3790 = vmatprep.subr.bf16.mxu0 %v3486
    %3791 = vmatpush1.bf16.msra.mxu0 %v3485
    %3792 = vmatprep.subr.bf16.mxu0 %v3490
    %3793 = vmatpush1.bf16.msra.mxu0 %v3489
    %3794 = vmatprep.subr.bf16.mxu0 %v3494
    %3795 = vmatpush1.bf16.msra.mxu0 %v3493
    %3796 = vmatprep.subr.bf16.mxu0 %v3498
    %3797 = vmatpush1.bf16.msra.mxu0 %v3497
    %3798 = vmatprep.subr.bf16.mxu0 %v3502
    %3799 = vmatpush1.bf16.msra.mxu0 %v3501
    %3800 = vmatprep.subr.bf16.mxu0 %v3506
    %3801 = vmatpush1.bf16.msra.mxu0 %v3505
    %3802 = vmatprep.subr.bf16.mxu0 %v3510
    %3803 = vmatpush1.bf16.msra.mxu0 %v3509
    %3804 = vmatprep.subr.bf16.mxu0 %v3514
    %3805 = vmatpush1.bf16.msra.mxu0 %v3513
    %3806 = vmatprep.subr.bf16.mxu0 %v3518
    %3807 = vmatpush1.bf16.msra.mxu0 %v3517
    %3808 = vmatprep.mubr.bf16.mxu0 %v2856
    %3809 = vmatmul.mubr.bf16.gmra.mrb[0].mxu0 %v2855
    %v3810 = vpop.f32.mrb[0].mxu0
    %v3811 = vadd.f32 %v3768, %v3810
    %v3812 = vpop.f32.mrb[0].mxu0
    %v3813 = vadd.f32 %v3770, %v3812
    %v3814 = vpop.f32.mrb[0].mxu0
    %v3815 = vadd.f32 %v3772, %v3814
    %v3816 = vpop.f32.mrb[0].mxu0
    %v3817 = vadd.f32 %v3774, %v3816
    %3818 = vdwg.mxu0
    %v3819 = vmax.f32 %v3725, 0.0
    %v3820 = vmax.f32 %v3727, 0.0
    %v3821 = vmax.f32 %v3811, 0.0
    %v3822 = vmax.f32 %v3813, 0.0
    %v3823 = vmax.f32 %v3729, 0.0
    %v3824 = vmax.f32 %v3731, 0.0
    %v3825 = vmax.f32 %v3815, 0.0
    %v3826 = vmax.f32 %v3817, 0.0
    %v3827 = vpack.c.bf16 %v3823, %v3819
    %v3828 = vpack.c.bf16 %v3824, %v3820
    %v3829 = vpack.c.bf16 %v3825, %v3821
    %v3830 = vpack.c.bf16 %v3826, %v3822
    %v3831 = vld [vmem:[#allocation9] sm:$0xff]
    %v3832 = vld [vmem:[#allocation9 + $0x8] sm:$0xf]
    %v3833 = vld [vmem:[#allocation9 + $0xc] sm:$0xff]
    %v3834 = vld [vmem:[#allocation9 + $0x14] sm:$0xf]
    %v3835 = vld [vmem:[#allocation9 + $0x18] sm:$0xff]
    %v3836 = vld [vmem:[#allocation9 + $0x20] sm:$0xf]
    %v3837 = vld [vmem:[#allocation9 + $0x24] sm:$0xff]
    %v3838 = vld [vmem:[#allocation9 + $0x2c] sm:$0xf]
    %v3839 = vld [vmem:[#allocation9 + $0x30] sm:$0xff]
    %v3840 = vld [vmem:[#allocation9 + $0x38] sm:$0xf]
    %v3841 = vld [vmem:[#allocation9 + $0x3c] sm:$0xff]
    %v3842 = vld [vmem:[#allocation9 + $0x44] sm:$0xf]
    %v3843 = vld [vmem:[#allocation9 + $0x48] sm:$0xff]
    %v3844 = vld [vmem:[#allocation9 + $0x50] sm:$0xf]
    %v3845 = vld [vmem:[#allocation9 + $0x54] sm:$0xff]
    %v3846 = vld [vmem:[#allocation9 + $0x5c] sm:$0xf]
    %v3847 = vld [vmem:[#allocation9 + $0x60] sm:$0xff]
    %v3848 = vld [vmem:[#allocation9 + $0x68] sm:$0xf]
    %v3849 = vld [vmem:[#allocation9 + $0x6c] sm:$0xff]
    %v3850 = vld [vmem:[#allocation9 + $0x74] sm:$0xf]
    %v3851 = vld [vmem:[#allocation9 + $0x78] sm:$0xff]
    %v3852 = vld [vmem:[#allocation9 + $0x80] sm:$0xf]
    %v3853 = vld [vmem:[#allocation9 + $0x84] sm:$0xff]
    %v3854 = vld [vmem:[#allocation9 + $0x8c] sm:$0xf]
    %v3855 = vld [vmem:[#allocation9 + $0x90] sm:$0xff]
    %v3856 = vld [vmem:[#allocation9 + $0x98] sm:$0xf]
    %v3857 = vld [vmem:[#allocation9 + $0x9c] sm:$0xff]
    %v3858 = vld [vmem:[#allocation9 + $0xa4] sm:$0xf]
    %v3859 = vld [vmem:[#allocation9 + $0xa8] sm:$0xff]
    %v3860 = vld [vmem:[#allocation9 + $0xb0] sm:$0xf]
    %v3861 = vld [vmem:[#allocation9 + $0xb4] sm:$0xff]
    %v3862 = vld [vmem:[#allocation9 + $0xbc] sm:$0xf]
    %v3863 = vld [vmem:[#allocation9 + $0xc0] sm:$0xff]
    %v3864 = vld [vmem:[#allocation9 + $0xc8] sm:$0xf]
    %v3865 = vld [vmem:[#allocation9 + $0xcc] sm:$0xff]
    %v3866 = vld [vmem:[#allocation9 + $0xd4] sm:$0xf]
    %v3867 = vld [vmem:[#allocation9 + $0xd8] sm:$0xff]
    %v3868 = vld [vmem:[#allocation9 + $0xe0] sm:$0xf]
    %v3869 = vld [vmem:[#allocation9 + $0xe4] sm:$0xff]
    %v3870 = vld [vmem:[#allocation9 + $0xec] sm:$0xf]
    %v3871 = vld [vmem:[#allocation9 + $0xf0] sm:$0xff]
    %v3872 = vld [vmem:[#allocation9 + $0xf8] sm:$0xf]
    %v3873 = vld [vmem:[#allocation9 + $0xfc] sm:$0xff]
    %v3874 = vld [vmem:[#allocation9 + $0x104] sm:$0xf]
    %v3875 = vld [vmem:[#allocation9 + $0x108] sm:$0xff]
    %v3876 = vld [vmem:[#allocation9 + $0x110] sm:$0xf]
    %v3877 = vld [vmem:[#allocation9 + $0x114] sm:$0xff]
    %v3878 = vld [vmem:[#allocation9 + $0x11c] sm:$0xf]
    %v3879 = vld [vmem:[#allocation9 + $0x120] sm:$0xff]
    %v3880 = vld [vmem:[#allocation9 + $0x128] sm:$0xf]
    %v3881 = vld [vmem:[#allocation9 + $0x12c] sm:$0xff]
    %v3882 = vld [vmem:[#allocation9 + $0x134] sm:$0xf]
    %v3883 = vld [vmem:[#allocation9 + $0x138] sm:$0xff]
    %v3884 = vld [vmem:[#allocation9 + $0x140] sm:$0xf]
    %v3885 = vld [vmem:[#allocation9 + $0x144] sm:$0xff]
    %v3886 = vld [vmem:[#allocation9 + $0x14c] sm:$0xf]
    %v3887 = vld [vmem:[#allocation9 + $0x150] sm:$0xff]
    %v3888 = vld [vmem:[#allocation9 + $0x158] sm:$0xf]
    %v3889 = vld [vmem:[#allocation9 + $0x15c] sm:$0xff]
    %v3890 = vld [vmem:[#allocation9 + $0x164] sm:$0xf]
    %v3891 = vld [vmem:[#allocation9 + $0x168] sm:$0xff]
    %v3892 = vld [vmem:[#allocation9 + $0x170] sm:$0xf]
    %v3893 = vld [vmem:[#allocation9 + $0x174] sm:$0xff]
    %v3894 = vld [vmem:[#allocation9 + $0x17c] sm:$0xf]
    %v3895 = vld [vmem:[#allocation9 + $0x180] sm:$0xff]
    %v3896 = vld [vmem:[#allocation9 + $0x188] sm:$0xf]
    %v3897 = vld [vmem:[#allocation9 + $0x18c] sm:$0xff]
    %v3898 = vld [vmem:[#allocation9 + $0x194] sm:$0xf]
    %v3899 = vld [vmem:[#allocation9 + $0x198] sm:$0xff]
    %v3900 = vld [vmem:[#allocation9 + $0x1a0] sm:$0xf]
    %v3901 = vld [vmem:[#allocation9 + $0x1a4] sm:$0xff]
    %v3902 = vld [vmem:[#allocation9 + $0x1ac] sm:$0xf]
    %v3903 = vld [vmem:[#allocation9 + $0x1b0] sm:$0xff]
    %v3904 = vld [vmem:[#allocation9 + $0x1b8] sm:$0xf]
    %v3905 = vld [vmem:[#allocation9 + $0x1bc] sm:$0xff]
    %v3906 = vld [vmem:[#allocation9 + $0x1c4] sm:$0xf]
    %v3907 = vld [vmem:[#allocation9 + $0x1c8] sm:$0xff]
    %v3908 = vld [vmem:[#allocation9 + $0x1d0] sm:$0xf]
    %v3909 = vld [vmem:[#allocation9 + $0x1d4] sm:$0xff]
    %v3910 = vld [vmem:[#allocation9 + $0x1dc] sm:$0xf]
    %v3911 = vld [vmem:[#allocation9 + $0x1e0] sm:$0xff]
    %v3912 = vld [vmem:[#allocation9 + $0x1e8] sm:$0xf]
    %v3913 = vld [vmem:[#allocation9 + $0x1ec] sm:$0xff]
    %v3914 = vld [vmem:[#allocation9 + $0x1f4] sm:$0xf]
    %v3915 = vld [vmem:[#allocation9 + $0x1f8] sm:$0xff]
    %v3916 = vld [vmem:[#allocation9 + $0x200] sm:$0xf]
    %v3917 = vld [vmem:[#allocation9 + $0x204] sm:$0xff]
    %v3918 = vld [vmem:[#allocation9 + $0x20c] sm:$0xf]
    %v3919 = vld [vmem:[#allocation9 + $0x210] sm:$0xff]
    %v3920 = vld [vmem:[#allocation9 + $0x218] sm:$0xf]
    %v3921 = vld [vmem:[#allocation9 + $0x21c] sm:$0xff]
    %v3922 = vld [vmem:[#allocation9 + $0x224] sm:$0xf]
    %v3923 = vld [vmem:[#allocation9 + $0x228] sm:$0xff]
    %v3924 = vld [vmem:[#allocation9 + $0x230] sm:$0xf]
    %v3925 = vld [vmem:[#allocation9 + $0x234] sm:$0xff]
    %v3926 = vld [vmem:[#allocation9 + $0x23c] sm:$0xf]
    %v3927 = vld [vmem:[#allocation9 + $0x240] sm:$0xff]
    %v3928 = vld [vmem:[#allocation9 + $0x248] sm:$0xf]
    %v3929 = vld [vmem:[#allocation9 + $0x24c] sm:$0xff]
    %v3930 = vld [vmem:[#allocation9 + $0x254] sm:$0xf]
    %v3931 = vld [vmem:[#allocation9 + $0x258] sm:$0xff]
    %v3932 = vld [vmem:[#allocation9 + $0x260] sm:$0xf]
    %v3933 = vld [vmem:[#allocation9 + $0x264] sm:$0xff]
    %v3934 = vld [vmem:[#allocation9 + $0x26c] sm:$0xf]
    %v3935 = vld [vmem:[#allocation9 + $0x270] sm:$0xff]
    %v3936 = vld [vmem:[#allocation9 + $0x278] sm:$0xf]
    %v3937 = vld [vmem:[#allocation9 + $0x27c] sm:$0xff]
    %v3938 = vld [vmem:[#allocation9 + $0x284] sm:$0xf]
    %v3939 = vld [vmem:[#allocation9 + $0x288] sm:$0xff]
    %v3940 = vld [vmem:[#allocation9 + $0x290] sm:$0xf]
    %v3941 = vld [vmem:[#allocation9 + $0x294] sm:$0xff]
    %v3942 = vld [vmem:[#allocation9 + $0x29c] sm:$0xf]
    %v3943 = vld [vmem:[#allocation9 + $0x2a0] sm:$0xff]
    %v3944 = vld [vmem:[#allocation9 + $0x2a8] sm:$0xf]
    %v3945 = vld [vmem:[#allocation9 + $0x2ac] sm:$0xff]
    %v3946 = vld [vmem:[#allocation9 + $0x2b4] sm:$0xf]
    %v3947 = vld [vmem:[#allocation9 + $0x2b8] sm:$0xff]
    %v3948 = vld [vmem:[#allocation9 + $0x2c0] sm:$0xf]
    %v3949 = vld [vmem:[#allocation9 + $0x2c4] sm:$0xff]
    %v3950 = vld [vmem:[#allocation9 + $0x2cc] sm:$0xf]
    %v3951 = vld [vmem:[#allocation9 + $0x2d0] sm:$0xff]
    %v3952 = vld [vmem:[#allocation9 + $0x2d8] sm:$0xf]
    %v3953 = vld [vmem:[#allocation9 + $0x2dc] sm:$0xff]
    %v3954 = vld [vmem:[#allocation9 + $0x2e4] sm:$0xf]
    %v3955 = vld [vmem:[#allocation9 + $0x2e8] sm:$0xff]
    %v3956 = vld [vmem:[#allocation9 + $0x2f0] sm:$0xf]
    %v3957 = vld [vmem:[#allocation9 + $0x2f4] sm:$0xff]
    %v3958 = vld [vmem:[#allocation9 + $0x2fc] sm:$0xf]
    %v3959 = vld [vmem:[%s10] sm:$0x7]
    %v3961 = vlaneseq
    %v3962 = vshrl.u32 %v3961, 7
    %v3963 = vsub.s32 0, %v3962
    %v3964 = vrot.slane %v3959, %v3963
    %v3965 = vlaneseq
    %v3966 = vshrl.u32 %v3965, 7
    %v3967 = vsub.s32 1, %v3966
    %v3968 = vrot.slane %v3959, %v3967
    %v3969 = vlaneseq
    %v3970 = vshrl.u32 %v3969, 7
    %v3971 = vsub.s32 2, %v3970
    %v3972 = vrot.slane %v3959, %v3971
    %v4104 = vunpack.c.l.b16 %v3831
    %v4105 = vunpack.c.h.b16 %v3831
    %v4106 = vunpack.c.l.b16 %v3832
    %v4107 = vunpack.c.l.b16 %v3833
    %v4108 = vunpack.c.h.b16 %v3833
    %v4109 = vunpack.c.l.b16 %v3834
    %v4110 = vunpack.c.l.b16 %v3835
    %v4111 = vunpack.c.h.b16 %v3835
    %v4112 = vunpack.c.l.b16 %v3836
    %v4113 = vunpack.c.l.b16 %v3837
    %v4114 = vunpack.c.h.b16 %v3837
    %v4115 = vunpack.c.l.b16 %v3838
    %v4116 = vunpack.c.l.b16 %v3839
    %v4117 = vunpack.c.h.b16 %v3839
    %v4118 = vunpack.c.l.b16 %v3840
    %v4119 = vunpack.c.l.b16 %v3841
    %v4120 = vunpack.c.h.b16 %v3841
    %v4121 = vunpack.c.l.b16 %v3842
    %v4122 = vunpack.c.l.b16 %v3843
    %v4123 = vunpack.c.h.b16 %v3843
    %v4124 = vunpack.c.l.b16 %v3844
    %v4125 = vunpack.c.l.b16 %v3845
    %v4126 = vunpack.c.h.b16 %v3845
    %v4127 = vunpack.c.l.b16 %v3846
    %v4128 = vunpack.c.l.b16 %v3847
    %v4129 = vunpack.c.h.b16 %v3847
    %v4130 = vunpack.c.l.b16 %v3848
    %v4131 = vunpack.c.l.b16 %v3849
    %v4132 = vunpack.c.h.b16 %v3849
    %v4133 = vunpack.c.l.b16 %v3850
    %v4134 = vunpack.c.l.b16 %v3851
    %v4135 = vunpack.c.h.b16 %v3851
    %v4136 = vunpack.c.l.b16 %v3852
    %v4137 = vunpack.c.l.b16 %v3853
    %v4138 = vunpack.c.h.b16 %v3853
    %v4139 = vunpack.c.l.b16 %v3854
    %v4140 = vunpack.c.l.b16 %v3855
    %v4141 = vunpack.c.h.b16 %v3855
    %v4142 = vunpack.c.l.b16 %v3856
    %v4143 = vunpack.c.l.b16 %v3857
    %v4144 = vunpack.c.h.b16 %v3857
    %v4145 = vunpack.c.l.b16 %v3858
    %v4146 = vunpack.c.l.b16 %v3859
    %v4147 = vunpack.c.h.b16 %v3859
    %v4148 = vunpack.c.l.b16 %v3860
    %v4149 = vunpack.c.l.b16 %v3861
    %v4150 = vunpack.c.h.b16 %v3861
    %v4151 = vunpack.c.l.b16 %v3862
    %v4152 = vunpack.c.l.b16 %v3863
    %v4153 = vunpack.c.h.b16 %v3863
    %v4154 = vunpack.c.l.b16 %v3864
    %v4155 = vunpack.c.l.b16 %v3865
    %v4156 = vunpack.c.h.b16 %v3865
    %v4157 = vunpack.c.l.b16 %v3866
    %v4158 = vunpack.c.l.b16 %v3867
    %v4159 = vunpack.c.h.b16 %v3867
    %v4160 = vunpack.c.l.b16 %v3868
    %v4161 = vunpack.c.l.b16 %v3869
    %v4162 = vunpack.c.h.b16 %v3869
    %v4163 = vunpack.c.l.b16 %v3870
    %v4164 = vunpack.c.l.b16 %v3871
    %v4165 = vunpack.c.h.b16 %v3871
    %v4166 = vunpack.c.l.b16 %v3872
    %v4167 = vunpack.c.l.b16 %v3873
    %v4168 = vunpack.c.h.b16 %v3873
    %v4169 = vunpack.c.l.b16 %v3874
    %v4170 = vunpack.c.l.b16 %v3875
    %v4171 = vunpack.c.h.b16 %v3875
    %v4172 = vunpack.c.l.b16 %v3876
    %v4173 = vunpack.c.l.b16 %v3877
    %v4174 = vunpack.c.h.b16 %v3877
    %v4175 = vunpack.c.l.b16 %v3878
    %v4176 = vunpack.c.l.b16 %v3879
    %v4177 = vunpack.c.h.b16 %v3879
    %v4178 = vunpack.c.l.b16 %v3880
    %v4179 = vunpack.c.l.b16 %v3881
    %v4180 = vunpack.c.h.b16 %v3881
    %v4181 = vunpack.c.l.b16 %v3882
    %v4182 = vunpack.c.l.b16 %v3883
    %v4183 = vunpack.c.h.b16 %v3883
    %v4184 = vunpack.c.l.b16 %v3884
    %v4185 = vunpack.c.l.b16 %v3885
    %v4186 = vunpack.c.h.b16 %v3885
    %v4187 = vunpack.c.l.b16 %v3886
    %v4188 = vunpack.c.l.b16 %v3887
    %v4189 = vunpack.c.h.b16 %v3887
    %v4190 = vunpack.c.l.b16 %v3888
    %v4191 = vunpack.c.l.b16 %v3889
    %v4192 = vunpack.c.h.b16 %v3889
    %v4193 = vunpack.c.l.b16 %v3890
    %v4194 = vunpack.c.l.b16 %v3891
    %v4195 = vunpack.c.h.b16 %v3891
    %v4196 = vunpack.c.l.b16 %v3892
    %v4197 = vunpack.c.l.b16 %v3893
    %v4198 = vunpack.c.h.b16 %v3893
    %v4199 = vunpack.c.l.b16 %v3894
    %v4200 = vunpack.c.l.b16 %v3895
    %v4201 = vunpack.c.h.b16 %v3895
    %v4202 = vunpack.c.l.b16 %v3896
    %v4203 = vunpack.c.l.b16 %v3897
    %v4204 = vunpack.c.h.b16 %v3897
    %v4205 = vunpack.c.l.b16 %v3898
    %v4206 = vunpack.c.l.b16 %v3899
    %v4207 = vunpack.c.h.b16 %v3899
    %v4208 = vunpack.c.l.b16 %v3900
    %v4209 = vunpack.c.l.b16 %v3901
    %v4210 = vunpack.c.h.b16 %v3901
    %v4211 = vunpack.c.l.b16 %v3902
    %v4212 = vunpack.c.l.b16 %v3903
    %v4213 = vunpack.c.h.b16 %v3903
    %v4214 = vunpack.c.l.b16 %v3904
    %v4215 = vunpack.c.l.b16 %v3905
    %v4216 = vunpack.c.h.b16 %v3905
    %v4217 = vunpack.c.l.b16 %v3906
    %v4218 = vunpack.c.l.b16 %v3907
    %v4219 = vunpack.c.h.b16 %v3907
    %v4220 = vunpack.c.l.b16 %v3908
    %v4221 = vunpack.c.l.b16 %v3909
    %v4222 = vunpack.c.h.b16 %v3909
    %v4223 = vunpack.c.l.b16 %v3910
    %v4224 = vunpack.c.l.b16 %v3911
    %v4225 = vunpack.c.h.b16 %v3911
    %v4226 = vunpack.c.l.b16 %v3912
    %v4227 = vunpack.c.l.b16 %v3913
    %v4228 = vunpack.c.h.b16 %v3913
    %v4229 = vunpack.c.l.b16 %v3914
    %v4230 = vunpack.c.l.b16 %v3915
    %v4231 = vunpack.c.h.b16 %v3915
    %v4232 = vunpack.c.l.b16 %v3916
    %v4233 = vunpack.c.l.b16 %v3917
    %v4234 = vunpack.c.h.b16 %v3917
    %v4235 = vunpack.c.l.b16 %v3918
    %v4236 = vunpack.c.l.b16 %v3919
    %v4237 = vunpack.c.h.b16 %v3919
    %v4238 = vunpack.c.l.b16 %v3920
    %v4239 = vunpack.c.l.b16 %v3921
    %v4240 = vunpack.c.h.b16 %v3921
    %v4241 = vunpack.c.l.b16 %v3922
    %v4242 = vunpack.c.l.b16 %v3923
    %v4243 = vunpack.c.h.b16 %v3923
    %v4244 = vunpack.c.l.b16 %v3924
    %v4245 = vunpack.c.l.b16 %v3925
    %v4246 = vunpack.c.h.b16 %v3925
    %v4247 = vunpack.c.l.b16 %v3926
    %v4248 = vunpack.c.l.b16 %v3927
    %v4249 = vunpack.c.h.b16 %v3927
    %v4250 = vunpack.c.l.b16 %v3928
    %v4251 = vunpack.c.l.b16 %v3929
    %v4252 = vunpack.c.h.b16 %v3929
    %v4253 = vunpack.c.l.b16 %v3930
    %v4254 = vunpack.c.l.b16 %v3931
    %v4255 = vunpack.c.h.b16 %v3931
    %v4256 = vunpack.c.l.b16 %v3932
    %v4257 = vunpack.c.l.b16 %v3933
    %v4258 = vunpack.c.h.b16 %v3933
    %v4259 = vunpack.c.l.b16 %v3934
    %v4260 = vunpack.c.l.b16 %v3935
    %v4261 = vunpack.c.h.b16 %v3935
    %v4262 = vunpack.c.l.b16 %v3936
    %v4263 = vunpack.c.l.b16 %v3937
    %v4264 = vunpack.c.h.b16 %v3937
    %v4265 = vunpack.c.l.b16 %v3938
    %v4266 = vunpack.c.l.b16 %v3939
    %v4267 = vunpack.c.h.b16 %v3939
    %v4268 = vunpack.c.l.b16 %v3940
    %v4269 = vunpack.c.l.b16 %v3941
    %v4270 = vunpack.c.h.b16 %v3941
    %v4271 = vunpack.c.l.b16 %v3942
    %v4272 = vunpack.c.l.b16 %v3943
    %v4273 = vunpack.c.h.b16 %v3943
    %v4274 = vunpack.c.l.b16 %v3944
    %v4275 = vunpack.c.l.b16 %v3945
    %v4276 = vunpack.c.h.b16 %v3945
    %v4277 = vunpack.c.l.b16 %v3946
    %v4278 = vunpack.c.l.b16 %v3947
    %v4279 = vunpack.c.h.b16 %v3947
    %v4280 = vunpack.c.l.b16 %v3948
    %v4281 = vunpack.c.l.b16 %v3949
    %v4282 = vunpack.c.h.b16 %v3949
    %v4283 = vunpack.c.l.b16 %v3950
    %v4284 = vunpack.c.l.b16 %v3951
    %v4285 = vunpack.c.h.b16 %v3951
    %v4286 = vunpack.c.l.b16 %v3952
    %v4287 = vunpack.c.l.b16 %v3953
    %v4288 = vunpack.c.h.b16 %v3953
    %v4289 = vunpack.c.l.b16 %v3954
    %v4290 = vunpack.c.l.b16 %v3955
    %v4291 = vunpack.c.h.b16 %v3955
    %v4292 = vunpack.c.l.b16 %v3956
    %v4293 = vunpack.c.l.b16 %v3957
    %v4294 = vunpack.c.h.b16 %v3957
    %v4295 = vunpack.c.l.b16 %v3958
    %v4296 = vpack.c.b16 %v4107, %v4104
    %v4297 = vpack.c.b16 %v4108, %v4105
    %v4298 = vpack.c.b16 %v4109, %v4106
    %v4299 = vpack.c.b16 %v4113, %v4110
    %v4300 = vpack.c.b16 %v4114, %v4111
    %v4301 = vpack.c.b16 %v4115, %v4112
    %v4302 = vpack.c.b16 %v4119, %v4116
    %v4303 = vpack.c.b16 %v4120, %v4117
    %v4304 = vpack.c.b16 %v4121, %v4118
    %v4305 = vpack.c.b16 %v4125, %v4122
    %v4306 = vpack.c.b16 %v4126, %v4123
    %v4307 = vpack.c.b16 %v4127, %v4124
    %v4308 = vpack.c.b16 %v4131, %v4128
    %v4309 = vpack.c.b16 %v4132, %v4129
    %v4310 = vpack.c.b16 %v4133, %v4130
    %v4311 = vpack.c.b16 %v4137, %v4134
    %v4312 = vpack.c.b16 %v4138, %v4135
    %v4313 = vpack.c.b16 %v4139, %v4136
    %v4314 = vpack.c.b16 %v4143, %v4140
    %v4315 = vpack.c.b16 %v4144, %v4141
    %v4316 = vpack.c.b16 %v4145, %v4142
    %v4317 = vpack.c.b16 %v4149, %v4146
    %v4318 = vpack.c.b16 %v4150, %v4147
    %v4319 = vpack.c.b16 %v4151, %v4148
    %v4320 = vpack.c.b16 %v4155, %v4152
    %v4321 = vpack.c.b16 %v4156, %v4153
    %v4322 = vpack.c.b16 %v4157, %v4154
    %v4323 = vpack.c.b16 %v4161, %v4158
    %v4324 = vpack.c.b16 %v4162, %v4159
    %v4325 = vpack.c.b16 %v4163, %v4160
    %v4326 = vpack.c.b16 %v4167, %v4164
    %v4327 = vpack.c.b16 %v4168, %v4165
    %v4328 = vpack.c.b16 %v4169, %v4166
    %v4329 = vpack.c.b16 %v4173, %v4170
    %v4330 = vpack.c.b16 %v4174, %v4171
    %v4331 = vpack.c.b16 %v4175, %v4172
    %v4332 = vpack.c.b16 %v4179, %v4176
    %v4333 = vpack.c.b16 %v4180, %v4177
    %v4334 = vpack.c.b16 %v4181, %v4178
    %v4335 = vpack.c.b16 %v4185, %v4182
    %v4336 = vpack.c.b16 %v4186, %v4183
    %v4337 = vpack.c.b16 %v4187, %v4184
    %v4338 = vpack.c.b16 %v4191, %v4188
    %v4339 = vpack.c.b16 %v4192, %v4189
    %v4340 = vpack.c.b16 %v4193, %v4190
    %v4341 = vpack.c.b16 %v4197, %v4194
    %v4342 = vpack.c.b16 %v4198, %v4195
    %v4343 = vpack.c.b16 %v4199, %v4196
    %v4344 = vpack.c.b16 %v4203, %v4200
    %v4345 = vpack.c.b16 %v4204, %v4201
    %v4346 = vpack.c.b16 %v4205, %v4202
    %v4347 = vpack.c.b16 %v4209, %v4206
    %v4348 = vpack.c.b16 %v4210, %v4207
    %v4349 = vpack.c.b16 %v4211, %v4208
    %v4350 = vpack.c.b16 %v4215, %v4212
    %v4351 = vpack.c.b16 %v4216, %v4213
    %v4352 = vpack.c.b16 %v4217, %v4214
    %v4353 = vpack.c.b16 %v4221, %v4218
    %v4354 = vpack.c.b16 %v4222, %v4219
    %v4355 = vpack.c.b16 %v4223, %v4220
    %v4356 = vpack.c.b16 %v4227, %v4224
    %v4357 = vpack.c.b16 %v4228, %v4225
    %v4358 = vpack.c.b16 %v4229, %v4226
    %v4359 = vpack.c.b16 %v4233, %v4230
    %v4360 = vpack.c.b16 %v4234, %v4231
    %v4361 = vpack.c.b16 %v4235, %v4232
    %v4362 = vpack.c.b16 %v4239, %v4236
    %v4363 = vpack.c.b16 %v4240, %v4237
    %v4364 = vpack.c.b16 %v4241, %v4238
    %v4365 = vpack.c.b16 %v4245, %v4242
    %v4366 = vpack.c.b16 %v4246, %v4243
    %v4367 = vpack.c.b16 %v4247, %v4244
    %v4368 = vpack.c.b16 %v4251, %v4248
    %v4369 = vpack.c.b16 %v4252, %v4249
    %v4370 = vpack.c.b16 %v4253, %v4250
    %v4371 = vpack.c.b16 %v4257, %v4254
    %v4372 = vpack.c.b16 %v4258, %v4255
    %v4373 = vpack.c.b16 %v4259, %v4256
    %v4374 = vpack.c.b16 %v4263, %v4260
    %v4375 = vpack.c.b16 %v4264, %v4261
    %v4376 = vpack.c.b16 %v4265, %v4262
    %v4377 = vpack.c.b16 %v4269, %v4266
    %v4378 = vpack.c.b16 %v4270, %v4267
    %v4379 = vpack.c.b16 %v4271, %v4268
    %v4380 = vpack.c.b16 %v4275, %v4272
    %v4381 = vpack.c.b16 %v4276, %v4273
    %v4382 = vpack.c.b16 %v4277, %v4274
    %v4383 = vpack.c.b16 %v4281, %v4278
    %v4384 = vpack.c.b16 %v4282, %v4279
    %v4385 = vpack.c.b16 %v4283, %v4280
    %v4386 = vpack.c.b16 %v4287, %v4284
    %v4387 = vpack.c.b16 %v4288, %v4285
    %v4388 = vpack.c.b16 %v4289, %v4286
    %v4389 = vpack.c.b16 %v4293, %v4290
    %v4390 = vpack.c.b16 %v4294, %v4291
    %v4391 = vpack.c.b16 %v4295, %v4292
    %4488 = vmatprep.subr.bf16.mxu0 %v4297
    %4489 = vmatpush1.bf16.msra.mxu0 %v4296
    %4490 = vmatprep.subr.bf16.mxu0 %v4300
    %4491 = vmatpush1.bf16.msra.mxu0 %v4299
    %4492 = vmatprep.subr.bf16.mxu0 %v4303
    %4493 = vmatpush1.bf16.msra.mxu0 %v4302
    %4494 = vmatprep.subr.bf16.mxu0 %v4306
    %4495 = vmatpush1.bf16.msra.mxu0 %v4305
    %4496 = vmatprep.subr.bf16.mxu0 %v4309
    %4497 = vmatpush1.bf16.msra.mxu0 %v4308
    %4498 = vmatprep.subr.bf16.mxu0 %v4312
    %4499 = vmatpush1.bf16.msra.mxu0 %v4311
    %4500 = vmatprep.subr.bf16.mxu0 %v4315
    %4501 = vmatpush1.bf16.msra.mxu0 %v4314
    %4502 = vmatprep.subr.bf16.mxu0 %v4318
    %4503 = vmatpush1.bf16.msra.mxu0 %v4317
    %4504 = vmatprep.subr.bf16.mxu0 %v4321
    %4505 = vmatpush1.bf16.msra.mxu0 %v4320
    %4506 = vmatprep.subr.bf16.mxu0 %v4324
    %4507 = vmatpush1.bf16.msra.mxu0 %v4323
    %4508 = vmatprep.subr.bf16.mxu0 %v4327
    %4509 = vmatpush1.bf16.msra.mxu0 %v4326
    %4510 = vmatprep.subr.bf16.mxu0 %v4330
    %4511 = vmatpush1.bf16.msra.mxu0 %v4329
    %4512 = vmatprep.subr.bf16.mxu0 %v4333
    %4513 = vmatpush1.bf16.msra.mxu0 %v4332
    %4514 = vmatprep.subr.bf16.mxu0 %v4336
    %4515 = vmatpush1.bf16.msra.mxu0 %v4335
    %4516 = vmatprep.subr.bf16.mxu0 %v4339
    %4517 = vmatpush1.bf16.msra.mxu0 %v4338
    %4518 = vmatprep.subr.bf16.mxu0 %v4342
    %4519 = vmatpush1.bf16.msra.mxu0 %v4341
    %4520 = vmatprep.mubr.bf16.mxu0 %v3828
    %4521 = vmatmul.mubr.bf16.gmra.mrb[0].mxu0 %v3827
    %v4522 = vpop.f32.mrb[0].mxu0
    %v4523 = vadd.f32 %v3964, %v4522
    %v4524 = vpop.f32.mrb[0].mxu0
    %v4525 = vadd.f32 %v3968, %v4524
    %v4526 = vpop.f32.mrb[0].mxu0
    %v4527 = vadd.f32 %v3964, %v4526
    %v4528 = vpop.f32.mrb[0].mxu0
    %v4529 = vadd.f32 %v3968, %v4528
    %4530 = vdwg.mxu0
    %4531 = vmatprep.subr.bf16.mxu0 %v4345
    %4532 = vmatpush1.bf16.msra.mxu0 %v4344
    %4533 = vmatprep.subr.bf16.mxu0 %v4348
    %4534 = vmatpush1.bf16.msra.mxu0 %v4347
    %4535 = vmatprep.subr.bf16.mxu0 %v4351
    %4536 = vmatpush1.bf16.msra.mxu0 %v4350
    %4537 = vmatprep.subr.bf16.mxu0 %v4354
    %4538 = vmatpush1.bf16.msra.mxu0 %v4353
    %4539 = vmatprep.subr.bf16.mxu0 %v4357
    %4540 = vmatpush1.bf16.msra.mxu0 %v4356
    %4541 = vmatprep.subr.bf16.mxu0 %v4360
    %4542 = vmatpush1.bf16.msra.mxu0 %v4359
    %4543 = vmatprep.subr.bf16.mxu0 %v4363
    %4544 = vmatpush1.bf16.msra.mxu0 %v4362
    %4545 = vmatprep.subr.bf16.mxu0 %v4366
    %4546 = vmatpush1.bf16.msra.mxu0 %v4365
    %4547 = vmatprep.subr.bf16.mxu0 %v4369
    %4548 = vmatpush1.bf16.msra.mxu0 %v4368
    %4549 = vmatprep.subr.bf16.mxu0 %v4372
    %4550 = vmatpush1.bf16.msra.mxu0 %v4371
    %4551 = vmatprep.subr.bf16.mxu0 %v4375
    %4552 = vmatpush1.bf16.msra.mxu0 %v4374
    %4553 = vmatprep.subr.bf16.mxu0 %v4378
    %4554 = vmatpush1.bf16.msra.mxu0 %v4377
    %4555 = vmatprep.subr.bf16.mxu0 %v4381
    %4556 = vmatpush1.bf16.msra.mxu0 %v4380
    %4557 = vmatprep.subr.bf16.mxu0 %v4384
    %4558 = vmatpush1.bf16.msra.mxu0 %v4383
    %4559 = vmatprep.subr.bf16.mxu0 %v4387
    %4560 = vmatpush1.bf16.msra.mxu0 %v4386
    %4561 = vmatprep.subr.bf16.mxu0 %v4390
    %4562 = vmatpush1.bf16.msra.mxu0 %v4389
    %4563 = vmatprep.mubr.bf16.mxu0 %v3830
    %4564 = vmatmul.mubr.bf16.gmra.mrb[0].mxu0 %v3829
    %v4565 = vpop.f32.mrb[0].mxu0
    %v4566 = vadd.f32 %v4523, %v4565
    %v4567 = vpop.f32.mrb[0].mxu0
    %v4568 = vadd.f32 %v4525, %v4567
    %v4569 = vpop.f32.mrb[0].mxu0
    %v4570 = vadd.f32 %v4527, %v4569
    %v4571 = vpop.f32.mrb[0].mxu0
    %v4572 = vadd.f32 %v4529, %v4571
    %4573 = vdwg.mxu0
    %4574 = vmatprep.subr.bf16.mxu0 0
    %4575 = vmatpush1.bf16.msra.mxu0 %v4298
    %4576 = vmatprep.subr.bf16.mxu0 0
    %4577 = vmatpush1.bf16.msra.mxu0 %v4301
    %4578 = vmatprep.subr.bf16.mxu0 0
    %4579 = vmatpush1.bf16.msra.mxu0 %v4304
    %4580 = vmatprep.subr.bf16.mxu0 0
    %4581 = vmatpush1.bf16.msra.mxu0 %v4307
    %4582 = vmatprep.subr.bf16.mxu0 0
    %4583 = vmatpush1.bf16.msra.mxu0 %v4310
    %4584 = vmatprep.subr.bf16.mxu0 0
    %4585 = vmatpush1.bf16.msra.mxu0 %v4313
    %4586 = vmatprep.subr.bf16.mxu0 0
    %4587 = vmatpush1.bf16.msra.mxu0 %v4316
    %4588 = vmatprep.subr.bf16.mxu0 0
    %4589 = vmatpush1.bf16.msra.mxu0 %v4319
    %4590 = vmatprep.subr.bf16.mxu0 0
    %4591 = vmatpush1.bf16.msra.mxu0 %v4322
    %4592 = vmatprep.subr.bf16.mxu0 0
    %4593 = vmatpush1.bf16.msra.mxu0 %v4325
    %4594 = vmatprep.subr.bf16.mxu0 0
    %4595 = vmatpush1.bf16.msra.mxu0 %v4328
    %4596 = vmatprep.subr.bf16.mxu0 0
    %4597 = vmatpush1.bf16.msra.mxu0 %v4331
    %4598 = vmatprep.subr.bf16.mxu0 0
    %4599 = vmatpush1.bf16.msra.mxu0 %v4334
    %4600 = vmatprep.subr.bf16.mxu0 0
    %4601 = vmatpush1.bf16.msra.mxu0 %v4337
    %4602 = vmatprep.subr.bf16.mxu0 0
    %4603 = vmatpush1.bf16.msra.mxu0 %v4340
    %4604 = vmatprep.subr.bf16.mxu0 0
    %4605 = vmatpush1.bf16.msra.mxu0 %v4343
    %4606 = vmatprep.mubr.bf16.mxu0 %v3828
    %4607 = vmatmul.mubr.bf16.gmra.mrb[0].mxu0 %v3827
    %v4608 = vpop.f32.mrb[0].mxu0
    %v4609 = vadd.f32 %v3972, %v4608
    %v4610 = vpop.f32.mrb[0].mxu0
    %v4611 = vpop.f32.mrb[0].mxu0
    %v4612 = vadd.f32 %v3972, %v4611
    %v4613 = vpop.f32.mrb[0].mxu0
    %4614 = vdwg.mxu0
    %4615 = vmatprep.subr.bf16.mxu0 0
    %4616 = vmatpush1.bf16.msra.mxu0 %v4346
    %4617 = vmatprep.subr.bf16.mxu0 0
    %4618 = vmatpush1.bf16.msra.mxu0 %v4349
    %4619 = vmatprep.subr.bf16.mxu0 0
    %4620 = vmatpush1.bf16.msra.mxu0 %v4352
    %4621 = vmatprep.subr.bf16.mxu0 0
    %4622 = vmatpush1.bf16.msra.mxu0 %v4355
    %4623 = vmatprep.subr.bf16.mxu0 0
    %4624 = vmatpush1.bf16.msra.mxu0 %v4358
    %4625 = vmatprep.subr.bf16.mxu0 0
    %4626 = vmatpush1.bf16.msra.mxu0 %v4361
    %4627 = vmatprep.subr.bf16.mxu0 0
    %4628 = vmatpush1.bf16.msra.mxu0 %v4364
    %4629 = vmatprep.subr.bf16.mxu0 0
    %4630 = vmatpush1.bf16.msra.mxu0 %v4367
    %4631 = vmatprep.subr.bf16.mxu0 0
    %4632 = vmatpush1.bf16.msra.mxu0 %v4370
    %4633 = vmatprep.subr.bf16.mxu0 0
    %4634 = vmatpush1.bf16.msra.mxu0 %v4373
    %4635 = vmatprep.subr.bf16.mxu0 0
    %4636 = vmatpush1.bf16.msra.mxu0 %v4376
    %4637 = vmatprep.subr.bf16.mxu0 0
    %4638 = vmatpush1.bf16.msra.mxu0 %v4379
    %4639 = vmatprep.subr.bf16.mxu0 0
    %4640 = vmatpush1.bf16.msra.mxu0 %v4382
    %4641 = vmatprep.subr.bf16.mxu0 0
    %4642 = vmatpush1.bf16.msra.mxu0 %v4385
    %4643 = vmatprep.subr.bf16.mxu0 0
    %4644 = vmatpush1.bf16.msra.mxu0 %v4388
    %4645 = vmatprep.subr.bf16.mxu0 0
    %4646 = vmatpush1.bf16.msra.mxu0 %v4391
    %4647 = vmatprep.mubr.bf16.mxu0 %v3830
    %4648 = vmatmul.mubr.bf16.gmra.mrb[0].mxu0 %v3829
    %v4649 = vpop.f32.mrb[0].mxu0
    %v4650 = vadd.f32 %v4609, %v4649
    %v4651 = vpop.f32.mrb[0].mxu0
    %v4652 = vpop.f32.mrb[0].mxu0
    %v4653 = vadd.f32 %v4612, %v4652
    %v4654 = vpop.f32.mrb[0].mxu0
    %4655 = vdwg.mxu0
    %4656 = vst [vmem:[%s11] sm:$0xff] %v4566
    %4657 = vst [vmem:[%s11 + $0x8] sm:$0xff] %v4568
    %4658 = vst [vmem:[%s11 + $0x10] sm:$0xff] %v4650
    %4659 = vst [vmem:[%s11 + $0x18] sm:$0xff] %v4570
    %4660 = vst [vmem:[%s11 + $0x20] sm:$0xff] %v4572
    %4661 = vst [vmem:[%s11 + $0x28] sm:$0xff] %v4653
    // Predicated region
    $region66: #{fcnn_forward.1} parent=1 // pred_check
      _
    $region67: #{fcnn_forward.1} parent=1 // pred_check_branch
      %4663 = sbr.rel (0) target = $region69
    $region68: #{fcnn_forward.1} parent=1 // pred_region
      _
    $region69: #{fcnn_forward.1} parent=1 // pred_fallthru
      _
    // Predicated region
    $region70: #{fcnn_forward.1} parent=1 // pred_check
      _
    $region71: #{fcnn_forward.1} parent=1 // pred_check_branch
      %4665 = sbr.rel (0) target = $region73
    $region72: #{fcnn_forward.1} parent=1 // pred_region
      _
    $region73: #{fcnn_forward.1} parent=1 // pred_fallthru
      _
    %4666 = vsyncpa [#allocation3], 1
    %4667 = vsyncpa [#allocation5], 1
    %4668 = vsyncpa [#allocation8], 1

</llo_original>
